<compile_context>
chip_gen: v7x
topology: tpu7x:2x2x1
jax: 0.10.0
libtpu: 0.0.40
codegen_flags: <defaults>
</compile_context>

<pallas_src>
import math
import jax
import jax.numpy as jnp
from jax import lax
from jax.experimental import pallas as pl
from jax.experimental.pallas import tpu as pltpu

# ---- model hyper-parameters (Walker2d dims) ----------------------------------
STATE_DIM = 17
ACTION_DIM = 6
INPUT_TOKEN_DIM = STATE_DIM + ACTION_DIM      # 23
D_MODEL = 32
NHEAD = 4
HEAD_DIM = D_MODEL // NHEAD                   # 8
NUM_LAYERS = 2
DIM_FF = 64
LN_EPS = 1e-5

BATCH = 2
SEQ = 8                                       # task tokens per trajectory
L = SEQ + 1                                   # +1 for CLS token
BL = BATCH * L                                # flattened sequence rows (18)

# ---- packed parameter slab layout (all params in ONE (rows, 128) f32 buffer) --
_LAYER_PARAM_SHAPES = [
    ("wq", D_MODEL, D_MODEL), ("wk", D_MODEL, D_MODEL), ("wv", D_MODEL, D_MODEL),
    ("wo", D_MODEL, D_MODEL), ("w1", D_MODEL, DIM_FF), ("w2", DIM_FF, D_MODEL),
    ("bq", 1, D_MODEL), ("bk", 1, D_MODEL), ("bv", 1, D_MODEL), ("bo", 1, D_MODEL),
    ("b1", 1, DIM_FF), ("b2", 1, D_MODEL),
    ("ln1w", 1, D_MODEL), ("ln1b", 1, D_MODEL), ("ln2w", 1, D_MODEL), ("ln2b", 1, D_MODEL),
]


def _build_layout():
    layout = {}
    row = 0

    def add(name, rows, cols):
        nonlocal row
        layout[name] = (row, rows, cols)
        row += -(-rows // 8) * 8              # 8-sublane aligned blocks

    add("w_proj", INPUT_TOKEN_DIM, D_MODEL)
    add("b_proj", 1, D_MODEL)
    add("cls", 1, D_MODEL)
    for li in range(NUM_LAYERS):
        for name, r, c in _LAYER_PARAM_SHAPES:
            add(f"l{li}_{name}", r, c)
    return layout, row


_LAYOUT, SLAB_ROWS = _build_layout()          # 648 rows
SLAB_COLS = 128


# ------------------------------------------------------------------------------
# in-kernel helpers
# ------------------------------------------------------------------------------
def _layer_norm(x, w, b):
    # PyTorch nn.LayerNorm: biased variance, eps=1e-5
    mu = jnp.mean(x, axis=-1, keepdims=True)
    xc = x - mu
    var = jnp.mean(xc * xc, axis=-1, keepdims=True)
    inv = lax.rsqrt(var + LN_EPS)
    return xc * inv * w + b


# erf via Abramowitz & Stegun 7.1.26 (|abs err| < 1.5e-7); only exp/mul/add/where.
_ERF_P = 0.3275911
_ERF_A1 = 0.254829592
_ERF_A2 = -0.284496736
_ERF_A3 = 1.421413741
_ERF_A4 = -1.453152027
_ERF_A5 = 1.061405429


def _erf(x):
    ax = jnp.abs(x)
    t = 1.0 / (1.0 + _ERF_P * ax)
    poly = t * (_ERF_A1 + t * (_ERF_A2 + t * (_ERF_A3 + t * (_ERF_A4 + t * _ERF_A5))))
    y = 1.0 - poly * jnp.exp(-ax * ax)
    return jnp.where(x >= 0.0, y, -y)


def _gelu(x):
    # exact-erf GELU (PyTorch F.gelu default)
    return 0.5 * x * (1.0 + _erf(x * (1.0 / math.sqrt(2.0))))


# ------------------------------------------------------------------------------
# single fused kernel: projection + CLS select + 2 encoder layers + CLS gather
# ------------------------------------------------------------------------------
def fused_forward_kernel(tok_ref, slab_ref, out_ref):
    def get(name):
        r, rows, cols = _LAYOUT[name]
        return slab_ref[r:r + rows, 0:cols]

    # 1) token linear projection over all BL rows (CLS rows are zero -> bias only,
    #    overwritten by the select below; the 2 extra rows are free MXU padding)
    proj = (jnp.dot(tok_ref[...], get("w_proj"), preferred_element_type=jnp.float32)
            + get("b_proj"))                                    # (BL, D)

    # 2) place the learned CLS token in rows 0 and L via a vreg-resident select
    row = lax.broadcasted_iota(jnp.int32, (BL, D_MODEL), 0)
    is_cls = row == 0
    for b in range(1, BATCH):
        is_cls = is_cls | (row == b * L)
    x = jnp.where(is_cls, get("cls"), proj)                     # (BL, D)

    # block-diagonal additive attention mask (2-D, broadcast implicitly per head)
    iq = lax.broadcasted_iota(jnp.int32, (BL, BL), 0)
    ik = lax.broadcasted_iota(jnp.int32, (BL, BL), 1)
    same = (iq < L) & (ik < L)
    for b in range(1, BATCH):
        lo, hi = b * L, (b + 1) * L
        same = same | ((iq >= lo) & (iq < hi) & (ik >= lo) & (ik < hi))
    neg = jnp.where(same, jnp.float32(0.0), jnp.float32(-1e30))  # (BL, BL)

    # per-head lane masks (1, D): zero every lane outside head h's 8 lanes
    lane = lax.broadcasted_iota(jnp.int32, (1, D_MODEL), 1)
    head_masks = [((lane >= h * HEAD_DIM) & (lane < (h + 1) * HEAD_DIM)).astype(jnp.float32)
                  for h in range(NHEAD)]

    scale = 1.0 / math.sqrt(HEAD_DIM)

    # 3) transformer encoder stack (statically unrolled, everything 2-D in vregs)
    for li in range(NUM_LAYERS):
        p = f"l{li}_"
        q = jnp.dot(x, get(p + "wq"), preferred_element_type=jnp.float32) + get(p + "bq")
        k = jnp.dot(x, get(p + "wk"), preferred_element_type=jnp.float32) + get(p + "bk")
        v = jnp.dot(x, get(p + "wv"), preferred_element_type=jnp.float32) + get(p + "bv")
        q = q * scale

        attn = jnp.zeros((BL, D_MODEL), jnp.float32)
        for h in range(NHEAD):
            qm = q * head_masks[h]                               # select head-h lanes
            # s[i,j] = sum_{d in head h} q[i,d] * k[j,d]  (contract last dims, no transpose)
            s = lax.dot_general(qm, k, (((1,), (1,)), ((), ())),
                                preferred_element_type=jnp.float32) + neg
            m = jnp.max(s, axis=-1, keepdims=True)
            e = jnp.exp(s - m)
            denom = jnp.sum(e, axis=-1, keepdims=True)
            o = jnp.dot(e, v * head_masks[h], preferred_element_type=jnp.float32)
            attn = attn + o * (1.0 / denom)                      # exact softmax normalization
        attn = jnp.dot(attn, get(p + "wo"), preferred_element_type=jnp.float32) + get(p + "bo")

        # residual + LayerNorm 1 (dropout = identity in eval)
        x = _layer_norm(x + attn, get(p + "ln1w"), get(p + "ln1b"))

        # feed-forward
        hidden = _gelu(jnp.dot(x, get(p + "w1"), preferred_element_type=jnp.float32)
                       + get(p + "b1"))
        ff = jnp.dot(hidden, get(p + "w2"), preferred_element_type=jnp.float32) + get(p + "b2")

        # residual + LayerNorm 2
        x = _layer_norm(x + ff, get(p + "ln2w"), get(p + "ln2b"))

    # 4) gather CLS rows with a one-hot selection matmul -> one dense (B, D) store
    rsel = lax.broadcasted_iota(jnp.int32, (BATCH, BL), 0)
    csel = lax.broadcasted_iota(jnp.int32, (BATCH, BL), 1)
    sel = (csel == rsel * L).astype(jnp.float32)
    out_ref[...] = jnp.dot(sel, x, preferred_element_type=jnp.float32)


# ------------------------------------------------------------------------------
# parameter construction (deterministic, synthetic) + packing into one slab
# ------------------------------------------------------------------------------
def init_params(key):
    def nrm(k, shape, scale=0.05):
        return (scale * jax.random.normal(k, shape)).astype(jnp.float32)

    keys = jax.random.split(key, 3 + NUM_LAYERS)
    params = {
        "w_proj": nrm(keys[0], (INPUT_TOKEN_DIM, D_MODEL)),
        "b_proj": nrm(keys[1], (1, D_MODEL)),
        "cls": nrm(keys[2], (1, D_MODEL), scale=1.0),
        "layers": [],
    }
    for li in range(NUM_LAYERS):
        lk = jax.random.split(keys[3 + li], 12)
        layer = {
            "wq": nrm(lk[0], (D_MODEL, D_MODEL)),
            "wk": nrm(lk[1], (D_MODEL, D_MODEL)),
            "wv": nrm(lk[2], (D_MODEL, D_MODEL)),
            "wo": nrm(lk[3], (D_MODEL, D_MODEL)),
            "bq": nrm(lk[4], (1, D_MODEL)),
            "bk": nrm(lk[5], (1, D_MODEL)),
            "bv": nrm(lk[6], (1, D_MODEL)),
            "bo": nrm(lk[7], (1, D_MODEL)),
            "w1": nrm(lk[8], (D_MODEL, DIM_FF)),
            "b1": nrm(lk[9], (1, DIM_FF)),
            "w2": nrm(lk[10], (DIM_FF, D_MODEL)),
            "b2": nrm(lk[11], (1, D_MODEL)),
            "ln1w": jnp.ones((1, D_MODEL), jnp.float32),
            "ln1b": jnp.zeros((1, D_MODEL), jnp.float32),
            "ln2w": jnp.ones((1, D_MODEL), jnp.float32),
            "ln2b": jnp.zeros((1, D_MODEL), jnp.float32),
        }
        params["layers"].append(layer)
    return params


def pack_params(params):
    """Pack every parameter into one (SLAB_ROWS, 128) f32 slab at static row offsets."""
    slab = jnp.zeros((SLAB_ROWS, SLAB_COLS), jnp.float32)

    def put(s, name, arr):
        r, rows, cols = _LAYOUT[name]
        return s.at[r:r + rows, 0:cols].set(jnp.asarray(arr, jnp.float32).reshape(rows, cols))

    slab = put(slab, "w_proj", params["w_proj"])
    slab = put(slab, "b_proj", params["b_proj"])
    slab = put(slab, "cls", params["cls"])
    for li, layer in enumerate(params["layers"]):
        for name, _, _ in _LAYER_PARAM_SHAPES:
            slab = put(slab, f"l{li}_{name}", layer[name])
    return slab


# ------------------------------------------------------------------------------
# full forward pass: one gridless pallas_call, 2 input DMAs, everything in VMEM
# ------------------------------------------------------------------------------
def task_embedding_transformer_forward(param_slab, task_tokens_batch):
    """task_tokens_batch: (B, T, state_dim + action_dim) -> (B, d_model)."""
    b_sz, t, in_dim = task_tokens_batch.shape
    assert (b_sz, t, in_dim) == (BATCH, SEQ, INPUT_TOKEN_DIM)

    # lay tokens out as (B*L, in_dim) with a zero row in each CLS slot
    tok = jnp.pad(task_tokens_batch.astype(jnp.float32), ((0, 0), (1, 0), (0, 0)))
    tok = tok.reshape(BATCH * L, in_dim)

    return pl.pallas_call(
        fused_forward_kernel,
        out_shape=jax.ShapeDtypeStruct((BATCH, D_MODEL), jnp.float32),
        in_specs=[pl.BlockSpec(memory_space=pltpu.MemorySpace.VMEM),
                  pl.BlockSpec(memory_space=pltpu.MemorySpace.VMEM)],
        out_specs=pl.BlockSpec(memory_space=pltpu.MemorySpace.VMEM),
    )(tok, param_slab)


# ------------------------------------------------------------------------------
if __name__ == "__main__":
    key = jax.random.PRNGKey(0)
    pkey, xkey = jax.random.split(key)

    params = init_params(pkey)
    param_slab = pack_params(params)          # pack ALL params once -> a single DMA per call

    task_tokens = jax.random.normal(
        xkey, (BATCH, SEQ, INPUT_TOKEN_DIM), dtype=jnp.float32
    )

    # TODO(synk): dropout (p=0.1) is treated as identity (eval-mode semantics).
    h_prime = task_embedding_transformer_forward(param_slab, task_tokens)
    h_prime = jax.block_until_ready(h_prime)

    assert h_prime.shape == (BATCH, D_MODEL)
    assert bool(jnp.all(jnp.isfinite(h_prime)))
    print("KERNEL_OK")
</pallas_src>

<mosaic_0001>
module attributes {stable_mosaic.version = 11 : i64} {
  func.func @fused_forward_kernel(%arg0: memref<18x23xf32, #tpu.memory_space<vmem>>, %arg1: memref<648x128xf32, #tpu.memory_space<vmem>>, %arg2: memref<2x32xf32, #tpu.memory_space<vmem>>) attributes {dimension_semantics = [], scalar_prefetch = 0 : i64, scratch_operands = 0 : i64, tpu.core_type = #tpu.core_type<tc>} {
    %c0 = arith.constant 0 : index
    %c0_0 = arith.constant 0 : index
    %0 = vector.load %arg0[%c0, %c0_0] : memref<18x23xf32, #tpu.memory_space<vmem>>, vector<18x23xf32>
    %c0_1 = arith.constant 0 : index
    %c0_2 = arith.constant 0 : index
    %1 = vector.load %arg1[%c0_1, %c0_2] : memref<648x128xf32, #tpu.memory_space<vmem>>, vector<23x32xf32>
    %cst = arith.constant dense<0.000000e+00> : vector<18x32xf32>
    %2 = tpu.matmul %0, %1, %cst {dimension_numbers = #tpu.dot_dimension_numbers<[1], [0], [0], [1], [0, 0, 1, 1], [], []>} : vector<18x23xf32>, vector<23x32xf32>, vector<18x32xf32> -> vector<18x32xf32>
    %c24 = arith.constant 24 : index
    %c0_3 = arith.constant 0 : index
    %3 = vector.load %arg1[%c24, %c0_3] : memref<648x128xf32, #tpu.memory_space<vmem>>, vector<1x32xf32>
    %4 = vector.broadcast %3 : vector<1x32xf32> to vector<18x32xf32>
    %5 = arith.addf %2, %4 : vector<18x32xf32>
    %6 = tpu.iota {dimensions = array<i32: 0>} : vector<18x32xi32>
    %c0_i32 = arith.constant 0 : i32
    %7 = vector.broadcast %c0_i32 : i32 to vector<18x32xi32>
    %8 = arith.cmpi eq, %6, %7 : vector<18x32xi32>
    %c9_i32 = arith.constant 9 : i32
    %9 = vector.broadcast %c9_i32 : i32 to vector<18x32xi32>
    %10 = arith.cmpi eq, %6, %9 : vector<18x32xi32>
    %11 = arith.ori %8, %10 : vector<18x32xi1>
    %c32 = arith.constant 32 : index
    %c0_4 = arith.constant 0 : index
    %12 = vector.load %arg1[%c32, %c0_4] : memref<648x128xf32, #tpu.memory_space<vmem>>, vector<1x32xf32>
    %13 = vector.shape_cast %12 : vector<1x32xf32> to vector<1x32xf32>
    %14 = vector.broadcast %13 : vector<1x32xf32> to vector<18x32xf32>
    %15 = arith.select %11, %14, %5 : vector<18x32xi1>, vector<18x32xf32>
    %16 = tpu.iota {dimensions = array<i32: 0>} : vector<18x18xi32>
    %17 = tpu.iota {dimensions = array<i32: 1>} : vector<18x18xi32>
    %c9_i32_5 = arith.constant 9 : i32
    %18 = vector.broadcast %c9_i32_5 : i32 to vector<18x18xi32>
    %19 = arith.cmpi slt, %16, %18 : vector<18x18xi32>
    %c9_i32_6 = arith.constant 9 : i32
    %20 = vector.broadcast %c9_i32_6 : i32 to vector<18x18xi32>
    %21 = arith.cmpi slt, %17, %20 : vector<18x18xi32>
    %22 = arith.andi %19, %21 : vector<18x18xi1>
    %c9_i32_7 = arith.constant 9 : i32
    %23 = vector.broadcast %c9_i32_7 : i32 to vector<18x18xi32>
    %24 = arith.cmpi sge, %16, %23 : vector<18x18xi32>
    %c18_i32 = arith.constant 18 : i32
    %25 = vector.broadcast %c18_i32 : i32 to vector<18x18xi32>
    %26 = arith.cmpi slt, %16, %25 : vector<18x18xi32>
    %27 = arith.andi %24, %26 : vector<18x18xi1>
    %c9_i32_8 = arith.constant 9 : i32
    %28 = vector.broadcast %c9_i32_8 : i32 to vector<18x18xi32>
    %29 = arith.cmpi sge, %17, %28 : vector<18x18xi32>
    %30 = arith.andi %27, %29 : vector<18x18xi1>
    %c18_i32_9 = arith.constant 18 : i32
    %31 = vector.broadcast %c18_i32_9 : i32 to vector<18x18xi32>
    %32 = arith.cmpi slt, %17, %31 : vector<18x18xi32>
    %33 = arith.andi %30, %32 : vector<18x18xi1>
    %34 = arith.ori %22, %33 : vector<18x18xi1>
    %cst_10 = arith.constant 0.000000e+00 : f32
    %cst_11 = arith.constant -1.000000e+30 : f32
    %35 = vector.broadcast %cst_10 : f32 to vector<18x18xf32>
    %36 = vector.broadcast %cst_11 : f32 to vector<18x18xf32>
    %37 = arith.select %34, %35, %36 : vector<18x18xi1>, vector<18x18xf32>
    %38 = tpu.iota {dimensions = array<i32: 1>} : vector<1x32xi32>
    %c0_i32_12 = arith.constant 0 : i32
    %39 = vector.broadcast %c0_i32_12 : i32 to vector<1x32xi32>
    %40 = arith.cmpi sge, %38, %39 : vector<1x32xi32>
    %c8_i32 = arith.constant 8 : i32
    %41 = vector.broadcast %c8_i32 : i32 to vector<1x32xi32>
    %42 = arith.cmpi slt, %38, %41 : vector<1x32xi32>
    %43 = arith.andi %40, %42 : vector<1x32xi1>
    %44 = arith.extui %43 : vector<1x32xi1> to vector<1x32xi32>
    %45 = arith.sitofp %44 : vector<1x32xi32> to vector<1x32xf32>
    %c8_i32_13 = arith.constant 8 : i32
    %46 = vector.broadcast %c8_i32_13 : i32 to vector<1x32xi32>
    %47 = arith.cmpi sge, %38, %46 : vector<1x32xi32>
    %c16_i32 = arith.constant 16 : i32
    %48 = vector.broadcast %c16_i32 : i32 to vector<1x32xi32>
    %49 = arith.cmpi slt, %38, %48 : vector<1x32xi32>
    %50 = arith.andi %47, %49 : vector<1x32xi1>
    %51 = arith.extui %50 : vector<1x32xi1> to vector<1x32xi32>
    %52 = arith.sitofp %51 : vector<1x32xi32> to vector<1x32xf32>
    %c16_i32_14 = arith.constant 16 : i32
    %53 = vector.broadcast %c16_i32_14 : i32 to vector<1x32xi32>
    %54 = arith.cmpi sge, %38, %53 : vector<1x32xi32>
    %c24_i32 = arith.constant 24 : i32
    %55 = vector.broadcast %c24_i32 : i32 to vector<1x32xi32>
    %56 = arith.cmpi slt, %38, %55 : vector<1x32xi32>
    %57 = arith.andi %54, %56 : vector<1x32xi1>
    %58 = arith.extui %57 : vector<1x32xi1> to vector<1x32xi32>
    %59 = arith.sitofp %58 : vector<1x32xi32> to vector<1x32xf32>
    %c24_i32_15 = arith.constant 24 : i32
    %60 = vector.broadcast %c24_i32_15 : i32 to vector<1x32xi32>
    %61 = arith.cmpi sge, %38, %60 : vector<1x32xi32>
    %c32_i32 = arith.constant 32 : i32
    %62 = vector.broadcast %c32_i32 : i32 to vector<1x32xi32>
    %63 = arith.cmpi slt, %38, %62 : vector<1x32xi32>
    %64 = arith.andi %61, %63 : vector<1x32xi1>
    %65 = arith.extui %64 : vector<1x32xi1> to vector<1x32xi32>
    %66 = arith.sitofp %65 : vector<1x32xi32> to vector<1x32xf32>
    %c40 = arith.constant 40 : index
    %c0_16 = arith.constant 0 : index
    %67 = vector.load %arg1[%c40, %c0_16] : memref<648x128xf32, #tpu.memory_space<vmem>>, vector<32x32xf32>
    %cst_17 = arith.constant dense<0.000000e+00> : vector<18x32xf32>
    %68 = tpu.matmul %15, %67, %cst_17 {dimension_numbers = #tpu.dot_dimension_numbers<[1], [0], [0], [1], [0, 0, 1, 1], [], []>} : vector<18x32xf32>, vector<32x32xf32>, vector<18x32xf32> -> vector<18x32xf32>
    %c264 = arith.constant 264 : index
    %c0_18 = arith.constant 0 : index
    %69 = vector.load %arg1[%c264, %c0_18] : memref<648x128xf32, #tpu.memory_space<vmem>>, vector<1x32xf32>
    %70 = vector.broadcast %69 : vector<1x32xf32> to vector<18x32xf32>
    %71 = arith.addf %68, %70 : vector<18x32xf32>
    %c72 = arith.constant 72 : index
    %c0_19 = arith.constant 0 : index
    %72 = vector.load %arg1[%c72, %c0_19] : memref<648x128xf32, #tpu.memory_space<vmem>>, vector<32x32xf32>
    %cst_20 = arith.constant dense<0.000000e+00> : vector<18x32xf32>
    %73 = tpu.matmul %15, %72, %cst_20 {dimension_numbers = #tpu.dot_dimension_numbers<[1], [0], [0], [1], [0, 0, 1, 1], [], []>} : vector<18x32xf32>, vector<32x32xf32>, vector<18x32xf32> -> vector<18x32xf32>
    %c272 = arith.constant 272 : index
    %c0_21 = arith.constant 0 : index
    %74 = vector.load %arg1[%c272, %c0_21] : memref<648x128xf32, #tpu.memory_space<vmem>>, vector<1x32xf32>
    %75 = vector.broadcast %74 : vector<1x32xf32> to vector<18x32xf32>
    %76 = arith.addf %73, %75 : vector<18x32xf32>
    %c104 = arith.constant 104 : index
    %c0_22 = arith.constant 0 : index
    %77 = vector.load %arg1[%c104, %c0_22] : memref<648x128xf32, #tpu.memory_space<vmem>>, vector<32x32xf32>
    %cst_23 = arith.constant dense<0.000000e+00> : vector<18x32xf32>
    %78 = tpu.matmul %15, %77, %cst_23 {dimension_numbers = #tpu.dot_dimension_numbers<[1], [0], [0], [1], [0, 0, 1, 1], [], []>} : vector<18x32xf32>, vector<32x32xf32>, vector<18x32xf32> -> vector<18x32xf32>
    %c280 = arith.constant 280 : index
    %c0_24 = arith.constant 0 : index
    %79 = vector.load %arg1[%c280, %c0_24] : memref<648x128xf32, #tpu.memory_space<vmem>>, vector<1x32xf32>
    %80 = vector.broadcast %79 : vector<1x32xf32> to vector<18x32xf32>
    %81 = arith.addf %78, %80 : vector<18x32xf32>
    %cst_25 = arith.constant 0.353553385 : f32
    %82 = vector.broadcast %cst_25 : f32 to vector<18x32xf32>
    %83 = arith.mulf %71, %82 : vector<18x32xf32>
    %cst_26 = arith.constant 0.000000e+00 : f32
    %84 = vector.broadcast %cst_26 : f32 to vector<18x32xf32>
    %85 = vector.broadcast %45 : vector<1x32xf32> to vector<18x32xf32>
    %86 = arith.mulf %83, %85 : vector<18x32xf32>
    %cst_27 = arith.constant dense<0.000000e+00> : vector<18x18xf32>
    %87 = tpu.matmul %86, %76, %cst_27 {dimension_numbers = #tpu.dot_dimension_numbers<[1], [1], [0], [0], [0, 0, 1, 0], [], []>} : vector<18x32xf32>, vector<18x32xf32>, vector<18x18xf32> -> vector<18x18xf32>
    %88 = arith.addf %87, %37 : vector<18x18xf32>
    %cst_28 = arith.constant dense<0xFF800000> : vector<18xf32>
    %89 = vector.multi_reduction <maximumf>, %88, %cst_28 [1] : vector<18x18xf32> to vector<18xf32>
    %90 = vector.shape_cast %89 : vector<18xf32> to vector<18x1xf32>
    %91 = vector.broadcast %90 : vector<18x1xf32> to vector<18x18xf32>
    %92 = arith.subf %88, %91 : vector<18x18xf32>
    %93 = math.exp %92 : vector<18x18xf32>
    %cst_29 = arith.constant dense<0.000000e+00> : vector<18xf32>
    %94 = vector.multi_reduction <add>, %93, %cst_29 [1] : vector<18x18xf32> to vector<18xf32>
    %95 = vector.shape_cast %94 : vector<18xf32> to vector<18x1xf32>
    %96 = vector.broadcast %45 : vector<1x32xf32> to vector<18x32xf32>
    %97 = arith.mulf %81, %96 : vector<18x32xf32>
    %cst_30 = arith.constant dense<0.000000e+00> : vector<18x32xf32>
    %98 = tpu.matmul %93, %97, %cst_30 {dimension_numbers = #tpu.dot_dimension_numbers<[1], [0], [0], [1], [0, 0, 1, 1], [], []>} : vector<18x18xf32>, vector<18x32xf32>, vector<18x32xf32> -> vector<18x32xf32>
    %cst_31 = arith.constant 1.000000e+00 : f32
    %99 = vector.broadcast %cst_31 : f32 to vector<18x1xf32>
    %100 = arith.divf %99, %95 : vector<18x1xf32>
    %101 = vector.broadcast %100 : vector<18x1xf32> to vector<18x32xf32>
    %102 = arith.mulf %98, %101 : vector<18x32xf32>
    %103 = arith.addf %84, %102 : vector<18x32xf32>
    %104 = vector.broadcast %52 : vector<1x32xf32> to vector<18x32xf32>
    %105 = arith.mulf %83, %104 : vector<18x32xf32>
    %cst_32 = arith.constant dense<0.000000e+00> : vector<18x18xf32>
    %106 = tpu.matmul %105, %76, %cst_32 {dimension_numbers = #tpu.dot_dimension_numbers<[1], [1], [0], [0], [0, 0, 1, 0], [], []>} : vector<18x32xf32>, vector<18x32xf32>, vector<18x18xf32> -> vector<18x18xf32>
    %107 = arith.addf %106, %37 : vector<18x18xf32>
    %cst_33 = arith.constant dense<0xFF800000> : vector<18xf32>
    %108 = vector.multi_reduction <maximumf>, %107, %cst_33 [1] : vector<18x18xf32> to vector<18xf32>
    %109 = vector.shape_cast %108 : vector<18xf32> to vector<18x1xf32>
    %110 = vector.broadcast %109 : vector<18x1xf32> to vector<18x18xf32>
    %111 = arith.subf %107, %110 : vector<18x18xf32>
    %112 = math.exp %111 : vector<18x18xf32>
    %cst_34 = arith.constant dense<0.000000e+00> : vector<18xf32>
    %113 = vector.multi_reduction <add>, %112, %cst_34 [1] : vector<18x18xf32> to vector<18xf32>
    %114 = vector.shape_cast %113 : vector<18xf32> to vector<18x1xf32>
    %115 = vector.broadcast %52 : vector<1x32xf32> to vector<18x32xf32>
    %116 = arith.mulf %81, %115 : vector<18x32xf32>
    %cst_35 = arith.constant dense<0.000000e+00> : vector<18x32xf32>
    %117 = tpu.matmul %112, %116, %cst_35 {dimension_numbers = #tpu.dot_dimension_numbers<[1], [0], [0], [1], [0, 0, 1, 1], [], []>} : vector<18x18xf32>, vector<18x32xf32>, vector<18x32xf32> -> vector<18x32xf32>
    %cst_36 = arith.constant 1.000000e+00 : f32
    %118 = vector.broadcast %cst_36 : f32 to vector<18x1xf32>
    %119 = arith.divf %118, %114 : vector<18x1xf32>
    %120 = vector.broadcast %119 : vector<18x1xf32> to vector<18x32xf32>
    %121 = arith.mulf %117, %120 : vector<18x32xf32>
    %122 = arith.addf %103, %121 : vector<18x32xf32>
    %123 = vector.broadcast %59 : vector<1x32xf32> to vector<18x32xf32>
    %124 = arith.mulf %83, %123 : vector<18x32xf32>
    %cst_37 = arith.constant dense<0.000000e+00> : vector<18x18xf32>
    %125 = tpu.matmul %124, %76, %cst_37 {dimension_numbers = #tpu.dot_dimension_numbers<[1], [1], [0], [0], [0, 0, 1, 0], [], []>} : vector<18x32xf32>, vector<18x32xf32>, vector<18x18xf32> -> vector<18x18xf32>
    %126 = arith.addf %125, %37 : vector<18x18xf32>
    %cst_38 = arith.constant dense<0xFF800000> : vector<18xf32>
    %127 = vector.multi_reduction <maximumf>, %126, %cst_38 [1] : vector<18x18xf32> to vector<18xf32>
    %128 = vector.shape_cast %127 : vector<18xf32> to vector<18x1xf32>
    %129 = vector.broadcast %128 : vector<18x1xf32> to vector<18x18xf32>
    %130 = arith.subf %126, %129 : vector<18x18xf32>
    %131 = math.exp %130 : vector<18x18xf32>
    %cst_39 = arith.constant dense<0.000000e+00> : vector<18xf32>
    %132 = vector.multi_reduction <add>, %131, %cst_39 [1] : vector<18x18xf32> to vector<18xf32>
    %133 = vector.shape_cast %132 : vector<18xf32> to vector<18x1xf32>
    %134 = vector.broadcast %59 : vector<1x32xf32> to vector<18x32xf32>
    %135 = arith.mulf %81, %134 : vector<18x32xf32>
    %cst_40 = arith.constant dense<0.000000e+00> : vector<18x32xf32>
    %136 = tpu.matmul %131, %135, %cst_40 {dimension_numbers = #tpu.dot_dimension_numbers<[1], [0], [0], [1], [0, 0, 1, 1], [], []>} : vector<18x18xf32>, vector<18x32xf32>, vector<18x32xf32> -> vector<18x32xf32>
    %cst_41 = arith.constant 1.000000e+00 : f32
    %137 = vector.broadcast %cst_41 : f32 to vector<18x1xf32>
    %138 = arith.divf %137, %133 : vector<18x1xf32>
    %139 = vector.broadcast %138 : vector<18x1xf32> to vector<18x32xf32>
    %140 = arith.mulf %136, %139 : vector<18x32xf32>
    %141 = arith.addf %122, %140 : vector<18x32xf32>
    %142 = vector.broadcast %66 : vector<1x32xf32> to vector<18x32xf32>
    %143 = arith.mulf %83, %142 : vector<18x32xf32>
    %cst_42 = arith.constant dense<0.000000e+00> : vector<18x18xf32>
    %144 = tpu.matmul %143, %76, %cst_42 {dimension_numbers = #tpu.dot_dimension_numbers<[1], [1], [0], [0], [0, 0, 1, 0], [], []>} : vector<18x32xf32>, vector<18x32xf32>, vector<18x18xf32> -> vector<18x18xf32>
    %145 = arith.addf %144, %37 : vector<18x18xf32>
    %cst_43 = arith.constant dense<0xFF800000> : vector<18xf32>
    %146 = vector.multi_reduction <maximumf>, %145, %cst_43 [1] : vector<18x18xf32> to vector<18xf32>
    %147 = vector.shape_cast %146 : vector<18xf32> to vector<18x1xf32>
    %148 = vector.broadcast %147 : vector<18x1xf32> to vector<18x18xf32>
    %149 = arith.subf %145, %148 : vector<18x18xf32>
    %150 = math.exp %149 : vector<18x18xf32>
    %cst_44 = arith.constant dense<0.000000e+00> : vector<18xf32>
    %151 = vector.multi_reduction <add>, %150, %cst_44 [1] : vector<18x18xf32> to vector<18xf32>
    %152 = vector.shape_cast %151 : vector<18xf32> to vector<18x1xf32>
    %153 = vector.broadcast %66 : vector<1x32xf32> to vector<18x32xf32>
    %154 = arith.mulf %81, %153 : vector<18x32xf32>
    %cst_45 = arith.constant dense<0.000000e+00> : vector<18x32xf32>
    %155 = tpu.matmul %150, %154, %cst_45 {dimension_numbers = #tpu.dot_dimension_numbers<[1], [0], [0], [1], [0, 0, 1, 1], [], []>} : vector<18x18xf32>, vector<18x32xf32>, vector<18x32xf32> -> vector<18x32xf32>
    %cst_46 = arith.constant 1.000000e+00 : f32
    %156 = vector.broadcast %cst_46 : f32 to vector<18x1xf32>
    %157 = arith.divf %156, %152 : vector<18x1xf32>
    %158 = vector.broadcast %157 : vector<18x1xf32> to vector<18x32xf32>
    %159 = arith.mulf %155, %158 : vector<18x32xf32>
    %160 = arith.addf %141, %159 : vector<18x32xf32>
    %c136 = arith.constant 136 : index
    %c0_47 = arith.constant 0 : index
    %161 = vector.load %arg1[%c136, %c0_47] : memref<648x128xf32, #tpu.memory_space<vmem>>, vector<32x32xf32>
    %cst_48 = arith.constant dense<0.000000e+00> : vector<18x32xf32>
    %162 = tpu.matmul %160, %161, %cst_48 {dimension_numbers = #tpu.dot_dimension_numbers<[1], [0], [0], [1], [0, 0, 1, 1], [], []>} : vector<18x32xf32>, vector<32x32xf32>, vector<18x32xf32> -> vector<18x32xf32>
    %c288 = arith.constant 288 : index
    %c0_49 = arith.constant 0 : index
    %163 = vector.load %arg1[%c288, %c0_49] : memref<648x128xf32, #tpu.memory_space<vmem>>, vector<1x32xf32>
    %164 = vector.broadcast %163 : vector<1x32xf32> to vector<18x32xf32>
    %165 = arith.addf %162, %164 : vector<18x32xf32>
    %166 = arith.addf %15, %165 : vector<18x32xf32>
    %c312 = arith.constant 312 : index
    %c0_50 = arith.constant 0 : index
    %167 = vector.load %arg1[%c312, %c0_50] : memref<648x128xf32, #tpu.memory_space<vmem>>, vector<1x32xf32>
    %c320 = arith.constant 320 : index
    %c0_51 = arith.constant 0 : index
    %168 = vector.load %arg1[%c320, %c0_51] : memref<648x128xf32, #tpu.memory_space<vmem>>, vector<1x32xf32>
    %cst_52 = arith.constant dense<0.000000e+00> : vector<18xf32>
    %169 = vector.multi_reduction <add>, %166, %cst_52 [1] : vector<18x32xf32> to vector<18xf32>
    %170 = vector.shape_cast %169 : vector<18xf32> to vector<18x1xf32>
    %cst_53 = arith.constant 3.200000e+01 : f32
    %171 = vector.broadcast %cst_53 : f32 to vector<18x1xf32>
    %172 = arith.divf %170, %171 : vector<18x1xf32>
    %173 = vector.broadcast %172 : vector<18x1xf32> to vector<18x32xf32>
    %174 = arith.subf %166, %173 : vector<18x32xf32>
    %175 = arith.mulf %174, %174 : vector<18x32xf32>
    %cst_54 = arith.constant dense<0.000000e+00> : vector<18xf32>
    %176 = vector.multi_reduction <add>, %175, %cst_54 [1] : vector<18x32xf32> to vector<18xf32>
    %177 = vector.shape_cast %176 : vector<18xf32> to vector<18x1xf32>
    %cst_55 = arith.constant 3.200000e+01 : f32
    %178 = vector.broadcast %cst_55 : f32 to vector<18x1xf32>
    %179 = arith.divf %177, %178 : vector<18x1xf32>
    %cst_56 = arith.constant 9.99999974E-6 : f32
    %180 = vector.broadcast %cst_56 : f32 to vector<18x1xf32>
    %181 = arith.addf %179, %180 : vector<18x1xf32>
    %182 = math.rsqrt %181 : vector<18x1xf32>
    %183 = vector.broadcast %182 : vector<18x1xf32> to vector<18x32xf32>
    %184 = arith.mulf %174, %183 : vector<18x32xf32>
    %185 = vector.broadcast %167 : vector<1x32xf32> to vector<18x32xf32>
    %186 = arith.mulf %184, %185 : vector<18x32xf32>
    %187 = vector.broadcast %168 : vector<1x32xf32> to vector<18x32xf32>
    %188 = arith.addf %186, %187 : vector<18x32xf32>
    %c168 = arith.constant 168 : index
    %c0_57 = arith.constant 0 : index
    %189 = vector.load %arg1[%c168, %c0_57] : memref<648x128xf32, #tpu.memory_space<vmem>>, vector<32x64xf32>
    %cst_58 = arith.constant dense<0.000000e+00> : vector<18x64xf32>
    %190 = tpu.matmul %188, %189, %cst_58 {dimension_numbers = #tpu.dot_dimension_numbers<[1], [0], [0], [1], [0, 0, 1, 1], [], []>} : vector<18x32xf32>, vector<32x64xf32>, vector<18x64xf32> -> vector<18x64xf32>
    %c296 = arith.constant 296 : index
    %c0_59 = arith.constant 0 : index
    %191 = vector.load %arg1[%c296, %c0_59] : memref<648x128xf32, #tpu.memory_space<vmem>>, vector<1x64xf32>
    %192 = vector.broadcast %191 : vector<1x64xf32> to vector<18x64xf32>
    %193 = arith.addf %190, %192 : vector<18x64xf32>
    %cst_60 = arith.constant 5.000000e-01 : f32
    %194 = vector.broadcast %cst_60 : f32 to vector<18x64xf32>
    %195 = arith.mulf %194, %193 : vector<18x64xf32>
    %cst_61 = arith.constant 0.707106769 : f32
    %196 = vector.broadcast %cst_61 : f32 to vector<18x64xf32>
    %197 = arith.mulf %193, %196 : vector<18x64xf32>
    %198 = math.absf %197 : vector<18x64xf32>
    %cst_62 = arith.constant 0.327591091 : f32
    %199 = vector.broadcast %cst_62 : f32 to vector<18x64xf32>
    %200 = arith.mulf %199, %198 : vector<18x64xf32>
    %cst_63 = arith.constant 1.000000e+00 : f32
    %201 = vector.broadcast %cst_63 : f32 to vector<18x64xf32>
    %202 = arith.addf %201, %200 : vector<18x64xf32>
    %cst_64 = arith.constant 1.000000e+00 : f32
    %203 = vector.broadcast %cst_64 : f32 to vector<18x64xf32>
    %204 = arith.divf %203, %202 : vector<18x64xf32>
    %cst_65 = arith.constant 1.06140542 : f32
    %205 = vector.broadcast %cst_65 : f32 to vector<18x64xf32>
    %206 = arith.mulf %204, %205 : vector<18x64xf32>
    %cst_66 = arith.constant -1.45315206 : f32
    %207 = vector.broadcast %cst_66 : f32 to vector<18x64xf32>
    %208 = arith.addf %207, %206 : vector<18x64xf32>
    %209 = arith.mulf %204, %208 : vector<18x64xf32>
    %cst_67 = arith.constant 1.42141378 : f32
    %210 = vector.broadcast %cst_67 : f32 to vector<18x64xf32>
    %211 = arith.addf %210, %209 : vector<18x64xf32>
    %212 = arith.mulf %204, %211 : vector<18x64xf32>
    %cst_68 = arith.constant -0.284496725 : f32
    %213 = vector.broadcast %cst_68 : f32 to vector<18x64xf32>
    %214 = arith.addf %213, %212 : vector<18x64xf32>
    %215 = arith.mulf %204, %214 : vector<18x64xf32>
    %cst_69 = arith.constant 0.254829586 : f32
    %216 = vector.broadcast %cst_69 : f32 to vector<18x64xf32>
    %217 = arith.addf %216, %215 : vector<18x64xf32>
    %218 = arith.mulf %204, %217 : vector<18x64xf32>
    %cst_70 = arith.constant 0.000000e+00 : f32
    %219 = vector.broadcast %cst_70 : f32 to vector<18x64xf32>
    %220 = arith.subf %219, %198 : vector<18x64xf32>
    %221 = arith.mulf %220, %198 : vector<18x64xf32>
    %222 = math.exp %221 : vector<18x64xf32>
    %223 = arith.mulf %218, %222 : vector<18x64xf32>
    %cst_71 = arith.constant 1.000000e+00 : f32
    %224 = vector.broadcast %cst_71 : f32 to vector<18x64xf32>
    %225 = arith.subf %224, %223 : vector<18x64xf32>
    %cst_72 = arith.constant 0.000000e+00 : f32
    %226 = vector.broadcast %cst_72 : f32 to vector<18x64xf32>
    %227 = arith.cmpf oge, %197, %226 : vector<18x64xf32>
    %cst_73 = arith.constant 0.000000e+00 : f32
    %228 = vector.broadcast %cst_73 : f32 to vector<18x64xf32>
    %229 = arith.subf %228, %225 : vector<18x64xf32>
    %230 = arith.select %227, %225, %229 : vector<18x64xi1>, vector<18x64xf32>
    %cst_74 = arith.constant 1.000000e+00 : f32
    %231 = vector.broadcast %cst_74 : f32 to vector<18x64xf32>
    %232 = arith.addf %231, %230 : vector<18x64xf32>
    %233 = arith.mulf %195, %232 : vector<18x64xf32>
    %c200 = arith.constant 200 : index
    %c0_75 = arith.constant 0 : index
    %234 = vector.load %arg1[%c200, %c0_75] : memref<648x128xf32, #tpu.memory_space<vmem>>, vector<64x32xf32>
    %cst_76 = arith.constant dense<0.000000e+00> : vector<18x32xf32>
    %235 = tpu.matmul %233, %234, %cst_76 {dimension_numbers = #tpu.dot_dimension_numbers<[1], [0], [0], [1], [0, 0, 1, 1], [], []>} : vector<18x64xf32>, vector<64x32xf32>, vector<18x32xf32> -> vector<18x32xf32>
    %c304 = arith.constant 304 : index
    %c0_77 = arith.constant 0 : index
    %236 = vector.load %arg1[%c304, %c0_77] : memref<648x128xf32, #tpu.memory_space<vmem>>, vector<1x32xf32>
    %237 = vector.broadcast %236 : vector<1x32xf32> to vector<18x32xf32>
    %238 = arith.addf %235, %237 : vector<18x32xf32>
    %239 = arith.addf %188, %238 : vector<18x32xf32>
    %c328 = arith.constant 328 : index
    %c0_78 = arith.constant 0 : index
    %240 = vector.load %arg1[%c328, %c0_78] : memref<648x128xf32, #tpu.memory_space<vmem>>, vector<1x32xf32>
    %c336 = arith.constant 336 : index
    %c0_79 = arith.constant 0 : index
    %241 = vector.load %arg1[%c336, %c0_79] : memref<648x128xf32, #tpu.memory_space<vmem>>, vector<1x32xf32>
    %cst_80 = arith.constant dense<0.000000e+00> : vector<18xf32>
    %242 = vector.multi_reduction <add>, %239, %cst_80 [1] : vector<18x32xf32> to vector<18xf32>
    %243 = vector.shape_cast %242 : vector<18xf32> to vector<18x1xf32>
    %cst_81 = arith.constant 3.200000e+01 : f32
    %244 = vector.broadcast %cst_81 : f32 to vector<18x1xf32>
    %245 = arith.divf %243, %244 : vector<18x1xf32>
    %246 = vector.broadcast %245 : vector<18x1xf32> to vector<18x32xf32>
    %247 = arith.subf %239, %246 : vector<18x32xf32>
    %248 = arith.mulf %247, %247 : vector<18x32xf32>
    %cst_82 = arith.constant dense<0.000000e+00> : vector<18xf32>
    %249 = vector.multi_reduction <add>, %248, %cst_82 [1] : vector<18x32xf32> to vector<18xf32>
    %250 = vector.shape_cast %249 : vector<18xf32> to vector<18x1xf32>
    %cst_83 = arith.constant 3.200000e+01 : f32
    %251 = vector.broadcast %cst_83 : f32 to vector<18x1xf32>
    %252 = arith.divf %250, %251 : vector<18x1xf32>
    %cst_84 = arith.constant 9.99999974E-6 : f32
    %253 = vector.broadcast %cst_84 : f32 to vector<18x1xf32>
    %254 = arith.addf %252, %253 : vector<18x1xf32>
    %255 = math.rsqrt %254 : vector<18x1xf32>
    %256 = vector.broadcast %255 : vector<18x1xf32> to vector<18x32xf32>
    %257 = arith.mulf %247, %256 : vector<18x32xf32>
    %258 = vector.broadcast %240 : vector<1x32xf32> to vector<18x32xf32>
    %259 = arith.mulf %257, %258 : vector<18x32xf32>
    %260 = vector.broadcast %241 : vector<1x32xf32> to vector<18x32xf32>
    %261 = arith.addf %259, %260 : vector<18x32xf32>
    %c344 = arith.constant 344 : index
    %c0_85 = arith.constant 0 : index
    %262 = vector.load %arg1[%c344, %c0_85] : memref<648x128xf32, #tpu.memory_space<vmem>>, vector<32x32xf32>
    %cst_86 = arith.constant dense<0.000000e+00> : vector<18x32xf32>
    %263 = tpu.matmul %261, %262, %cst_86 {dimension_numbers = #tpu.dot_dimension_numbers<[1], [0], [0], [1], [0, 0, 1, 1], [], []>} : vector<18x32xf32>, vector<32x32xf32>, vector<18x32xf32> -> vector<18x32xf32>
    %c568 = arith.constant 568 : index
    %c0_87 = arith.constant 0 : index
    %264 = vector.load %arg1[%c568, %c0_87] : memref<648x128xf32, #tpu.memory_space<vmem>>, vector<1x32xf32>
    %265 = vector.broadcast %264 : vector<1x32xf32> to vector<18x32xf32>
    %266 = arith.addf %263, %265 : vector<18x32xf32>
    %c376 = arith.constant 376 : index
    %c0_88 = arith.constant 0 : index
    %267 = vector.load %arg1[%c376, %c0_88] : memref<648x128xf32, #tpu.memory_space<vmem>>, vector<32x32xf32>
    %cst_89 = arith.constant dense<0.000000e+00> : vector<18x32xf32>
    %268 = tpu.matmul %261, %267, %cst_89 {dimension_numbers = #tpu.dot_dimension_numbers<[1], [0], [0], [1], [0, 0, 1, 1], [], []>} : vector<18x32xf32>, vector<32x32xf32>, vector<18x32xf32> -> vector<18x32xf32>
    %c576 = arith.constant 576 : index
    %c0_90 = arith.constant 0 : index
    %269 = vector.load %arg1[%c576, %c0_90] : memref<648x128xf32, #tpu.memory_space<vmem>>, vector<1x32xf32>
    %270 = vector.broadcast %269 : vector<1x32xf32> to vector<18x32xf32>
    %271 = arith.addf %268, %270 : vector<18x32xf32>
    %c408 = arith.constant 408 : index
    %c0_91 = arith.constant 0 : index
    %272 = vector.load %arg1[%c408, %c0_91] : memref<648x128xf32, #tpu.memory_space<vmem>>, vector<32x32xf32>
    %cst_92 = arith.constant dense<0.000000e+00> : vector<18x32xf32>
    %273 = tpu.matmul %261, %272, %cst_92 {dimension_numbers = #tpu.dot_dimension_numbers<[1], [0], [0], [1], [0, 0, 1, 1], [], []>} : vector<18x32xf32>, vector<32x32xf32>, vector<18x32xf32> -> vector<18x32xf32>
    %c584 = arith.constant 584 : index
    %c0_93 = arith.constant 0 : index
    %274 = vector.load %arg1[%c584, %c0_93] : memref<648x128xf32, #tpu.memory_space<vmem>>, vector<1x32xf32>
    %275 = vector.broadcast %274 : vector<1x32xf32> to vector<18x32xf32>
    %276 = arith.addf %273, %275 : vector<18x32xf32>
    %cst_94 = arith.constant 0.353553385 : f32
    %277 = vector.broadcast %cst_94 : f32 to vector<18x32xf32>
    %278 = arith.mulf %266, %277 : vector<18x32xf32>
    %cst_95 = arith.constant 0.000000e+00 : f32
    %279 = vector.broadcast %cst_95 : f32 to vector<18x32xf32>
    %280 = vector.broadcast %45 : vector<1x32xf32> to vector<18x32xf32>
    %281 = arith.mulf %278, %280 : vector<18x32xf32>
    %cst_96 = arith.constant dense<0.000000e+00> : vector<18x18xf32>
    %282 = tpu.matmul %281, %271, %cst_96 {dimension_numbers = #tpu.dot_dimension_numbers<[1], [1], [0], [0], [0, 0, 1, 0], [], []>} : vector<18x32xf32>, vector<18x32xf32>, vector<18x18xf32> -> vector<18x18xf32>
    %283 = arith.addf %282, %37 : vector<18x18xf32>
    %cst_97 = arith.constant dense<0xFF800000> : vector<18xf32>
    %284 = vector.multi_reduction <maximumf>, %283, %cst_97 [1] : vector<18x18xf32> to vector<18xf32>
    %285 = vector.shape_cast %284 : vector<18xf32> to vector<18x1xf32>
    %286 = vector.broadcast %285 : vector<18x1xf32> to vector<18x18xf32>
    %287 = arith.subf %283, %286 : vector<18x18xf32>
    %288 = math.exp %287 : vector<18x18xf32>
    %cst_98 = arith.constant dense<0.000000e+00> : vector<18xf32>
    %289 = vector.multi_reduction <add>, %288, %cst_98 [1] : vector<18x18xf32> to vector<18xf32>
    %290 = vector.shape_cast %289 : vector<18xf32> to vector<18x1xf32>
    %291 = vector.broadcast %45 : vector<1x32xf32> to vector<18x32xf32>
    %292 = arith.mulf %276, %291 : vector<18x32xf32>
    %cst_99 = arith.constant dense<0.000000e+00> : vector<18x32xf32>
    %293 = tpu.matmul %288, %292, %cst_99 {dimension_numbers = #tpu.dot_dimension_numbers<[1], [0], [0], [1], [0, 0, 1, 1], [], []>} : vector<18x18xf32>, vector<18x32xf32>, vector<18x32xf32> -> vector<18x32xf32>
    %cst_100 = arith.constant 1.000000e+00 : f32
    %294 = vector.broadcast %cst_100 : f32 to vector<18x1xf32>
    %295 = arith.divf %294, %290 : vector<18x1xf32>
    %296 = vector.broadcast %295 : vector<18x1xf32> to vector<18x32xf32>
    %297 = arith.mulf %293, %296 : vector<18x32xf32>
    %298 = arith.addf %279, %297 : vector<18x32xf32>
    %299 = vector.broadcast %52 : vector<1x32xf32> to vector<18x32xf32>
    %300 = arith.mulf %278, %299 : vector<18x32xf32>
    %cst_101 = arith.constant dense<0.000000e+00> : vector<18x18xf32>
    %301 = tpu.matmul %300, %271, %cst_101 {dimension_numbers = #tpu.dot_dimension_numbers<[1], [1], [0], [0], [0, 0, 1, 0], [], []>} : vector<18x32xf32>, vector<18x32xf32>, vector<18x18xf32> -> vector<18x18xf32>
    %302 = arith.addf %301, %37 : vector<18x18xf32>
    %cst_102 = arith.constant dense<0xFF800000> : vector<18xf32>
    %303 = vector.multi_reduction <maximumf>, %302, %cst_102 [1] : vector<18x18xf32> to vector<18xf32>
    %304 = vector.shape_cast %303 : vector<18xf32> to vector<18x1xf32>
    %305 = vector.broadcast %304 : vector<18x1xf32> to vector<18x18xf32>
    %306 = arith.subf %302, %305 : vector<18x18xf32>
    %307 = math.exp %306 : vector<18x18xf32>
    %cst_103 = arith.constant dense<0.000000e+00> : vector<18xf32>
    %308 = vector.multi_reduction <add>, %307, %cst_103 [1] : vector<18x18xf32> to vector<18xf32>
    %309 = vector.shape_cast %308 : vector<18xf32> to vector<18x1xf32>
    %310 = vector.broadcast %52 : vector<1x32xf32> to vector<18x32xf32>
    %311 = arith.mulf %276, %310 : vector<18x32xf32>
    %cst_104 = arith.constant dense<0.000000e+00> : vector<18x32xf32>
    %312 = tpu.matmul %307, %311, %cst_104 {dimension_numbers = #tpu.dot_dimension_numbers<[1], [0], [0], [1], [0, 0, 1, 1], [], []>} : vector<18x18xf32>, vector<18x32xf32>, vector<18x32xf32> -> vector<18x32xf32>
    %cst_105 = arith.constant 1.000000e+00 : f32
    %313 = vector.broadcast %cst_105 : f32 to vector<18x1xf32>
    %314 = arith.divf %313, %309 : vector<18x1xf32>
    %315 = vector.broadcast %314 : vector<18x1xf32> to vector<18x32xf32>
    %316 = arith.mulf %312, %315 : vector<18x32xf32>
    %317 = arith.addf %298, %316 : vector<18x32xf32>
    %318 = vector.broadcast %59 : vector<1x32xf32> to vector<18x32xf32>
    %319 = arith.mulf %278, %318 : vector<18x32xf32>
    %cst_106 = arith.constant dense<0.000000e+00> : vector<18x18xf32>
    %320 = tpu.matmul %319, %271, %cst_106 {dimension_numbers = #tpu.dot_dimension_numbers<[1], [1], [0], [0], [0, 0, 1, 0], [], []>} : vector<18x32xf32>, vector<18x32xf32>, vector<18x18xf32> -> vector<18x18xf32>
    %321 = arith.addf %320, %37 : vector<18x18xf32>
    %cst_107 = arith.constant dense<0xFF800000> : vector<18xf32>
    %322 = vector.multi_reduction <maximumf>, %321, %cst_107 [1] : vector<18x18xf32> to vector<18xf32>
    %323 = vector.shape_cast %322 : vector<18xf32> to vector<18x1xf32>
    %324 = vector.broadcast %323 : vector<18x1xf32> to vector<18x18xf32>
    %325 = arith.subf %321, %324 : vector<18x18xf32>
    %326 = math.exp %325 : vector<18x18xf32>
    %cst_108 = arith.constant dense<0.000000e+00> : vector<18xf32>
    %327 = vector.multi_reduction <add>, %326, %cst_108 [1] : vector<18x18xf32> to vector<18xf32>
    %328 = vector.shape_cast %327 : vector<18xf32> to vector<18x1xf32>
    %329 = vector.broadcast %59 : vector<1x32xf32> to vector<18x32xf32>
    %330 = arith.mulf %276, %329 : vector<18x32xf32>
    %cst_109 = arith.constant dense<0.000000e+00> : vector<18x32xf32>
    %331 = tpu.matmul %326, %330, %cst_109 {dimension_numbers = #tpu.dot_dimension_numbers<[1], [0], [0], [1], [0, 0, 1, 1], [], []>} : vector<18x18xf32>, vector<18x32xf32>, vector<18x32xf32> -> vector<18x32xf32>
    %cst_110 = arith.constant 1.000000e+00 : f32
    %332 = vector.broadcast %cst_110 : f32 to vector<18x1xf32>
    %333 = arith.divf %332, %328 : vector<18x1xf32>
    %334 = vector.broadcast %333 : vector<18x1xf32> to vector<18x32xf32>
    %335 = arith.mulf %331, %334 : vector<18x32xf32>
    %336 = arith.addf %317, %335 : vector<18x32xf32>
    %337 = vector.broadcast %66 : vector<1x32xf32> to vector<18x32xf32>
    %338 = arith.mulf %278, %337 : vector<18x32xf32>
    %cst_111 = arith.constant dense<0.000000e+00> : vector<18x18xf32>
    %339 = tpu.matmul %338, %271, %cst_111 {dimension_numbers = #tpu.dot_dimension_numbers<[1], [1], [0], [0], [0, 0, 1, 0], [], []>} : vector<18x32xf32>, vector<18x32xf32>, vector<18x18xf32> -> vector<18x18xf32>
    %340 = arith.addf %339, %37 : vector<18x18xf32>
    %cst_112 = arith.constant dense<0xFF800000> : vector<18xf32>
    %341 = vector.multi_reduction <maximumf>, %340, %cst_112 [1] : vector<18x18xf32> to vector<18xf32>
    %342 = vector.shape_cast %341 : vector<18xf32> to vector<18x1xf32>
    %343 = vector.broadcast %342 : vector<18x1xf32> to vector<18x18xf32>
    %344 = arith.subf %340, %343 : vector<18x18xf32>
    %345 = math.exp %344 : vector<18x18xf32>
    %cst_113 = arith.constant dense<0.000000e+00> : vector<18xf32>
    %346 = vector.multi_reduction <add>, %345, %cst_113 [1] : vector<18x18xf32> to vector<18xf32>
    %347 = vector.shape_cast %346 : vector<18xf32> to vector<18x1xf32>
    %348 = vector.broadcast %66 : vector<1x32xf32> to vector<18x32xf32>
    %349 = arith.mulf %276, %348 : vector<18x32xf32>
    %cst_114 = arith.constant dense<0.000000e+00> : vector<18x32xf32>
    %350 = tpu.matmul %345, %349, %cst_114 {dimension_numbers = #tpu.dot_dimension_numbers<[1], [0], [0], [1], [0, 0, 1, 1], [], []>} : vector<18x18xf32>, vector<18x32xf32>, vector<18x32xf32> -> vector<18x32xf32>
    %cst_115 = arith.constant 1.000000e+00 : f32
    %351 = vector.broadcast %cst_115 : f32 to vector<18x1xf32>
    %352 = arith.divf %351, %347 : vector<18x1xf32>
    %353 = vector.broadcast %352 : vector<18x1xf32> to vector<18x32xf32>
    %354 = arith.mulf %350, %353 : vector<18x32xf32>
    %355 = arith.addf %336, %354 : vector<18x32xf32>
    %c440 = arith.constant 440 : index
    %c0_116 = arith.constant 0 : index
    %356 = vector.load %arg1[%c440, %c0_116] : memref<648x128xf32, #tpu.memory_space<vmem>>, vector<32x32xf32>
    %cst_117 = arith.constant dense<0.000000e+00> : vector<18x32xf32>
    %357 = tpu.matmul %355, %356, %cst_117 {dimension_numbers = #tpu.dot_dimension_numbers<[1], [0], [0], [1], [0, 0, 1, 1], [], []>} : vector<18x32xf32>, vector<32x32xf32>, vector<18x32xf32> -> vector<18x32xf32>
    %c592 = arith.constant 592 : index
    %c0_118 = arith.constant 0 : index
    %358 = vector.load %arg1[%c592, %c0_118] : memref<648x128xf32, #tpu.memory_space<vmem>>, vector<1x32xf32>
    %359 = vector.broadcast %358 : vector<1x32xf32> to vector<18x32xf32>
    %360 = arith.addf %357, %359 : vector<18x32xf32>
    %361 = arith.addf %261, %360 : vector<18x32xf32>
    %c616 = arith.constant 616 : index
    %c0_119 = arith.constant 0 : index
    %362 = vector.load %arg1[%c616, %c0_119] : memref<648x128xf32, #tpu.memory_space<vmem>>, vector<1x32xf32>
    %c624 = arith.constant 624 : index
    %c0_120 = arith.constant 0 : index
    %363 = vector.load %arg1[%c624, %c0_120] : memref<648x128xf32, #tpu.memory_space<vmem>>, vector<1x32xf32>
    %cst_121 = arith.constant dense<0.000000e+00> : vector<18xf32>
    %364 = vector.multi_reduction <add>, %361, %cst_121 [1] : vector<18x32xf32> to vector<18xf32>
    %365 = vector.shape_cast %364 : vector<18xf32> to vector<18x1xf32>
    %cst_122 = arith.constant 3.200000e+01 : f32
    %366 = vector.broadcast %cst_122 : f32 to vector<18x1xf32>
    %367 = arith.divf %365, %366 : vector<18x1xf32>
    %368 = vector.broadcast %367 : vector<18x1xf32> to vector<18x32xf32>
    %369 = arith.subf %361, %368 : vector<18x32xf32>
    %370 = arith.mulf %369, %369 : vector<18x32xf32>
    %cst_123 = arith.constant dense<0.000000e+00> : vector<18xf32>
    %371 = vector.multi_reduction <add>, %370, %cst_123 [1] : vector<18x32xf32> to vector<18xf32>
    %372 = vector.shape_cast %371 : vector<18xf32> to vector<18x1xf32>
    %cst_124 = arith.constant 3.200000e+01 : f32
    %373 = vector.broadcast %cst_124 : f32 to vector<18x1xf32>
    %374 = arith.divf %372, %373 : vector<18x1xf32>
    %cst_125 = arith.constant 9.99999974E-6 : f32
    %375 = vector.broadcast %cst_125 : f32 to vector<18x1xf32>
    %376 = arith.addf %374, %375 : vector<18x1xf32>
    %377 = math.rsqrt %376 : vector<18x1xf32>
    %378 = vector.broadcast %377 : vector<18x1xf32> to vector<18x32xf32>
    %379 = arith.mulf %369, %378 : vector<18x32xf32>
    %380 = vector.broadcast %362 : vector<1x32xf32> to vector<18x32xf32>
    %381 = arith.mulf %379, %380 : vector<18x32xf32>
    %382 = vector.broadcast %363 : vector<1x32xf32> to vector<18x32xf32>
    %383 = arith.addf %381, %382 : vector<18x32xf32>
    %c472 = arith.constant 472 : index
    %c0_126 = arith.constant 0 : index
    %384 = vector.load %arg1[%c472, %c0_126] : memref<648x128xf32, #tpu.memory_space<vmem>>, vector<32x64xf32>
    %cst_127 = arith.constant dense<0.000000e+00> : vector<18x64xf32>
    %385 = tpu.matmul %383, %384, %cst_127 {dimension_numbers = #tpu.dot_dimension_numbers<[1], [0], [0], [1], [0, 0, 1, 1], [], []>} : vector<18x32xf32>, vector<32x64xf32>, vector<18x64xf32> -> vector<18x64xf32>
    %c600 = arith.constant 600 : index
    %c0_128 = arith.constant 0 : index
    %386 = vector.load %arg1[%c600, %c0_128] : memref<648x128xf32, #tpu.memory_space<vmem>>, vector<1x64xf32>
    %387 = vector.broadcast %386 : vector<1x64xf32> to vector<18x64xf32>
    %388 = arith.addf %385, %387 : vector<18x64xf32>
    %cst_129 = arith.constant 5.000000e-01 : f32
    %389 = vector.broadcast %cst_129 : f32 to vector<18x64xf32>
    %390 = arith.mulf %389, %388 : vector<18x64xf32>
    %cst_130 = arith.constant 0.707106769 : f32
    %391 = vector.broadcast %cst_130 : f32 to vector<18x64xf32>
    %392 = arith.mulf %388, %391 : vector<18x64xf32>
    %393 = math.absf %392 : vector<18x64xf32>
    %cst_131 = arith.constant 0.327591091 : f32
    %394 = vector.broadcast %cst_131 : f32 to vector<18x64xf32>
    %395 = arith.mulf %394, %393 : vector<18x64xf32>
    %cst_132 = arith.constant 1.000000e+00 : f32
    %396 = vector.broadcast %cst_132 : f32 to vector<18x64xf32>
    %397 = arith.addf %396, %395 : vector<18x64xf32>
    %cst_133 = arith.constant 1.000000e+00 : f32
    %398 = vector.broadcast %cst_133 : f32 to vector<18x64xf32>
    %399 = arith.divf %398, %397 : vector<18x64xf32>
    %cst_134 = arith.constant 1.06140542 : f32
    %400 = vector.broadcast %cst_134 : f32 to vector<18x64xf32>
    %401 = arith.mulf %399, %400 : vector<18x64xf32>
    %cst_135 = arith.constant -1.45315206 : f32
    %402 = vector.broadcast %cst_135 : f32 to vector<18x64xf32>
    %403 = arith.addf %402, %401 : vector<18x64xf32>
    %404 = arith.mulf %399, %403 : vector<18x64xf32>
    %cst_136 = arith.constant 1.42141378 : f32
    %405 = vector.broadcast %cst_136 : f32 to vector<18x64xf32>
    %406 = arith.addf %405, %404 : vector<18x64xf32>
    %407 = arith.mulf %399, %406 : vector<18x64xf32>
    %cst_137 = arith.constant -0.284496725 : f32
    %408 = vector.broadcast %cst_137 : f32 to vector<18x64xf32>
    %409 = arith.addf %408, %407 : vector<18x64xf32>
    %410 = arith.mulf %399, %409 : vector<18x64xf32>
    %cst_138 = arith.constant 0.254829586 : f32
    %411 = vector.broadcast %cst_138 : f32 to vector<18x64xf32>
    %412 = arith.addf %411, %410 : vector<18x64xf32>
    %413 = arith.mulf %399, %412 : vector<18x64xf32>
    %cst_139 = arith.constant 0.000000e+00 : f32
    %414 = vector.broadcast %cst_139 : f32 to vector<18x64xf32>
    %415 = arith.subf %414, %393 : vector<18x64xf32>
    %416 = arith.mulf %415, %393 : vector<18x64xf32>
    %417 = math.exp %416 : vector<18x64xf32>
    %418 = arith.mulf %413, %417 : vector<18x64xf32>
    %cst_140 = arith.constant 1.000000e+00 : f32
    %419 = vector.broadcast %cst_140 : f32 to vector<18x64xf32>
    %420 = arith.subf %419, %418 : vector<18x64xf32>
    %cst_141 = arith.constant 0.000000e+00 : f32
    %421 = vector.broadcast %cst_141 : f32 to vector<18x64xf32>
    %422 = arith.cmpf oge, %392, %421 : vector<18x64xf32>
    %cst_142 = arith.constant 0.000000e+00 : f32
    %423 = vector.broadcast %cst_142 : f32 to vector<18x64xf32>
    %424 = arith.subf %423, %420 : vector<18x64xf32>
    %425 = arith.select %422, %420, %424 : vector<18x64xi1>, vector<18x64xf32>
    %cst_143 = arith.constant 1.000000e+00 : f32
    %426 = vector.broadcast %cst_143 : f32 to vector<18x64xf32>
    %427 = arith.addf %426, %425 : vector<18x64xf32>
    %428 = arith.mulf %390, %427 : vector<18x64xf32>
    %c504 = arith.constant 504 : index
    %c0_144 = arith.constant 0 : index
    %429 = vector.load %arg1[%c504, %c0_144] : memref<648x128xf32, #tpu.memory_space<vmem>>, vector<64x32xf32>
    %cst_145 = arith.constant dense<0.000000e+00> : vector<18x32xf32>
    %430 = tpu.matmul %428, %429, %cst_145 {dimension_numbers = #tpu.dot_dimension_numbers<[1], [0], [0], [1], [0, 0, 1, 1], [], []>} : vector<18x64xf32>, vector<64x32xf32>, vector<18x32xf32> -> vector<18x32xf32>
    %c608 = arith.constant 608 : index
    %c0_146 = arith.constant 0 : index
    %431 = vector.load %arg1[%c608, %c0_146] : memref<648x128xf32, #tpu.memory_space<vmem>>, vector<1x32xf32>
    %432 = vector.broadcast %431 : vector<1x32xf32> to vector<18x32xf32>
    %433 = arith.addf %430, %432 : vector<18x32xf32>
    %434 = arith.addf %383, %433 : vector<18x32xf32>
    %c632 = arith.constant 632 : index
    %c0_147 = arith.constant 0 : index
    %435 = vector.load %arg1[%c632, %c0_147] : memref<648x128xf32, #tpu.memory_space<vmem>>, vector<1x32xf32>
    %c640 = arith.constant 640 : index
    %c0_148 = arith.constant 0 : index
    %436 = vector.load %arg1[%c640, %c0_148] : memref<648x128xf32, #tpu.memory_space<vmem>>, vector<1x32xf32>
    %cst_149 = arith.constant dense<0.000000e+00> : vector<18xf32>
    %437 = vector.multi_reduction <add>, %434, %cst_149 [1] : vector<18x32xf32> to vector<18xf32>
    %438 = vector.shape_cast %437 : vector<18xf32> to vector<18x1xf32>
    %cst_150 = arith.constant 3.200000e+01 : f32
    %439 = vector.broadcast %cst_150 : f32 to vector<18x1xf32>
    %440 = arith.divf %438, %439 : vector<18x1xf32>
    %441 = vector.broadcast %440 : vector<18x1xf32> to vector<18x32xf32>
    %442 = arith.subf %434, %441 : vector<18x32xf32>
    %443 = arith.mulf %442, %442 : vector<18x32xf32>
    %cst_151 = arith.constant dense<0.000000e+00> : vector<18xf32>
    %444 = vector.multi_reduction <add>, %443, %cst_151 [1] : vector<18x32xf32> to vector<18xf32>
    %445 = vector.shape_cast %444 : vector<18xf32> to vector<18x1xf32>
    %cst_152 = arith.constant 3.200000e+01 : f32
    %446 = vector.broadcast %cst_152 : f32 to vector<18x1xf32>
    %447 = arith.divf %445, %446 : vector<18x1xf32>
    %cst_153 = arith.constant 9.99999974E-6 : f32
    %448 = vector.broadcast %cst_153 : f32 to vector<18x1xf32>
    %449 = arith.addf %447, %448 : vector<18x1xf32>
    %450 = math.rsqrt %449 : vector<18x1xf32>
    %451 = vector.broadcast %450 : vector<18x1xf32> to vector<18x32xf32>
    %452 = arith.mulf %442, %451 : vector<18x32xf32>
    %453 = vector.broadcast %435 : vector<1x32xf32> to vector<18x32xf32>
    %454 = arith.mulf %452, %453 : vector<18x32xf32>
    %455 = vector.broadcast %436 : vector<1x32xf32> to vector<18x32xf32>
    %456 = arith.addf %454, %455 : vector<18x32xf32>
    %457 = tpu.iota {dimensions = array<i32: 0>} : vector<2x18xi32>
    %458 = tpu.iota {dimensions = array<i32: 1>} : vector<2x18xi32>
    %c9_i32_154 = arith.constant 9 : i32
    %459 = vector.broadcast %c9_i32_154 : i32 to vector<2x18xi32>
    %460 = arith.muli %457, %459 : vector<2x18xi32>
    %461 = arith.cmpi eq, %458, %460 : vector<2x18xi32>
    %462 = arith.extui %461 : vector<2x18xi1> to vector<2x18xi32>
    %463 = arith.sitofp %462 : vector<2x18xi32> to vector<2x18xf32>
    %cst_155 = arith.constant dense<0.000000e+00> : vector<2x32xf32>
    %464 = tpu.matmul %463, %456, %cst_155 {dimension_numbers = #tpu.dot_dimension_numbers<[1], [0], [0], [1], [0, 0, 1, 1], [], []>} : vector<2x18xf32>, vector<18x32xf32>, vector<2x32xf32> -> vector<2x32xf32>
    %c0_156 = arith.constant 0 : index
    %c0_157 = arith.constant 0 : index
    %465 = vector.load %arg2[%c0_156, %c0_157] : memref<2x32xf32, #tpu.memory_space<vmem>>, vector<2x32xf32>
    tpu.vector_store %arg2[%c0_156, %c0_157], %464 {strides = array<i32>} : memref<2x32xf32, #tpu.memory_space<vmem>>, vector<2x32xf32>,
    return
  }
}

</mosaic_0001>

<llo_original>
// kernel: tpu_custom_call.1
$region0: #{tpu_custom_call.1}
  #allocation0 [shape = 'u32[]', space=smem, size = 0x4, offset = 0x4, fixed_abs, tag = 'smem constant byte address 0x4 - core index']
  #allocation1 [shape = 'u32[144,128]{1,0:T(1,128)}', space=vmem, size = 0x12000, scoped, tag = 'internal scratch']
  %s0 = inlined_call_operand.hbm [shape: f32[18,23], index: 0, kind: input, shape index: {}]
  %s1 = inlined_call_operand.hbm [shape: f32[648,128], index: 1, kind: input, shape index: {}]
  %s2 = inlined_call_operand.hbm [shape: f32[2,32], index: 2, kind: output, shape index: {}]
  %s3 = sld [smem:[#allocation0]]
  $region26: #{tpu_custom_call.1} parent=0
    _
  %s5 = ssub.s32 1, %s3
  %s6 = scalar_select 0, %s5, %s3
  $region1: #{tpu_custom_call.1} parent=0
    #allocation2 [shape = 'u8[12288]{0}', space=vmem, size = 0x3000, scoped, tag = 'input window, operand 0, single buffered']
    #allocation3 [shape = 's32[1]{0}', space=sflag, size = 0x4, scoped, tag = 'scoped memory for tpu_custom_call.1']
    #allocation4 [shape = 's32[1]{0}', space=sflag, size = 0x4, scoped, tag = 'scoped memory for tpu_custom_call.1']
    #allocation5 [shape = 'u8[331776]{0}', space=vmem, size = 0x51000, scoped, tag = 'input window, operand 1, single buffered']
    #allocation6 [shape = 's32[1]{0}', space=sflag, size = 0x4, scoped, tag = 'scoped memory for tpu_custom_call.1']
    #allocation7 [shape = 'u8[1024]{0}', space=vmem, size = 0x400, scoped, tag = 'output window, operand 0, single buffered']
    %7 = vsyncpa [#allocation3], 0
    %8 = vsyncpa [#allocation6], 0
    %9 = vsyncpa [#allocation4], 0
    // Predicated region
    $region2: #{tpu_custom_call.1} parent=1 // pred_check
      _
    $region3: #{tpu_custom_call.1} parent=1 // pred_check_branch
      %11 = sbr.rel (0) target = $region5
    $region4: #{tpu_custom_call.1} parent=1 // pred_region
      %s13 = ssub.s32 384, 384
      %14 = vsyncadd [#allocation3], %s13
      %s15 = sshll.u32 [#allocation2], 4
      %s16 = int_to_ptr.vmem [resolvable:$true] %s15
      %21 = dma.hbm_to_vmem [thread:$0]  %s0, 384, %s16, [#allocation3], 128, 128, 8
    $region5: #{tpu_custom_call.1} parent=1 // pred_fallthru
      _
    // Predicated region
    $region6: #{tpu_custom_call.1} parent=1 // pred_check
      _
    $region7: #{tpu_custom_call.1} parent=1 // pred_check_branch
      %23 = sbr.rel (0) target = $region9
    $region8: #{tpu_custom_call.1} parent=1 // pred_region
      %s25 = ssub.s32 10368, 10368
      %26 = vsyncadd [#allocation6], %s25
      %s27 = sshll.u32 [#allocation5], 4
      %s28 = int_to_ptr.vmem [resolvable:$true] %s27
      %33 = dma.hbm_to_vmem [thread:$0]  %s1, 10368, %s28, [#allocation6], 128, 128, 8
    $region9: #{tpu_custom_call.1} parent=1 // pred_fallthru
      _
    // Predicated region
    $region10: #{tpu_custom_call.1} parent=1 // pred_check
      _
    $region11: #{tpu_custom_call.1} parent=1 // pred_check_branch
      %35 = sbr.rel (0) target = $region13
    $region12: #{tpu_custom_call.1} parent=1 // pred_region
      %36 = dma.done [#allocation3], 384
    $region13: #{tpu_custom_call.1} parent=1 // pred_fallthru
      _
    // Predicated region
    $region14: #{tpu_custom_call.1} parent=1 // pred_check
      _
    $region15: #{tpu_custom_call.1} parent=1 // pred_check_branch
      %38 = sbr.rel (0) target = $region17
    $region16: #{tpu_custom_call.1} parent=1 // pred_region
      %39 = dma.done [#allocation6], 10368
    $region17: #{tpu_custom_call.1} parent=1 // pred_fallthru
      _
    %v40 = vld [vmem:[#allocation2] sm:$0xff]
    %v41 = vld [vmem:[#allocation2 + $0x8] sm:$0xff]
    %v42 = vld [vmem:[#allocation2 + $0x10] sm:$0x3]
    %v43 = vld [vmem:[#allocation5] sm:$0xff]
    %v44 = vld [vmem:[#allocation5 + $0x8] sm:$0xff]
    %v45 = vld [vmem:[#allocation5 + $0x10] sm:$0x7f]
    %v46 = vld [vmem:[#allocation5 + $0x18] sm:$0x1]
    %v47 = vlaneseq
    %v48 = vshrl.u32 %v47, 7
    %v49 = vsub.s32 0, %v48
    %v50 = vrot.slane %v46, %v49
    %vm51 = vcmask 187392
    %v53 = vsel %vm51, %v40, 0
    %v56 = vsel %vm51, %v41, 0
    %v59 = vsel %vm51, %v42, 0
    %vm61 = vcmask 1046528
    %v63 = vsel %vm61, %v45, 0
    %65 = vmatprep.subr.mxu0 0.0
    %66 = vmatpush1.msra.mxu0 %v43
    %67 = vmatprep.subr.mxu0 0.0
    %68 = vmatpush1.msra.mxu0 %v44
    %69 = vmatprep.subr.mxu0 0.0
    %70 = vmatpush1.msra.mxu0 %v63
    %71 = vmatprep.subr.mxu0 0.0
    %72 = vmatpush1.msra.mxu0 0.0
    %73 = vmatprep.subr.mxu0 0.0
    %74 = vmatpush1.msra.mxu0 0.0
    %75 = vmatprep.subr.mxu0 0.0
    %76 = vmatpush1.msra.mxu0 0.0
    %77 = vmatprep.subr.mxu0 0.0
    %78 = vmatpush1.msra.mxu0 0.0
    %79 = vmatprep.subr.mxu0 0.0
    %80 = vmatpush1.msra.mxu0 0.0
    %81 = vmatprep.subr.mxu0 0.0
    %82 = vmatpush1.msra.mxu0 0.0
    %83 = vmatprep.subr.mxu0 0.0
    %84 = vmatpush1.msra.mxu0 0.0
    %85 = vmatprep.subr.mxu0 0.0
    %86 = vmatpush1.msra.mxu0 0.0
    %87 = vmatprep.subr.mxu0 0.0
    %88 = vmatpush1.msra.mxu0 0.0
    %89 = vmatprep.subr.mxu0 0.0
    %90 = vmatpush1.msra.mxu0 0.0
    %91 = vmatprep.subr.mxu0 0.0
    %92 = vmatpush1.msra.mxu0 0.0
    %93 = vmatprep.subr.mxu0 0.0
    %94 = vmatpush1.msra.mxu0 0.0
    %95 = vmatprep.subr.mxu0 0.0
    %96 = vmatpush1.msra.mxu0 0.0
    %97 = vmatprep.subr.mxu0 0.0
    %98 = vmatpush1.msra.mxu0 0.0
    %99 = vmatprep.subr.mxu0 0.0
    %100 = vmatpush1.msra.mxu0 0.0
    %101 = vmatprep.subr.mxu0 0.0
    %102 = vmatpush1.msra.mxu0 0.0
    %103 = vmatprep.subr.mxu0 0.0
    %104 = vmatpush1.msra.mxu0 0.0
    %105 = vmatprep.subr.mxu0 0.0
    %106 = vmatpush1.msra.mxu0 0.0
    %107 = vmatprep.subr.mxu0 0.0
    %108 = vmatpush1.msra.mxu0 0.0
    %109 = vmatprep.subr.mxu0 0.0
    %110 = vmatpush1.msra.mxu0 0.0
    %111 = vmatprep.subr.mxu0 0.0
    %112 = vmatpush1.msra.mxu0 0.0
    %113 = vmatprep.subr.mxu0 0.0
    %114 = vmatpush1.msra.mxu0 0.0
    %115 = vmatprep.subr.mxu0 0.0
    %116 = vmatpush1.msra.mxu0 0.0
    %117 = vmatprep.subr.mxu0 0.0
    %118 = vmatpush1.msra.mxu0 0.0
    %119 = vmatprep.subr.mxu0 0.0
    %120 = vmatpush1.msra.mxu0 0.0
    %121 = vmatprep.subr.mxu0 0.0
    %122 = vmatpush1.msra.mxu0 0.0
    %123 = vmatprep.subr.mxu0 0.0
    %124 = vmatpush1.msra.mxu0 0.0
    %125 = vmatprep.subr.mxu0 0.0
    %126 = vmatpush1.msra.mxu0 0.0
    %127 = vmatprep.subr.mxu0 0.0
    %128 = vmatpush1.msra.mxu0 0.0
    %129 = vmatprep.mubr.f32.mxu0 0.0
    %130 = vmatmul.mubr.f32.gmra.mrb[0].mxu0 %v53
    %v131 = vpop.f32.mrb[0].mxu0
    %v132 = vadd.f32 %v50, %v131
    %v133 = vpop.f32.mrb[0].mxu0
    %134 = vmatprep.mubr.f32.mxu0 0.0
    %135 = vmatmul.mubr.f32.gmra.mrb[0].mxu0 %v56
    %v136 = vpop.f32.mrb[0].mxu0
    %v137 = vadd.f32 %v50, %v136
    %v138 = vpop.f32.mrb[0].mxu0
    %139 = vmatprep.mubr.f32.mxu0 0.0
    %140 = vmatmul.mubr.f32.gmra.mrb[0].mxu0 %v59
    %v141 = vpop.f32.mrb[0].mxu0
    %v142 = vadd.f32 %v50, %v141
    %v143 = vpop.f32.mrb[0].mxu0
    %144 = vdwg.mxu0
    %v145 = vlaneseq
    %v146 = vshrl.u32 %v145, 7
    %v147 = vadd.s32 %v146, 8
    %v148 = vadd.s32 %v146, 16
    %vm149 = vcmp.eq.s32.totalorder %v146, 0
    %vm150 = vcmp.eq.s32.totalorder %v147, 0
    %vm151 = vcmp.eq.s32.totalorder %v148, 0
    %vm152 = vcmp.eq.s32.totalorder %v146, 9
    %vm153 = vcmp.eq.s32.totalorder %v147, 9
    %vm154 = vcmp.eq.s32.totalorder %v148, 9
    %vm155 = vmor %vm149, %vm152
    %vm156 = vmor %vm150, %vm153
    %vm157 = vmor %vm151, %vm154
    %v158 = vld [vmem:[#allocation5 + $0x20] sm:$0x1]
    %v159 = vlaneseq
    %v160 = vshrl.u32 %v159, 7
    %v161 = vsub.s32 0, %v160
    %v162 = vrot.slane %v158, %v161
    %v163 = vsel %vm155, %v162, %v132
    %v164 = vsel %vm156, %v162, %v137
    %v165 = vsel %vm157, %v162, %v142
    %v166 = vlaneseq
    %v167 = vand.u32 %v166, 127
    %vm168 = vcmp.lt.s32.totalorder %v146, 9
    %vm169 = vcmp.lt.s32.totalorder %v147, 9
    %vm170 = vcmp.lt.s32.totalorder %v148, 9
    %vm171 = vcmp.lt.s32.totalorder %v167, 9
    %vm172 = vmand %vm168, %vm171
    %vm173 = vmand %vm169, %vm171
    %vm174 = vmand %vm170, %vm171
    %vm175 = vcmp.ge.s32.totalorder %v146, 9
    %vm176 = vcmp.ge.s32.totalorder %v147, 9
    %vm177 = vcmp.ge.s32.totalorder %v148, 9
    %vm178 = vcmp.lt.s32.totalorder %v146, 18
    %vm179 = vcmp.lt.s32.totalorder %v147, 18
    %vm180 = vcmp.lt.s32.totalorder %v148, 18
    %vm181 = vmand %vm175, %vm178
    %vm182 = vmand %vm176, %vm179
    %vm183 = vmand %vm177, %vm180
    %vm184 = vcmp.ge.s32.totalorder %v167, 9
    %vm185 = vmand %vm181, %vm184
    %vm186 = vmand %vm182, %vm184
    %vm187 = vmand %vm183, %vm184
    %vm188 = vcmp.lt.s32.totalorder %v167, 18
    %vm189 = vmand %vm185, %vm188
    %vm190 = vmand %vm186, %vm188
    %vm191 = vmand %vm187, %vm188
    %vm192 = vmor %vm172, %vm189
    %vm193 = vmor %vm173, %vm190
    %vm194 = vmor %vm174, %vm191
    %v195 = vsel %vm192, 0.0, -1e+30
    %v196 = vsel %vm193, 0.0, -1e+30
    %v197 = vsel %vm194, 0.0, -1e+30
    %vm198 = vcmp.ge.s32.totalorder %v167, 0
    %vm199 = vcmp.lt.s32.totalorder %v167, 8
    %vm200 = vmand %vm198, %vm199
    %v201 = vsel %vm200, 1, 0
    %v202 = vcvt.s32.f32 %v201
    %vm203 = vcmp.ge.s32.totalorder %v167, 8
    %vm204 = vcmp.lt.s32.totalorder %v167, 16
    %vm205 = vmand %vm203, %vm204
    %v206 = vsel %vm205, 1, 0
    %v207 = vcvt.s32.f32 %v206
    %vm208 = vcmp.ge.s32.totalorder %v167, 16
    %vm209 = vcmp.lt.s32.totalorder %v167, 24
    %vm210 = vmand %vm208, %vm209
    %v211 = vsel %vm210, 1, 0
    %v212 = vcvt.s32.f32 %v211
    %vm213 = vcmp.ge.s32.totalorder %v167, 24
    %vm214 = vcmp.lt.s32.totalorder %v167, 32
    %vm215 = vmand %vm213, %vm214
    %v216 = vsel %vm215, 1, 0
    %v217 = vcvt.s32.f32 %v216
    %v218 = vld [vmem:[#allocation5 + $0x28] sm:$0xff]
    %v219 = vld [vmem:[#allocation5 + $0x30] sm:$0xff]
    %v220 = vld [vmem:[#allocation5 + $0x38] sm:$0xff]
    %v221 = vld [vmem:[#allocation5 + $0x40] sm:$0xff]
    %v222 = vld [vmem:[#allocation5 + $0x108] sm:$0x1]
    %v223 = vlaneseq
    %v224 = vshrl.u32 %v223, 7
    %v225 = vsub.s32 0, %v224
    %v226 = vrot.slane %v222, %v225
    %vm227 = vcmask 261120
    %v229 = vsel %vm227, %v163, 0
    %v232 = vsel %vm227, %v164, 0
    %v235 = vsel %vm227, %v165, 0
    %237 = vmatprep.subr.mxu0 0.0
    %238 = vmatpush1.msra.mxu0 %v218
    %239 = vmatprep.subr.mxu0 0.0
    %240 = vmatpush1.msra.mxu0 %v219
    %241 = vmatprep.subr.mxu0 0.0
    %242 = vmatpush1.msra.mxu0 %v220
    %243 = vmatprep.subr.mxu0 0.0
    %244 = vmatpush1.msra.mxu0 %v221
    %245 = vmatprep.subr.mxu0 0.0
    %246 = vmatpush1.msra.mxu0 0.0
    %247 = vmatprep.subr.mxu0 0.0
    %248 = vmatpush1.msra.mxu0 0.0
    %249 = vmatprep.subr.mxu0 0.0
    %250 = vmatpush1.msra.mxu0 0.0
    %251 = vmatprep.subr.mxu0 0.0
    %252 = vmatpush1.msra.mxu0 0.0
    %253 = vmatprep.subr.mxu0 0.0
    %254 = vmatpush1.msra.mxu0 0.0
    %255 = vmatprep.subr.mxu0 0.0
    %256 = vmatpush1.msra.mxu0 0.0
    %257 = vmatprep.subr.mxu0 0.0
    %258 = vmatpush1.msra.mxu0 0.0
    %259 = vmatprep.subr.mxu0 0.0
    %260 = vmatpush1.msra.mxu0 0.0
    %261 = vmatprep.subr.mxu0 0.0
    %262 = vmatpush1.msra.mxu0 0.0
    %263 = vmatprep.subr.mxu0 0.0
    %264 = vmatpush1.msra.mxu0 0.0
    %265 = vmatprep.subr.mxu0 0.0
    %266 = vmatpush1.msra.mxu0 0.0
    %267 = vmatprep.subr.mxu0 0.0
    %268 = vmatpush1.msra.mxu0 0.0
    %269 = vmatprep.subr.mxu0 0.0
    %270 = vmatpush1.msra.mxu0 0.0
    %271 = vmatprep.subr.mxu0 0.0
    %272 = vmatpush1.msra.mxu0 0.0
    %273 = vmatprep.subr.mxu0 0.0
    %274 = vmatpush1.msra.mxu0 0.0
    %275 = vmatprep.subr.mxu0 0.0
    %276 = vmatpush1.msra.mxu0 0.0
    %277 = vmatprep.subr.mxu0 0.0
    %278 = vmatpush1.msra.mxu0 0.0
    %279 = vmatprep.subr.mxu0 0.0
    %280 = vmatpush1.msra.mxu0 0.0
    %281 = vmatprep.subr.mxu0 0.0
    %282 = vmatpush1.msra.mxu0 0.0
    %283 = vmatprep.subr.mxu0 0.0
    %284 = vmatpush1.msra.mxu0 0.0
    %285 = vmatprep.subr.mxu0 0.0
    %286 = vmatpush1.msra.mxu0 0.0
    %287 = vmatprep.subr.mxu0 0.0
    %288 = vmatpush1.msra.mxu0 0.0
    %289 = vmatprep.subr.mxu0 0.0
    %290 = vmatpush1.msra.mxu0 0.0
    %291 = vmatprep.subr.mxu0 0.0
    %292 = vmatpush1.msra.mxu0 0.0
    %293 = vmatprep.subr.mxu0 0.0
    %294 = vmatpush1.msra.mxu0 0.0
    %295 = vmatprep.subr.mxu0 0.0
    %296 = vmatpush1.msra.mxu0 0.0
    %297 = vmatprep.subr.mxu0 0.0
    %298 = vmatpush1.msra.mxu0 0.0
    %299 = vmatprep.subr.mxu0 0.0
    %300 = vmatpush1.msra.mxu0 0.0
    %301 = vmatprep.mubr.f32.mxu0 0.0
    %302 = vmatmul.mubr.f32.gmra.mrb[0].mxu0 %v229
    %v303 = vpop.f32.mrb[0].mxu0
    %v304 = vadd.f32 %v226, %v303
    %v305 = vpop.f32.mrb[0].mxu0
    %306 = vmatprep.mubr.f32.mxu0 0.0
    %307 = vmatmul.mubr.f32.gmra.mrb[0].mxu0 %v232
    %v308 = vpop.f32.mrb[0].mxu0
    %v309 = vadd.f32 %v226, %v308
    %v310 = vpop.f32.mrb[0].mxu0
    %311 = vmatprep.mubr.f32.mxu0 0.0
    %312 = vmatmul.mubr.f32.gmra.mrb[0].mxu0 %v235
    %v313 = vpop.f32.mrb[0].mxu0
    %v314 = vadd.f32 %v226, %v313
    %v315 = vpop.f32.mrb[0].mxu0
    %316 = vdwg.mxu0
    %v317 = vld [vmem:[#allocation5 + $0x48] sm:$0xff]
    %v318 = vld [vmem:[#allocation5 + $0x50] sm:$0xff]
    %v319 = vld [vmem:[#allocation5 + $0x58] sm:$0xff]
    %v320 = vld [vmem:[#allocation5 + $0x60] sm:$0xff]
    %v321 = vld [vmem:[#allocation5 + $0x110] sm:$0x1]
    %v322 = vlaneseq
    %v323 = vshrl.u32 %v322, 7
    %v324 = vsub.s32 0, %v323
    %v325 = vrot.slane %v321, %v324
    %326 = vmatprep.subr.mxu0 0.0
    %327 = vmatpush1.msra.mxu0 %v317
    %328 = vmatprep.subr.mxu0 0.0
    %329 = vmatpush1.msra.mxu0 %v318
    %330 = vmatprep.subr.mxu0 0.0
    %331 = vmatpush1.msra.mxu0 %v319
    %332 = vmatprep.subr.mxu0 0.0
    %333 = vmatpush1.msra.mxu0 %v320
    %334 = vmatprep.subr.mxu0 0.0
    %335 = vmatpush1.msra.mxu0 0.0
    %336 = vmatprep.subr.mxu0 0.0
    %337 = vmatpush1.msra.mxu0 0.0
    %338 = vmatprep.subr.mxu0 0.0
    %339 = vmatpush1.msra.mxu0 0.0
    %340 = vmatprep.subr.mxu0 0.0
    %341 = vmatpush1.msra.mxu0 0.0
    %342 = vmatprep.subr.mxu0 0.0
    %343 = vmatpush1.msra.mxu0 0.0
    %344 = vmatprep.subr.mxu0 0.0
    %345 = vmatpush1.msra.mxu0 0.0
    %346 = vmatprep.subr.mxu0 0.0
    %347 = vmatpush1.msra.mxu0 0.0
    %348 = vmatprep.subr.mxu0 0.0
    %349 = vmatpush1.msra.mxu0 0.0
    %350 = vmatprep.subr.mxu0 0.0
    %351 = vmatpush1.msra.mxu0 0.0
    %352 = vmatprep.subr.mxu0 0.0
    %353 = vmatpush1.msra.mxu0 0.0
    %354 = vmatprep.subr.mxu0 0.0
    %355 = vmatpush1.msra.mxu0 0.0
    %356 = vmatprep.subr.mxu0 0.0
    %357 = vmatpush1.msra.mxu0 0.0
    %358 = vmatprep.subr.mxu0 0.0
    %359 = vmatpush1.msra.mxu0 0.0
    %360 = vmatprep.subr.mxu0 0.0
    %361 = vmatpush1.msra.mxu0 0.0
    %362 = vmatprep.subr.mxu0 0.0
    %363 = vmatpush1.msra.mxu0 0.0
    %364 = vmatprep.subr.mxu0 0.0
    %365 = vmatpush1.msra.mxu0 0.0
    %366 = vmatprep.subr.mxu0 0.0
    %367 = vmatpush1.msra.mxu0 0.0
    %368 = vmatprep.subr.mxu0 0.0
    %369 = vmatpush1.msra.mxu0 0.0
    %370 = vmatprep.subr.mxu0 0.0
    %371 = vmatpush1.msra.mxu0 0.0
    %372 = vmatprep.subr.mxu0 0.0
    %373 = vmatpush1.msra.mxu0 0.0
    %374 = vmatprep.subr.mxu0 0.0
    %375 = vmatpush1.msra.mxu0 0.0
    %376 = vmatprep.subr.mxu0 0.0
    %377 = vmatpush1.msra.mxu0 0.0
    %378 = vmatprep.subr.mxu0 0.0
    %379 = vmatpush1.msra.mxu0 0.0
    %380 = vmatprep.subr.mxu0 0.0
    %381 = vmatpush1.msra.mxu0 0.0
    %382 = vmatprep.subr.mxu0 0.0
    %383 = vmatpush1.msra.mxu0 0.0
    %384 = vmatprep.subr.mxu0 0.0
    %385 = vmatpush1.msra.mxu0 0.0
    %386 = vmatprep.subr.mxu0 0.0
    %387 = vmatpush1.msra.mxu0 0.0
    %388 = vmatprep.subr.mxu0 0.0
    %389 = vmatpush1.msra.mxu0 0.0
    %390 = vmatprep.mubr.f32.mxu0 0.0
    %391 = vmatmul.mubr.f32.gmra.mrb[0].mxu0 %v229
    %v392 = vpop.f32.mrb[0].mxu0
    %v393 = vadd.f32 %v325, %v392
    %v394 = vpop.f32.mrb[0].mxu0
    %395 = vmatprep.mubr.f32.mxu0 0.0
    %396 = vmatmul.mubr.f32.gmra.mrb[0].mxu0 %v232
    %v397 = vpop.f32.mrb[0].mxu0
    %v398 = vadd.f32 %v325, %v397
    %v399 = vpop.f32.mrb[0].mxu0
    %400 = vmatprep.mubr.f32.mxu0 0.0
    %401 = vmatmul.mubr.f32.gmra.mrb[0].mxu0 %v235
    %v402 = vpop.f32.mrb[0].mxu0
    %v403 = vadd.f32 %v325, %v402
    %v404 = vpop.f32.mrb[0].mxu0
    %405 = vdwg.mxu0
    %v406 = vld [vmem:[#allocation5 + $0x68] sm:$0xff]
    %v407 = vld [vmem:[#allocation5 + $0x70] sm:$0xff]
    %v408 = vld [vmem:[#allocation5 + $0x78] sm:$0xff]
    %v409 = vld [vmem:[#allocation5 + $0x80] sm:$0xff]
    %v410 = vld [vmem:[#allocation5 + $0x118] sm:$0x1]
    %v411 = vlaneseq
    %v412 = vshrl.u32 %v411, 7
    %v413 = vsub.s32 0, %v412
    %v414 = vrot.slane %v410, %v413
    %415 = vmatprep.subr.mxu0 0.0
    %416 = vmatpush1.msra.mxu0 %v406
    %417 = vmatprep.subr.mxu0 0.0
    %418 = vmatpush1.msra.mxu0 %v407
    %419 = vmatprep.subr.mxu0 0.0
    %420 = vmatpush1.msra.mxu0 %v408
    %421 = vmatprep.subr.mxu0 0.0
    %422 = vmatpush1.msra.mxu0 %v409
    %423 = vmatprep.subr.mxu0 0.0
    %424 = vmatpush1.msra.mxu0 0.0
    %425 = vmatprep.subr.mxu0 0.0
    %426 = vmatpush1.msra.mxu0 0.0
    %427 = vmatprep.subr.mxu0 0.0
    %428 = vmatpush1.msra.mxu0 0.0
    %429 = vmatprep.subr.mxu0 0.0
    %430 = vmatpush1.msra.mxu0 0.0
    %431 = vmatprep.subr.mxu0 0.0
    %432 = vmatpush1.msra.mxu0 0.0
    %433 = vmatprep.subr.mxu0 0.0
    %434 = vmatpush1.msra.mxu0 0.0
    %435 = vmatprep.subr.mxu0 0.0
    %436 = vmatpush1.msra.mxu0 0.0
    %437 = vmatprep.subr.mxu0 0.0
    %438 = vmatpush1.msra.mxu0 0.0
    %439 = vmatprep.subr.mxu0 0.0
    %440 = vmatpush1.msra.mxu0 0.0
    %441 = vmatprep.subr.mxu0 0.0
    %442 = vmatpush1.msra.mxu0 0.0
    %443 = vmatprep.subr.mxu0 0.0
    %444 = vmatpush1.msra.mxu0 0.0
    %445 = vmatprep.subr.mxu0 0.0
    %446 = vmatpush1.msra.mxu0 0.0
    %447 = vmatprep.subr.mxu0 0.0
    %448 = vmatpush1.msra.mxu0 0.0
    %449 = vmatprep.subr.mxu0 0.0
    %450 = vmatpush1.msra.mxu0 0.0
    %451 = vmatprep.subr.mxu0 0.0
    %452 = vmatpush1.msra.mxu0 0.0
    %453 = vmatprep.subr.mxu0 0.0
    %454 = vmatpush1.msra.mxu0 0.0
    %455 = vmatprep.subr.mxu0 0.0
    %456 = vmatpush1.msra.mxu0 0.0
    %457 = vmatprep.subr.mxu0 0.0
    %458 = vmatpush1.msra.mxu0 0.0
    %459 = vmatprep.subr.mxu0 0.0
    %460 = vmatpush1.msra.mxu0 0.0
    %461 = vmatprep.subr.mxu0 0.0
    %462 = vmatpush1.msra.mxu0 0.0
    %463 = vmatprep.subr.mxu0 0.0
    %464 = vmatpush1.msra.mxu0 0.0
    %465 = vmatprep.subr.mxu0 0.0
    %466 = vmatpush1.msra.mxu0 0.0
    %467 = vmatprep.subr.mxu0 0.0
    %468 = vmatpush1.msra.mxu0 0.0
    %469 = vmatprep.subr.mxu0 0.0
    %470 = vmatpush1.msra.mxu0 0.0
    %471 = vmatprep.subr.mxu0 0.0
    %472 = vmatpush1.msra.mxu0 0.0
    %473 = vmatprep.subr.mxu0 0.0
    %474 = vmatpush1.msra.mxu0 0.0
    %475 = vmatprep.subr.mxu0 0.0
    %476 = vmatpush1.msra.mxu0 0.0
    %477 = vmatprep.subr.mxu0 0.0
    %478 = vmatpush1.msra.mxu0 0.0
    %479 = vmatprep.mubr.f32.mxu0 0.0
    %480 = vmatmul.mubr.f32.gmra.mrb[0].mxu0 %v229
    %v481 = vpop.f32.mrb[0].mxu0
    %v482 = vadd.f32 %v414, %v481
    %v483 = vpop.f32.mrb[0].mxu0
    %484 = vmatprep.mubr.f32.mxu0 0.0
    %485 = vmatmul.mubr.f32.gmra.mrb[0].mxu0 %v232
    %v486 = vpop.f32.mrb[0].mxu0
    %v487 = vadd.f32 %v414, %v486
    %v488 = vpop.f32.mrb[0].mxu0
    %489 = vmatprep.mubr.f32.mxu0 0.0
    %490 = vmatmul.mubr.f32.gmra.mrb[0].mxu0 %v235
    %v491 = vpop.f32.mrb[0].mxu0
    %v492 = vadd.f32 %v414, %v491
    %v493 = vpop.f32.mrb[0].mxu0
    %494 = vdwg.mxu0
    %v495 = vmul.f32 %v304, 0.35355338
    %v496 = vmul.f32 %v309, 0.35355338
    %v497 = vmul.f32 %v314, 0.35355338
    %v498 = vmul.f32 %v495, %v202
    %v499 = vmul.f32 %v496, %v202
    %v500 = vmul.f32 %v497, %v202
    %v502 = vsel %vm227, %v498, 0
    %v505 = vsel %vm227, %v499, 0
    %v508 = vsel %vm227, %v500, 0
    %v511 = vsel %vm227, %v393, 0
    %v514 = vsel %vm227, %v398, 0
    %v517 = vsel %vm227, %v403, 0
    %519 = vmatprep.subr.mxu0 0.0
    %520 = vmatpush1.xpose.msra.mxu0 %v511
    %521 = vmatprep.subr.mxu0 0.0
    %522 = vmatpush1.xpose.msra.mxu0 %v514
    %523 = vmatprep.subr.mxu0 0.0
    %524 = vmatpush1.xpose.msra.mxu0 %v517
    %525 = vmatprep.subr.mxu0 0.0
    %526 = vmatpush1.xpose.msra.mxu0 0.0
    %527 = vmatprep.subr.mxu0 0.0
    %528 = vmatpush1.xpose.msra.mxu0 0.0
    %529 = vmatprep.subr.mxu0 0.0
    %530 = vmatpush1.xpose.msra.mxu0 0.0
    %531 = vmatprep.subr.mxu0 0.0
    %532 = vmatpush1.xpose.msra.mxu0 0.0
    %533 = vmatprep.subr.mxu0 0.0
    %534 = vmatpush1.xpose.msra.mxu0 0.0
    %535 = vmatprep.subr.mxu0 0.0
    %536 = vmatpush1.xpose.msra.mxu0 0.0
    %537 = vmatprep.subr.mxu0 0.0
    %538 = vmatpush1.xpose.msra.mxu0 0.0
    %539 = vmatprep.subr.mxu0 0.0
    %540 = vmatpush1.xpose.msra.mxu0 0.0
    %541 = vmatprep.subr.mxu0 0.0
    %542 = vmatpush1.xpose.msra.mxu0 0.0
    %543 = vmatprep.subr.mxu0 0.0
    %544 = vmatpush1.xpose.msra.mxu0 0.0
    %545 = vmatprep.subr.mxu0 0.0
    %546 = vmatpush1.xpose.msra.mxu0 0.0
    %547 = vmatprep.subr.mxu0 0.0
    %548 = vmatpush1.xpose.msra.mxu0 0.0
    %549 = vmatprep.subr.mxu0 0.0
    %550 = vmatpush1.xpose.msra.mxu0 0.0
    %551 = vmatprep.subr.mxu0 0.0
    %552 = vmatpush1.xpose.msra.mxu0 0.0
    %553 = vmatprep.subr.mxu0 0.0
    %554 = vmatpush1.xpose.msra.mxu0 0.0
    %555 = vmatprep.subr.mxu0 0.0
    %556 = vmatpush1.xpose.msra.mxu0 0.0
    %557 = vmatprep.subr.mxu0 0.0
    %558 = vmatpush1.xpose.msra.mxu0 0.0
    %559 = vmatprep.subr.mxu0 0.0
    %560 = vmatpush1.xpose.msra.mxu0 0.0
    %561 = vmatprep.subr.mxu0 0.0
    %562 = vmatpush1.xpose.msra.mxu0 0.0
    %563 = vmatprep.subr.mxu0 0.0
    %564 = vmatpush1.xpose.msra.mxu0 0.0
    %565 = vmatprep.subr.mxu0 0.0
    %566 = vmatpush1.xpose.msra.mxu0 0.0
    %567 = vmatprep.subr.mxu0 0.0
    %568 = vmatpush1.xpose.msra.mxu0 0.0
    %569 = vmatprep.subr.mxu0 0.0
    %570 = vmatpush1.xpose.msra.mxu0 0.0
    %571 = vmatprep.subr.mxu0 0.0
    %572 = vmatpush1.xpose.msra.mxu0 0.0
    %573 = vmatprep.subr.mxu0 0.0
    %574 = vmatpush1.xpose.msra.mxu0 0.0
    %575 = vmatprep.subr.mxu0 0.0
    %576 = vmatpush1.xpose.msra.mxu0 0.0
    %577 = vmatprep.subr.mxu0 0.0
    %578 = vmatpush1.xpose.msra.mxu0 0.0
    %579 = vmatprep.subr.mxu0 0.0
    %580 = vmatpush1.xpose.msra.mxu0 0.0
    %581 = vmatprep.subr.mxu0 0.0
    %582 = vmatpush1.xpose.msra.mxu0 0.0
    %583 = vmatprep.mubr.f32.mxu0 0.0
    %584 = vmatmul.mubr.f32.gmra.mrb[0].mxu0 %v502
    %v585 = vpop.f32.mrb[0].mxu0
    %v586 = vadd.f32 %v195, %v585
    %v587 = vpop.f32.mrb[0].mxu0
    %588 = vmatprep.mubr.f32.mxu0 0.0
    %589 = vmatmul.mubr.f32.gmra.mrb[0].mxu0 %v505
    %v590 = vpop.f32.mrb[0].mxu0
    %v591 = vadd.f32 %v196, %v590
    %v592 = vpop.f32.mrb[0].mxu0
    %593 = vmatprep.mubr.f32.mxu0 0.0
    %594 = vmatmul.mubr.f32.gmra.mrb[0].mxu0 %v508
    %v595 = vpop.f32.mrb[0].mxu0
    %v596 = vadd.f32 %v197, %v595
    %v597 = vpop.f32.mrb[0].mxu0
    %598 = vdwg.mxu0
    %vm599 = vcmask 146432
    %v600 = vsel %vm599, %v586, -inf
    %601 = vmax.xlane.f32.xlu0 %v600
    %v602 = vpop.xlane.xlu0 %601
    %v603 = vsel %vm599, %v591, -inf
    %604 = vmax.xlane.f32.xlu0 %v603
    %v605 = vpop.xlane.xlu0 %604
    %vm606 = vcmask 140288
    %v607 = vsel %vm606, %v596, -inf
    %608 = vmax.xlane.f32.xlu0 %v607
    %v609 = vpop.xlane.xlu0 %608
    %v610 = vsub.f32 %v586, %v602
    %v611 = vsub.f32 %v591, %v605
    %v612 = vsub.f32 %v596, %v609
    %v613 = vmul.f32 %v610, 1.442695
    %v614 = vpow.pop %v613
    %v615 = vmul.f32 %v611, 1.442695
    %v616 = vpow.pop %v615
    %v617 = vmul.f32 %v612, 1.442695
    %v618 = vpow.pop %v617
    %v619 = vsel %vm599, %v614, 0.0
    %620 = vadd.xlane.f32.xlu0 %v619
    %v621 = vpop.xlane.xlu0 %620
    %v622 = vsel %vm599, %v616, 0.0
    %623 = vadd.xlane.f32.xlu0 %v622
    %v624 = vpop.xlane.xlu0 %623
    %v625 = vsel %vm606, %v618, 0.0
    %626 = vadd.xlane.f32.xlu0 %v625
    %v627 = vpop.xlane.xlu0 %626
    %v628 = vmul.f32 %v482, %v202
    %v629 = vmul.f32 %v487, %v202
    %v630 = vmul.f32 %v492, %v202
    %v632 = vsel %vm599, %v614, 0
    %v635 = vsel %vm599, %v616, 0
    %v638 = vsel %vm599, %v618, 0
    %vm640 = vcmask 1041408
    %v642 = vsel %vm640, %v630, 0
    %644 = vmatprep.subr.mxu0 0.0
    %645 = vmatpush1.msra.mxu0 %v628
    %646 = vmatprep.subr.mxu0 0.0
    %647 = vmatpush1.msra.mxu0 %v629
    %648 = vmatprep.subr.mxu0 0.0
    %649 = vmatpush1.msra.mxu0 %v642
    %650 = vmatprep.subr.mxu0 0.0
    %651 = vmatpush1.msra.mxu0 0.0
    %652 = vmatprep.subr.mxu0 0.0
    %653 = vmatpush1.msra.mxu0 0.0
    %654 = vmatprep.subr.mxu0 0.0
    %655 = vmatpush1.msra.mxu0 0.0
    %656 = vmatprep.subr.mxu0 0.0
    %657 = vmatpush1.msra.mxu0 0.0
    %658 = vmatprep.subr.mxu0 0.0
    %659 = vmatpush1.msra.mxu0 0.0
    %660 = vmatprep.subr.mxu0 0.0
    %661 = vmatpush1.msra.mxu0 0.0
    %662 = vmatprep.subr.mxu0 0.0
    %663 = vmatpush1.msra.mxu0 0.0
    %664 = vmatprep.subr.mxu0 0.0
    %665 = vmatpush1.msra.mxu0 0.0
    %666 = vmatprep.subr.mxu0 0.0
    %667 = vmatpush1.msra.mxu0 0.0
    %668 = vmatprep.subr.mxu0 0.0
    %669 = vmatpush1.msra.mxu0 0.0
    %670 = vmatprep.subr.mxu0 0.0
    %671 = vmatpush1.msra.mxu0 0.0
    %672 = vmatprep.subr.mxu0 0.0
    %673 = vmatpush1.msra.mxu0 0.0
    %674 = vmatprep.subr.mxu0 0.0
    %675 = vmatpush1.msra.mxu0 0.0
    %676 = vmatprep.subr.mxu0 0.0
    %677 = vmatpush1.msra.mxu0 0.0
    %678 = vmatprep.subr.mxu0 0.0
    %679 = vmatpush1.msra.mxu0 0.0
    %680 = vmatprep.subr.mxu0 0.0
    %681 = vmatpush1.msra.mxu0 0.0
    %682 = vmatprep.subr.mxu0 0.0
    %683 = vmatpush1.msra.mxu0 0.0
    %684 = vmatprep.subr.mxu0 0.0
    %685 = vmatpush1.msra.mxu0 0.0
    %686 = vmatprep.subr.mxu0 0.0
    %687 = vmatpush1.msra.mxu0 0.0
    %688 = vmatprep.subr.mxu0 0.0
    %689 = vmatpush1.msra.mxu0 0.0
    %690 = vmatprep.subr.mxu0 0.0
    %691 = vmatpush1.msra.mxu0 0.0
    %692 = vmatprep.subr.mxu0 0.0
    %693 = vmatpush1.msra.mxu0 0.0
    %694 = vmatprep.subr.mxu0 0.0
    %695 = vmatpush1.msra.mxu0 0.0
    %696 = vmatprep.subr.mxu0 0.0
    %697 = vmatpush1.msra.mxu0 0.0
    %698 = vmatprep.subr.mxu0 0.0
    %699 = vmatpush1.msra.mxu0 0.0
    %700 = vmatprep.subr.mxu0 0.0
    %701 = vmatpush1.msra.mxu0 0.0
    %702 = vmatprep.subr.mxu0 0.0
    %703 = vmatpush1.msra.mxu0 0.0
    %704 = vmatprep.subr.mxu0 0.0
    %705 = vmatpush1.msra.mxu0 0.0
    %706 = vmatprep.subr.mxu0 0.0
    %707 = vmatpush1.msra.mxu0 0.0
    %708 = vmatprep.mubr.f32.mxu0 0.0
    %709 = vmatmul.mubr.f32.gmra.mrb[0].mxu0 %v632
    %v710 = vpop.f32.mrb[0].mxu0
    %v711 = vadd.f32 0.0, %v710
    %v712 = vpop.f32.mrb[0].mxu0
    %713 = vmatprep.mubr.f32.mxu0 0.0
    %714 = vmatmul.mubr.f32.gmra.mrb[0].mxu0 %v635
    %v715 = vpop.f32.mrb[0].mxu0
    %v716 = vadd.f32 0.0, %v715
    %v717 = vpop.f32.mrb[0].mxu0
    %718 = vmatprep.mubr.f32.mxu0 0.0
    %719 = vmatmul.mubr.f32.gmra.mrb[0].mxu0 %v638
    %v720 = vpop.f32.mrb[0].mxu0
    %v721 = vadd.f32 0.0, %v720
    %v722 = vpop.f32.mrb[0].mxu0
    %723 = vdwg.mxu0
    %v724 = vrcp.pop %v621
    %v725 = vmul.f32 1.0, %v724
    %v726 = vrcp.pop %v624
    %v727 = vmul.f32 1.0, %v726
    %v728 = vrcp.pop %v627
    %v729 = vmul.f32 1.0, %v728
    %v730 = vmul.f32 %v711, %v725
    %v731 = vmul.f32 %v716, %v727
    %v732 = vmul.f32 %v721, %v729
    %v733 = vadd.f32 %v730, 0.0
    %v734 = vadd.f32 %v731, 0.0
    %v735 = vadd.f32 %v732, 0.0
    %v736 = vmul.f32 %v495, %v207
    %v737 = vmul.f32 %v496, %v207
    %v738 = vmul.f32 %v497, %v207
    %v740 = vsel %vm227, %v736, 0
    %v743 = vsel %vm227, %v737, 0
    %v746 = vsel %vm227, %v738, 0
    %748 = vmatprep.subr.mxu0 0.0
    %749 = vmatpush1.xpose.msra.mxu0 %v511
    %750 = vmatprep.subr.mxu0 0.0
    %751 = vmatpush1.xpose.msra.mxu0 %v514
    %752 = vmatprep.subr.mxu0 0.0
    %753 = vmatpush1.xpose.msra.mxu0 %v517
    %754 = vmatprep.subr.mxu0 0.0
    %755 = vmatpush1.xpose.msra.mxu0 0.0
    %756 = vmatprep.subr.mxu0 0.0
    %757 = vmatpush1.xpose.msra.mxu0 0.0
    %758 = vmatprep.subr.mxu0 0.0
    %759 = vmatpush1.xpose.msra.mxu0 0.0
    %760 = vmatprep.subr.mxu0 0.0
    %761 = vmatpush1.xpose.msra.mxu0 0.0
    %762 = vmatprep.subr.mxu0 0.0
    %763 = vmatpush1.xpose.msra.mxu0 0.0
    %764 = vmatprep.subr.mxu0 0.0
    %765 = vmatpush1.xpose.msra.mxu0 0.0
    %766 = vmatprep.subr.mxu0 0.0
    %767 = vmatpush1.xpose.msra.mxu0 0.0
    %768 = vmatprep.subr.mxu0 0.0
    %769 = vmatpush1.xpose.msra.mxu0 0.0
    %770 = vmatprep.subr.mxu0 0.0
    %771 = vmatpush1.xpose.msra.mxu0 0.0
    %772 = vmatprep.subr.mxu0 0.0
    %773 = vmatpush1.xpose.msra.mxu0 0.0
    %774 = vmatprep.subr.mxu0 0.0
    %775 = vmatpush1.xpose.msra.mxu0 0.0
    %776 = vmatprep.subr.mxu0 0.0
    %777 = vmatpush1.xpose.msra.mxu0 0.0
    %778 = vmatprep.subr.mxu0 0.0
    %779 = vmatpush1.xpose.msra.mxu0 0.0
    %780 = vmatprep.subr.mxu0 0.0
    %781 = vmatpush1.xpose.msra.mxu0 0.0
    %782 = vmatprep.subr.mxu0 0.0
    %783 = vmatpush1.xpose.msra.mxu0 0.0
    %784 = vmatprep.subr.mxu0 0.0
    %785 = vmatpush1.xpose.msra.mxu0 0.0
    %786 = vmatprep.subr.mxu0 0.0
    %787 = vmatpush1.xpose.msra.mxu0 0.0
    %788 = vmatprep.subr.mxu0 0.0
    %789 = vmatpush1.xpose.msra.mxu0 0.0
    %790 = vmatprep.subr.mxu0 0.0
    %791 = vmatpush1.xpose.msra.mxu0 0.0
    %792 = vmatprep.subr.mxu0 0.0
    %793 = vmatpush1.xpose.msra.mxu0 0.0
    %794 = vmatprep.subr.mxu0 0.0
    %795 = vmatpush1.xpose.msra.mxu0 0.0
    %796 = vmatprep.subr.mxu0 0.0
    %797 = vmatpush1.xpose.msra.mxu0 0.0
    %798 = vmatprep.subr.mxu0 0.0
    %799 = vmatpush1.xpose.msra.mxu0 0.0
    %800 = vmatprep.subr.mxu0 0.0
    %801 = vmatpush1.xpose.msra.mxu0 0.0
    %802 = vmatprep.subr.mxu0 0.0
    %803 = vmatpush1.xpose.msra.mxu0 0.0
    %804 = vmatprep.subr.mxu0 0.0
    %805 = vmatpush1.xpose.msra.mxu0 0.0
    %806 = vmatprep.subr.mxu0 0.0
    %807 = vmatpush1.xpose.msra.mxu0 0.0
    %808 = vmatprep.subr.mxu0 0.0
    %809 = vmatpush1.xpose.msra.mxu0 0.0
    %810 = vmatprep.subr.mxu0 0.0
    %811 = vmatpush1.xpose.msra.mxu0 0.0
    %812 = vmatprep.mubr.f32.mxu0 0.0
    %813 = vmatmul.mubr.f32.gmra.mrb[0].mxu0 %v740
    %v814 = vpop.f32.mrb[0].mxu0
    %v815 = vadd.f32 %v195, %v814
    %v816 = vpop.f32.mrb[0].mxu0
    %817 = vmatprep.mubr.f32.mxu0 0.0
    %818 = vmatmul.mubr.f32.gmra.mrb[0].mxu0 %v743
    %v819 = vpop.f32.mrb[0].mxu0
    %v820 = vadd.f32 %v196, %v819
    %v821 = vpop.f32.mrb[0].mxu0
    %822 = vmatprep.mubr.f32.mxu0 0.0
    %823 = vmatmul.mubr.f32.gmra.mrb[0].mxu0 %v746
    %v824 = vpop.f32.mrb[0].mxu0
    %v825 = vadd.f32 %v197, %v824
    %v826 = vpop.f32.mrb[0].mxu0
    %827 = vdwg.mxu0
    %v828 = vsel %vm599, %v815, -inf
    %829 = vmax.xlane.f32.xlu0 %v828
    %v830 = vpop.xlane.xlu0 %829
    %v831 = vsel %vm599, %v820, -inf
    %832 = vmax.xlane.f32.xlu0 %v831
    %v833 = vpop.xlane.xlu0 %832
    %v834 = vsel %vm606, %v825, -inf
    %835 = vmax.xlane.f32.xlu0 %v834
    %v836 = vpop.xlane.xlu0 %835
    %v837 = vsub.f32 %v815, %v830
    %v838 = vsub.f32 %v820, %v833
    %v839 = vsub.f32 %v825, %v836
    %v840 = vmul.f32 %v837, 1.442695
    %v841 = vpow.pop %v840
    %v842 = vmul.f32 %v838, 1.442695
    %v843 = vpow.pop %v842
    %v844 = vmul.f32 %v839, 1.442695
    %v845 = vpow.pop %v844
    %v846 = vsel %vm599, %v841, 0.0
    %847 = vadd.xlane.f32.xlu0 %v846
    %v848 = vpop.xlane.xlu0 %847
    %v849 = vsel %vm599, %v843, 0.0
    %850 = vadd.xlane.f32.xlu0 %v849
    %v851 = vpop.xlane.xlu0 %850
    %v852 = vsel %vm606, %v845, 0.0
    %853 = vadd.xlane.f32.xlu0 %v852
    %v854 = vpop.xlane.xlu0 %853
    %v855 = vmul.f32 %v482, %v207
    %v856 = vmul.f32 %v487, %v207
    %v857 = vmul.f32 %v492, %v207
    %v859 = vsel %vm599, %v841, 0
    %v862 = vsel %vm599, %v843, 0
    %v865 = vsel %vm599, %v845, 0
    %v868 = vsel %vm640, %v857, 0
    %870 = vmatprep.subr.mxu0 0.0
    %871 = vmatpush1.msra.mxu0 %v855
    %872 = vmatprep.subr.mxu0 0.0
    %873 = vmatpush1.msra.mxu0 %v856
    %874 = vmatprep.subr.mxu0 0.0
    %875 = vmatpush1.msra.mxu0 %v868
    %876 = vmatprep.subr.mxu0 0.0
    %877 = vmatpush1.msra.mxu0 0.0
    %878 = vmatprep.subr.mxu0 0.0
    %879 = vmatpush1.msra.mxu0 0.0
    %880 = vmatprep.subr.mxu0 0.0
    %881 = vmatpush1.msra.mxu0 0.0
    %882 = vmatprep.subr.mxu0 0.0
    %883 = vmatpush1.msra.mxu0 0.0
    %884 = vmatprep.subr.mxu0 0.0
    %885 = vmatpush1.msra.mxu0 0.0
    %886 = vmatprep.subr.mxu0 0.0
    %887 = vmatpush1.msra.mxu0 0.0
    %888 = vmatprep.subr.mxu0 0.0
    %889 = vmatpush1.msra.mxu0 0.0
    %890 = vmatprep.subr.mxu0 0.0
    %891 = vmatpush1.msra.mxu0 0.0
    %892 = vmatprep.subr.mxu0 0.0
    %893 = vmatpush1.msra.mxu0 0.0
    %894 = vmatprep.subr.mxu0 0.0
    %895 = vmatpush1.msra.mxu0 0.0
    %896 = vmatprep.subr.mxu0 0.0
    %897 = vmatpush1.msra.mxu0 0.0
    %898 = vmatprep.subr.mxu0 0.0
    %899 = vmatpush1.msra.mxu0 0.0
    %900 = vmatprep.subr.mxu0 0.0
    %901 = vmatpush1.msra.mxu0 0.0
    %902 = vmatprep.subr.mxu0 0.0
    %903 = vmatpush1.msra.mxu0 0.0
    %904 = vmatprep.subr.mxu0 0.0
    %905 = vmatpush1.msra.mxu0 0.0
    %906 = vmatprep.subr.mxu0 0.0
    %907 = vmatpush1.msra.mxu0 0.0
    %908 = vmatprep.subr.mxu0 0.0
    %909 = vmatpush1.msra.mxu0 0.0
    %910 = vmatprep.subr.mxu0 0.0
    %911 = vmatpush1.msra.mxu0 0.0
    %912 = vmatprep.subr.mxu0 0.0
    %913 = vmatpush1.msra.mxu0 0.0
    %914 = vmatprep.subr.mxu0 0.0
    %915 = vmatpush1.msra.mxu0 0.0
    %916 = vmatprep.subr.mxu0 0.0
    %917 = vmatpush1.msra.mxu0 0.0
    %918 = vmatprep.subr.mxu0 0.0
    %919 = vmatpush1.msra.mxu0 0.0
    %920 = vmatprep.subr.mxu0 0.0
    %921 = vmatpush1.msra.mxu0 0.0
    %922 = vmatprep.subr.mxu0 0.0
    %923 = vmatpush1.msra.mxu0 0.0
    %924 = vmatprep.subr.mxu0 0.0
    %925 = vmatpush1.msra.mxu0 0.0
    %926 = vmatprep.subr.mxu0 0.0
    %927 = vmatpush1.msra.mxu0 0.0
    %928 = vmatprep.subr.mxu0 0.0
    %929 = vmatpush1.msra.mxu0 0.0
    %930 = vmatprep.subr.mxu0 0.0
    %931 = vmatpush1.msra.mxu0 0.0
    %932 = vmatprep.subr.mxu0 0.0
    %933 = vmatpush1.msra.mxu0 0.0
    %934 = vmatprep.mubr.f32.mxu0 0.0
    %935 = vmatmul.mubr.f32.gmra.mrb[0].mxu0 %v859
    %v936 = vpop.f32.mrb[0].mxu0
    %v937 = vadd.f32 0.0, %v936
    %v938 = vpop.f32.mrb[0].mxu0
    %939 = vmatprep.mubr.f32.mxu0 0.0
    %940 = vmatmul.mubr.f32.gmra.mrb[0].mxu0 %v862
    %v941 = vpop.f32.mrb[0].mxu0
    %v942 = vadd.f32 0.0, %v941
    %v943 = vpop.f32.mrb[0].mxu0
    %944 = vmatprep.mubr.f32.mxu0 0.0
    %945 = vmatmul.mubr.f32.gmra.mrb[0].mxu0 %v865
    %v946 = vpop.f32.mrb[0].mxu0
    %v947 = vadd.f32 0.0, %v946
    %v948 = vpop.f32.mrb[0].mxu0
    %949 = vdwg.mxu0
    %v950 = vrcp.pop %v848
    %v951 = vmul.f32 1.0, %v950
    %v952 = vrcp.pop %v851
    %v953 = vmul.f32 1.0, %v952
    %v954 = vrcp.pop %v854
    %v955 = vmul.f32 1.0, %v954
    %v956 = vmul.f32 %v937, %v951
    %v957 = vmul.f32 %v942, %v953
    %v958 = vmul.f32 %v947, %v955
    %v959 = vadd.f32 %v733, %v956
    %v960 = vadd.f32 %v734, %v957
    %v961 = vadd.f32 %v735, %v958
    %v962 = vmul.f32 %v495, %v212
    %v963 = vmul.f32 %v496, %v212
    %v964 = vmul.f32 %v497, %v212
    %v966 = vsel %vm227, %v962, 0
    %v969 = vsel %vm227, %v963, 0
    %v972 = vsel %vm227, %v964, 0
    %974 = vmatprep.subr.mxu0 0.0
    %975 = vmatpush1.xpose.msra.mxu0 %v511
    %976 = vmatprep.subr.mxu0 0.0
    %977 = vmatpush1.xpose.msra.mxu0 %v514
    %978 = vmatprep.subr.mxu0 0.0
    %979 = vmatpush1.xpose.msra.mxu0 %v517
    %980 = vmatprep.subr.mxu0 0.0
    %981 = vmatpush1.xpose.msra.mxu0 0.0
    %982 = vmatprep.subr.mxu0 0.0
    %983 = vmatpush1.xpose.msra.mxu0 0.0
    %984 = vmatprep.subr.mxu0 0.0
    %985 = vmatpush1.xpose.msra.mxu0 0.0
    %986 = vmatprep.subr.mxu0 0.0
    %987 = vmatpush1.xpose.msra.mxu0 0.0
    %988 = vmatprep.subr.mxu0 0.0
    %989 = vmatpush1.xpose.msra.mxu0 0.0
    %990 = vmatprep.subr.mxu0 0.0
    %991 = vmatpush1.xpose.msra.mxu0 0.0
    %992 = vmatprep.subr.mxu0 0.0
    %993 = vmatpush1.xpose.msra.mxu0 0.0
    %994 = vmatprep.subr.mxu0 0.0
    %995 = vmatpush1.xpose.msra.mxu0 0.0
    %996 = vmatprep.subr.mxu0 0.0
    %997 = vmatpush1.xpose.msra.mxu0 0.0
    %998 = vmatprep.subr.mxu0 0.0
    %999 = vmatpush1.xpose.msra.mxu0 0.0
    %1000 = vmatprep.subr.mxu0 0.0
    %1001 = vmatpush1.xpose.msra.mxu0 0.0
    %1002 = vmatprep.subr.mxu0 0.0
    %1003 = vmatpush1.xpose.msra.mxu0 0.0
    %1004 = vmatprep.subr.mxu0 0.0
    %1005 = vmatpush1.xpose.msra.mxu0 0.0
    %1006 = vmatprep.subr.mxu0 0.0
    %1007 = vmatpush1.xpose.msra.mxu0 0.0
    %1008 = vmatprep.subr.mxu0 0.0
    %1009 = vmatpush1.xpose.msra.mxu0 0.0
    %1010 = vmatprep.subr.mxu0 0.0
    %1011 = vmatpush1.xpose.msra.mxu0 0.0
    %1012 = vmatprep.subr.mxu0 0.0
    %1013 = vmatpush1.xpose.msra.mxu0 0.0
    %1014 = vmatprep.subr.mxu0 0.0
    %1015 = vmatpush1.xpose.msra.mxu0 0.0
    %1016 = vmatprep.subr.mxu0 0.0
    %1017 = vmatpush1.xpose.msra.mxu0 0.0
    %1018 = vmatprep.subr.mxu0 0.0
    %1019 = vmatpush1.xpose.msra.mxu0 0.0
    %1020 = vmatprep.subr.mxu0 0.0
    %1021 = vmatpush1.xpose.msra.mxu0 0.0
    %1022 = vmatprep.subr.mxu0 0.0
    %1023 = vmatpush1.xpose.msra.mxu0 0.0
    %1024 = vmatprep.subr.mxu0 0.0
    %1025 = vmatpush1.xpose.msra.mxu0 0.0
    %1026 = vmatprep.subr.mxu0 0.0
    %1027 = vmatpush1.xpose.msra.mxu0 0.0
    %1028 = vmatprep.subr.mxu0 0.0
    %1029 = vmatpush1.xpose.msra.mxu0 0.0
    %1030 = vmatprep.subr.mxu0 0.0
    %1031 = vmatpush1.xpose.msra.mxu0 0.0
    %1032 = vmatprep.subr.mxu0 0.0
    %1033 = vmatpush1.xpose.msra.mxu0 0.0
    %1034 = vmatprep.subr.mxu0 0.0
    %1035 = vmatpush1.xpose.msra.mxu0 0.0
    %1036 = vmatprep.subr.mxu0 0.0
    %1037 = vmatpush1.xpose.msra.mxu0 0.0
    %1038 = vmatprep.mubr.f32.mxu0 0.0
    %1039 = vmatmul.mubr.f32.gmra.mrb[0].mxu0 %v966
    %v1040 = vpop.f32.mrb[0].mxu0
    %v1041 = vadd.f32 %v195, %v1040
    %v1042 = vpop.f32.mrb[0].mxu0
    %1043 = vmatprep.mubr.f32.mxu0 0.0
    %1044 = vmatmul.mubr.f32.gmra.mrb[0].mxu0 %v969
    %v1045 = vpop.f32.mrb[0].mxu0
    %v1046 = vadd.f32 %v196, %v1045
    %v1047 = vpop.f32.mrb[0].mxu0
    %1048 = vmatprep.mubr.f32.mxu0 0.0
    %1049 = vmatmul.mubr.f32.gmra.mrb[0].mxu0 %v972
    %v1050 = vpop.f32.mrb[0].mxu0
    %v1051 = vadd.f32 %v197, %v1050
    %v1052 = vpop.f32.mrb[0].mxu0
    %1053 = vdwg.mxu0
    %v1054 = vsel %vm599, %v1041, -inf
    %1055 = vmax.xlane.f32.xlu0 %v1054
    %v1056 = vpop.xlane.xlu0 %1055
    %v1057 = vsel %vm599, %v1046, -inf
    %1058 = vmax.xlane.f32.xlu0 %v1057
    %v1059 = vpop.xlane.xlu0 %1058
    %v1060 = vsel %vm606, %v1051, -inf
    %1061 = vmax.xlane.f32.xlu0 %v1060
    %v1062 = vpop.xlane.xlu0 %1061
    %v1063 = vsub.f32 %v1041, %v1056
    %v1064 = vsub.f32 %v1046, %v1059
    %v1065 = vsub.f32 %v1051, %v1062
    %v1066 = vmul.f32 %v1063, 1.442695
    %v1067 = vpow.pop %v1066
    %v1068 = vmul.f32 %v1064, 1.442695
    %v1069 = vpow.pop %v1068
    %v1070 = vmul.f32 %v1065, 1.442695
    %v1071 = vpow.pop %v1070
    %v1072 = vsel %vm599, %v1067, 0.0
    %1073 = vadd.xlane.f32.xlu0 %v1072
    %v1074 = vpop.xlane.xlu0 %1073
    %v1075 = vsel %vm599, %v1069, 0.0
    %1076 = vadd.xlane.f32.xlu0 %v1075
    %v1077 = vpop.xlane.xlu0 %1076
    %v1078 = vsel %vm606, %v1071, 0.0
    %1079 = vadd.xlane.f32.xlu0 %v1078
    %v1080 = vpop.xlane.xlu0 %1079
    %v1081 = vmul.f32 %v482, %v212
    %v1082 = vmul.f32 %v487, %v212
    %v1083 = vmul.f32 %v492, %v212
    %v1085 = vsel %vm599, %v1067, 0
    %v1088 = vsel %vm599, %v1069, 0
    %v1091 = vsel %vm599, %v1071, 0
    %v1094 = vsel %vm640, %v1083, 0
    %1096 = vmatprep.subr.mxu0 0.0
    %1097 = vmatpush1.msra.mxu0 %v1081
    %1098 = vmatprep.subr.mxu0 0.0
    %1099 = vmatpush1.msra.mxu0 %v1082
    %1100 = vmatprep.subr.mxu0 0.0
    %1101 = vmatpush1.msra.mxu0 %v1094
    %1102 = vmatprep.subr.mxu0 0.0
    %1103 = vmatpush1.msra.mxu0 0.0
    %1104 = vmatprep.subr.mxu0 0.0
    %1105 = vmatpush1.msra.mxu0 0.0
    %1106 = vmatprep.subr.mxu0 0.0
    %1107 = vmatpush1.msra.mxu0 0.0
    %1108 = vmatprep.subr.mxu0 0.0
    %1109 = vmatpush1.msra.mxu0 0.0
    %1110 = vmatprep.subr.mxu0 0.0
    %1111 = vmatpush1.msra.mxu0 0.0
    %1112 = vmatprep.subr.mxu0 0.0
    %1113 = vmatpush1.msra.mxu0 0.0
    %1114 = vmatprep.subr.mxu0 0.0
    %1115 = vmatpush1.msra.mxu0 0.0
    %1116 = vmatprep.subr.mxu0 0.0
    %1117 = vmatpush1.msra.mxu0 0.0
    %1118 = vmatprep.subr.mxu0 0.0
    %1119 = vmatpush1.msra.mxu0 0.0
    %1120 = vmatprep.subr.mxu0 0.0
    %1121 = vmatpush1.msra.mxu0 0.0
    %1122 = vmatprep.subr.mxu0 0.0
    %1123 = vmatpush1.msra.mxu0 0.0
    %1124 = vmatprep.subr.mxu0 0.0
    %1125 = vmatpush1.msra.mxu0 0.0
    %1126 = vmatprep.subr.mxu0 0.0
    %1127 = vmatpush1.msra.mxu0 0.0
    %1128 = vmatprep.subr.mxu0 0.0
    %1129 = vmatpush1.msra.mxu0 0.0
    %1130 = vmatprep.subr.mxu0 0.0
    %1131 = vmatpush1.msra.mxu0 0.0
    %1132 = vmatprep.subr.mxu0 0.0
    %1133 = vmatpush1.msra.mxu0 0.0
    %1134 = vmatprep.subr.mxu0 0.0
    %1135 = vmatpush1.msra.mxu0 0.0
    %1136 = vmatprep.subr.mxu0 0.0
    %1137 = vmatpush1.msra.mxu0 0.0
    %1138 = vmatprep.subr.mxu0 0.0
    %1139 = vmatpush1.msra.mxu0 0.0
    %1140 = vmatprep.subr.mxu0 0.0
    %1141 = vmatpush1.msra.mxu0 0.0
    %1142 = vmatprep.subr.mxu0 0.0
    %1143 = vmatpush1.msra.mxu0 0.0
    %1144 = vmatprep.subr.mxu0 0.0
    %1145 = vmatpush1.msra.mxu0 0.0
    %1146 = vmatprep.subr.mxu0 0.0
    %1147 = vmatpush1.msra.mxu0 0.0
    %1148 = vmatprep.subr.mxu0 0.0
    %1149 = vmatpush1.msra.mxu0 0.0
    %1150 = vmatprep.subr.mxu0 0.0
    %1151 = vmatpush1.msra.mxu0 0.0
    %1152 = vmatprep.subr.mxu0 0.0
    %1153 = vmatpush1.msra.mxu0 0.0
    %1154 = vmatprep.subr.mxu0 0.0
    %1155 = vmatpush1.msra.mxu0 0.0
    %1156 = vmatprep.subr.mxu0 0.0
    %1157 = vmatpush1.msra.mxu0 0.0
    %1158 = vmatprep.subr.mxu0 0.0
    %1159 = vmatpush1.msra.mxu0 0.0
    %1160 = vmatprep.mubr.f32.mxu0 0.0
    %1161 = vmatmul.mubr.f32.gmra.mrb[0].mxu0 %v1085
    %v1162 = vpop.f32.mrb[0].mxu0
    %v1163 = vadd.f32 0.0, %v1162
    %v1164 = vpop.f32.mrb[0].mxu0
    %1165 = vmatprep.mubr.f32.mxu0 0.0
    %1166 = vmatmul.mubr.f32.gmra.mrb[0].mxu0 %v1088
    %v1167 = vpop.f32.mrb[0].mxu0
    %v1168 = vadd.f32 0.0, %v1167
    %v1169 = vpop.f32.mrb[0].mxu0
    %1170 = vmatprep.mubr.f32.mxu0 0.0
    %1171 = vmatmul.mubr.f32.gmra.mrb[0].mxu0 %v1091
    %v1172 = vpop.f32.mrb[0].mxu0
    %v1173 = vadd.f32 0.0, %v1172
    %v1174 = vpop.f32.mrb[0].mxu0
    %1175 = vdwg.mxu0
    %v1176 = vrcp.pop %v1074
    %v1177 = vmul.f32 1.0, %v1176
    %v1178 = vrcp.pop %v1077
    %v1179 = vmul.f32 1.0, %v1178
    %v1180 = vrcp.pop %v1080
    %v1181 = vmul.f32 1.0, %v1180
    %v1182 = vmul.f32 %v1163, %v1177
    %v1183 = vmul.f32 %v1168, %v1179
    %v1184 = vmul.f32 %v1173, %v1181
    %v1185 = vadd.f32 %v959, %v1182
    %v1186 = vadd.f32 %v960, %v1183
    %v1187 = vadd.f32 %v961, %v1184
    %v1188 = vmul.f32 %v495, %v217
    %v1189 = vmul.f32 %v496, %v217
    %v1190 = vmul.f32 %v497, %v217
    %v1192 = vsel %vm227, %v1188, 0
    %v1195 = vsel %vm227, %v1189, 0
    %v1198 = vsel %vm227, %v1190, 0
    %1200 = vmatprep.subr.mxu0 0.0
    %1201 = vmatpush1.xpose.msra.mxu0 %v511
    %1202 = vmatprep.subr.mxu0 0.0
    %1203 = vmatpush1.xpose.msra.mxu0 %v514
    %1204 = vmatprep.subr.mxu0 0.0
    %1205 = vmatpush1.xpose.msra.mxu0 %v517
    %1206 = vmatprep.subr.mxu0 0.0
    %1207 = vmatpush1.xpose.msra.mxu0 0.0
    %1208 = vmatprep.subr.mxu0 0.0
    %1209 = vmatpush1.xpose.msra.mxu0 0.0
    %1210 = vmatprep.subr.mxu0 0.0
    %1211 = vmatpush1.xpose.msra.mxu0 0.0
    %1212 = vmatprep.subr.mxu0 0.0
    %1213 = vmatpush1.xpose.msra.mxu0 0.0
    %1214 = vmatprep.subr.mxu0 0.0
    %1215 = vmatpush1.xpose.msra.mxu0 0.0
    %1216 = vmatprep.subr.mxu0 0.0
    %1217 = vmatpush1.xpose.msra.mxu0 0.0
    %1218 = vmatprep.subr.mxu0 0.0
    %1219 = vmatpush1.xpose.msra.mxu0 0.0
    %1220 = vmatprep.subr.mxu0 0.0
    %1221 = vmatpush1.xpose.msra.mxu0 0.0
    %1222 = vmatprep.subr.mxu0 0.0
    %1223 = vmatpush1.xpose.msra.mxu0 0.0
    %1224 = vmatprep.subr.mxu0 0.0
    %1225 = vmatpush1.xpose.msra.mxu0 0.0
    %1226 = vmatprep.subr.mxu0 0.0
    %1227 = vmatpush1.xpose.msra.mxu0 0.0
    %1228 = vmatprep.subr.mxu0 0.0
    %1229 = vmatpush1.xpose.msra.mxu0 0.0
    %1230 = vmatprep.subr.mxu0 0.0
    %1231 = vmatpush1.xpose.msra.mxu0 0.0
    %1232 = vmatprep.subr.mxu0 0.0
    %1233 = vmatpush1.xpose.msra.mxu0 0.0
    %1234 = vmatprep.subr.mxu0 0.0
    %1235 = vmatpush1.xpose.msra.mxu0 0.0
    %1236 = vmatprep.subr.mxu0 0.0
    %1237 = vmatpush1.xpose.msra.mxu0 0.0
    %1238 = vmatprep.subr.mxu0 0.0
    %1239 = vmatpush1.xpose.msra.mxu0 0.0
    %1240 = vmatprep.subr.mxu0 0.0
    %1241 = vmatpush1.xpose.msra.mxu0 0.0
    %1242 = vmatprep.subr.mxu0 0.0
    %1243 = vmatpush1.xpose.msra.mxu0 0.0
    %1244 = vmatprep.subr.mxu0 0.0
    %1245 = vmatpush1.xpose.msra.mxu0 0.0
    %1246 = vmatprep.subr.mxu0 0.0
    %1247 = vmatpush1.xpose.msra.mxu0 0.0
    %1248 = vmatprep.subr.mxu0 0.0
    %1249 = vmatpush1.xpose.msra.mxu0 0.0
    %1250 = vmatprep.subr.mxu0 0.0
    %1251 = vmatpush1.xpose.msra.mxu0 0.0
    %1252 = vmatprep.subr.mxu0 0.0
    %1253 = vmatpush1.xpose.msra.mxu0 0.0
    %1254 = vmatprep.subr.mxu0 0.0
    %1255 = vmatpush1.xpose.msra.mxu0 0.0
    %1256 = vmatprep.subr.mxu0 0.0
    %1257 = vmatpush1.xpose.msra.mxu0 0.0
    %1258 = vmatprep.subr.mxu0 0.0
    %1259 = vmatpush1.xpose.msra.mxu0 0.0
    %1260 = vmatprep.subr.mxu0 0.0
    %1261 = vmatpush1.xpose.msra.mxu0 0.0
    %1262 = vmatprep.subr.mxu0 0.0
    %1263 = vmatpush1.xpose.msra.mxu0 0.0
    %1264 = vmatprep.mubr.f32.mxu0 0.0
    %1265 = vmatmul.mubr.f32.gmra.mrb[0].mxu0 %v1192
    %v1266 = vpop.f32.mrb[0].mxu0
    %v1267 = vadd.f32 %v195, %v1266
    %v1268 = vpop.f32.mrb[0].mxu0
    %1269 = vmatprep.mubr.f32.mxu0 0.0
    %1270 = vmatmul.mubr.f32.gmra.mrb[0].mxu0 %v1195
    %v1271 = vpop.f32.mrb[0].mxu0
    %v1272 = vadd.f32 %v196, %v1271
    %v1273 = vpop.f32.mrb[0].mxu0
    %1274 = vmatprep.mubr.f32.mxu0 0.0
    %1275 = vmatmul.mubr.f32.gmra.mrb[0].mxu0 %v1198
    %v1276 = vpop.f32.mrb[0].mxu0
    %v1277 = vadd.f32 %v197, %v1276
    %v1278 = vpop.f32.mrb[0].mxu0
    %1279 = vdwg.mxu0
    %v1280 = vsel %vm599, %v1267, -inf
    %1281 = vmax.xlane.f32.xlu0 %v1280
    %v1282 = vpop.xlane.xlu0 %1281
    %v1283 = vsel %vm599, %v1272, -inf
    %1284 = vmax.xlane.f32.xlu0 %v1283
    %v1285 = vpop.xlane.xlu0 %1284
    %v1286 = vsel %vm606, %v1277, -inf
    %1287 = vmax.xlane.f32.xlu0 %v1286
    %v1288 = vpop.xlane.xlu0 %1287
    %v1289 = vsub.f32 %v1267, %v1282
    %v1290 = vsub.f32 %v1272, %v1285
    %v1291 = vsub.f32 %v1277, %v1288
    %v1292 = vmul.f32 %v1289, 1.442695
    %v1293 = vpow.pop %v1292
    %v1294 = vmul.f32 %v1290, 1.442695
    %v1295 = vpow.pop %v1294
    %v1296 = vmul.f32 %v1291, 1.442695
    %v1297 = vpow.pop %v1296
    %v1298 = vsel %vm599, %v1293, 0.0
    %1299 = vadd.xlane.f32.xlu0 %v1298
    %v1300 = vpop.xlane.xlu0 %1299
    %v1301 = vsel %vm599, %v1295, 0.0
    %1302 = vadd.xlane.f32.xlu0 %v1301
    %v1303 = vpop.xlane.xlu0 %1302
    %v1304 = vsel %vm606, %v1297, 0.0
    %1305 = vadd.xlane.f32.xlu0 %v1304
    %v1306 = vpop.xlane.xlu0 %1305
    %v1307 = vmul.f32 %v482, %v217
    %v1308 = vmul.f32 %v487, %v217
    %v1309 = vmul.f32 %v492, %v217
    %v1311 = vsel %vm599, %v1293, 0
    %v1314 = vsel %vm599, %v1295, 0
    %v1317 = vsel %vm599, %v1297, 0
    %v1320 = vsel %vm640, %v1309, 0
    %1322 = vmatprep.subr.mxu0 0.0
    %1323 = vmatpush1.msra.mxu0 %v1307
    %1324 = vmatprep.subr.mxu0 0.0
    %1325 = vmatpush1.msra.mxu0 %v1308
    %1326 = vmatprep.subr.mxu0 0.0
    %1327 = vmatpush1.msra.mxu0 %v1320
    %1328 = vmatprep.subr.mxu0 0.0
    %1329 = vmatpush1.msra.mxu0 0.0
    %1330 = vmatprep.subr.mxu0 0.0
    %1331 = vmatpush1.msra.mxu0 0.0
    %1332 = vmatprep.subr.mxu0 0.0
    %1333 = vmatpush1.msra.mxu0 0.0
    %1334 = vmatprep.subr.mxu0 0.0
    %1335 = vmatpush1.msra.mxu0 0.0
    %1336 = vmatprep.subr.mxu0 0.0
    %1337 = vmatpush1.msra.mxu0 0.0
    %1338 = vmatprep.subr.mxu0 0.0
    %1339 = vmatpush1.msra.mxu0 0.0
    %1340 = vmatprep.subr.mxu0 0.0
    %1341 = vmatpush1.msra.mxu0 0.0
    %1342 = vmatprep.subr.mxu0 0.0
    %1343 = vmatpush1.msra.mxu0 0.0
    %1344 = vmatprep.subr.mxu0 0.0
    %1345 = vmatpush1.msra.mxu0 0.0
    %1346 = vmatprep.subr.mxu0 0.0
    %1347 = vmatpush1.msra.mxu0 0.0
    %1348 = vmatprep.subr.mxu0 0.0
    %1349 = vmatpush1.msra.mxu0 0.0
    %1350 = vmatprep.subr.mxu0 0.0
    %1351 = vmatpush1.msra.mxu0 0.0
    %1352 = vmatprep.subr.mxu0 0.0
    %1353 = vmatpush1.msra.mxu0 0.0
    %1354 = vmatprep.subr.mxu0 0.0
    %1355 = vmatpush1.msra.mxu0 0.0
    %1356 = vmatprep.subr.mxu0 0.0
    %1357 = vmatpush1.msra.mxu0 0.0
    %1358 = vmatprep.subr.mxu0 0.0
    %1359 = vmatpush1.msra.mxu0 0.0
    %1360 = vmatprep.subr.mxu0 0.0
    %1361 = vmatpush1.msra.mxu0 0.0
    %1362 = vmatprep.subr.mxu0 0.0
    %1363 = vmatpush1.msra.mxu0 0.0
    %1364 = vmatprep.subr.mxu0 0.0
    %1365 = vmatpush1.msra.mxu0 0.0
    %1366 = vmatprep.subr.mxu0 0.0
    %1367 = vmatpush1.msra.mxu0 0.0
    %1368 = vmatprep.subr.mxu0 0.0
    %1369 = vmatpush1.msra.mxu0 0.0
    %1370 = vmatprep.subr.mxu0 0.0
    %1371 = vmatpush1.msra.mxu0 0.0
    %1372 = vmatprep.subr.mxu0 0.0
    %1373 = vmatpush1.msra.mxu0 0.0
    %1374 = vmatprep.subr.mxu0 0.0
    %1375 = vmatpush1.msra.mxu0 0.0
    %1376 = vmatprep.subr.mxu0 0.0
    %1377 = vmatpush1.msra.mxu0 0.0
    %1378 = vmatprep.subr.mxu0 0.0
    %1379 = vmatpush1.msra.mxu0 0.0
    %1380 = vmatprep.subr.mxu0 0.0
    %1381 = vmatpush1.msra.mxu0 0.0
    %1382 = vmatprep.subr.mxu0 0.0
    %1383 = vmatpush1.msra.mxu0 0.0
    %1384 = vmatprep.subr.mxu0 0.0
    %1385 = vmatpush1.msra.mxu0 0.0
    %1386 = vmatprep.mubr.f32.mxu0 0.0
    %1387 = vmatmul.mubr.f32.gmra.mrb[0].mxu0 %v1311
    %v1388 = vpop.f32.mrb[0].mxu0
    %v1389 = vadd.f32 0.0, %v1388
    %v1390 = vpop.f32.mrb[0].mxu0
    %1391 = vmatprep.mubr.f32.mxu0 0.0
    %1392 = vmatmul.mubr.f32.gmra.mrb[0].mxu0 %v1314
    %v1393 = vpop.f32.mrb[0].mxu0
    %v1394 = vadd.f32 0.0, %v1393
    %v1395 = vpop.f32.mrb[0].mxu0
    %1396 = vmatprep.mubr.f32.mxu0 0.0
    %1397 = vmatmul.mubr.f32.gmra.mrb[0].mxu0 %v1317
    %v1398 = vpop.f32.mrb[0].mxu0
    %v1399 = vadd.f32 0.0, %v1398
    %v1400 = vpop.f32.mrb[0].mxu0
    %1401 = vdwg.mxu0
    %v1402 = vrcp.pop %v1300
    %v1403 = vmul.f32 1.0, %v1402
    %v1404 = vrcp.pop %v1303
    %v1405 = vmul.f32 1.0, %v1404
    %v1406 = vrcp.pop %v1306
    %v1407 = vmul.f32 1.0, %v1406
    %v1408 = vmul.f32 %v1389, %v1403
    %v1409 = vmul.f32 %v1394, %v1405
    %v1410 = vmul.f32 %v1399, %v1407
    %v1411 = vadd.f32 %v1185, %v1408
    %v1412 = vadd.f32 %v1186, %v1409
    %v1413 = vadd.f32 %v1187, %v1410
    %v1414 = vld [vmem:[#allocation5 + $0x88] sm:$0xff]
    %v1415 = vld [vmem:[#allocation5 + $0x90] sm:$0xff]
    %v1416 = vld [vmem:[#allocation5 + $0x98] sm:$0xff]
    %v1417 = vld [vmem:[#allocation5 + $0xa0] sm:$0xff]
    %v1418 = vld [vmem:[#allocation5 + $0x120] sm:$0x1]
    %v1419 = vlaneseq
    %v1420 = vshrl.u32 %v1419, 7
    %v1421 = vsub.s32 0, %v1420
    %v1422 = vrot.slane %v1418, %v1421
    %v1424 = vsel %vm227, %v1411, 0
    %v1427 = vsel %vm227, %v1412, 0
    %v1430 = vsel %vm227, %v1413, 0
    %1432 = vmatprep.subr.mxu0 0.0
    %1433 = vmatpush1.msra.mxu0 %v1414
    %1434 = vmatprep.subr.mxu0 0.0
    %1435 = vmatpush1.msra.mxu0 %v1415
    %1436 = vmatprep.subr.mxu0 0.0
    %1437 = vmatpush1.msra.mxu0 %v1416
    %1438 = vmatprep.subr.mxu0 0.0
    %1439 = vmatpush1.msra.mxu0 %v1417
    %1440 = vmatprep.subr.mxu0 0.0
    %1441 = vmatpush1.msra.mxu0 0.0
    %1442 = vmatprep.subr.mxu0 0.0
    %1443 = vmatpush1.msra.mxu0 0.0
    %1444 = vmatprep.subr.mxu0 0.0
    %1445 = vmatpush1.msra.mxu0 0.0
    %1446 = vmatprep.subr.mxu0 0.0
    %1447 = vmatpush1.msra.mxu0 0.0
    %1448 = vmatprep.subr.mxu0 0.0
    %1449 = vmatpush1.msra.mxu0 0.0
    %1450 = vmatprep.subr.mxu0 0.0
    %1451 = vmatpush1.msra.mxu0 0.0
    %1452 = vmatprep.subr.mxu0 0.0
    %1453 = vmatpush1.msra.mxu0 0.0
    %1454 = vmatprep.subr.mxu0 0.0
    %1455 = vmatpush1.msra.mxu0 0.0
    %1456 = vmatprep.subr.mxu0 0.0
    %1457 = vmatpush1.msra.mxu0 0.0
    %1458 = vmatprep.subr.mxu0 0.0
    %1459 = vmatpush1.msra.mxu0 0.0
    %1460 = vmatprep.subr.mxu0 0.0
    %1461 = vmatpush1.msra.mxu0 0.0
    %1462 = vmatprep.subr.mxu0 0.0
    %1463 = vmatpush1.msra.mxu0 0.0
    %1464 = vmatprep.subr.mxu0 0.0
    %1465 = vmatpush1.msra.mxu0 0.0
    %1466 = vmatprep.subr.mxu0 0.0
    %1467 = vmatpush1.msra.mxu0 0.0
    %1468 = vmatprep.subr.mxu0 0.0
    %1469 = vmatpush1.msra.mxu0 0.0
    %1470 = vmatprep.subr.mxu0 0.0
    %1471 = vmatpush1.msra.mxu0 0.0
    %1472 = vmatprep.subr.mxu0 0.0
    %1473 = vmatpush1.msra.mxu0 0.0
    %1474 = vmatprep.subr.mxu0 0.0
    %1475 = vmatpush1.msra.mxu0 0.0
    %1476 = vmatprep.subr.mxu0 0.0
    %1477 = vmatpush1.msra.mxu0 0.0
    %1478 = vmatprep.subr.mxu0 0.0
    %1479 = vmatpush1.msra.mxu0 0.0
    %1480 = vmatprep.subr.mxu0 0.0
    %1481 = vmatpush1.msra.mxu0 0.0
    %1482 = vmatprep.subr.mxu0 0.0
    %1483 = vmatpush1.msra.mxu0 0.0
    %1484 = vmatprep.subr.mxu0 0.0
    %1485 = vmatpush1.msra.mxu0 0.0
    %1486 = vmatprep.subr.mxu0 0.0
    %1487 = vmatpush1.msra.mxu0 0.0
    %1488 = vmatprep.subr.mxu0 0.0
    %1489 = vmatpush1.msra.mxu0 0.0
    %1490 = vmatprep.subr.mxu0 0.0
    %1491 = vmatpush1.msra.mxu0 0.0
    %1492 = vmatprep.subr.mxu0 0.0
    %1493 = vmatpush1.msra.mxu0 0.0
    %1494 = vmatprep.subr.mxu0 0.0
    %1495 = vmatpush1.msra.mxu0 0.0
    %1496 = vmatprep.mubr.f32.mxu0 0.0
    %1497 = vmatmul.mubr.f32.gmra.mrb[0].mxu0 %v1424
    %v1498 = vpop.f32.mrb[0].mxu0
    %v1499 = vadd.f32 %v1422, %v1498
    %v1500 = vpop.f32.mrb[0].mxu0
    %1501 = vmatprep.mubr.f32.mxu0 0.0
    %1502 = vmatmul.mubr.f32.gmra.mrb[0].mxu0 %v1427
    %v1503 = vpop.f32.mrb[0].mxu0
    %v1504 = vadd.f32 %v1422, %v1503
    %v1505 = vpop.f32.mrb[0].mxu0
    %1506 = vmatprep.mubr.f32.mxu0 0.0
    %1507 = vmatmul.mubr.f32.gmra.mrb[0].mxu0 %v1430
    %v1508 = vpop.f32.mrb[0].mxu0
    %v1509 = vadd.f32 %v1422, %v1508
    %v1510 = vpop.f32.mrb[0].mxu0
    %1511 = vdwg.mxu0
    %v1512 = vadd.f32 %v163, %v1499
    %v1513 = vadd.f32 %v164, %v1504
    %v1514 = vadd.f32 %v165, %v1509
    %v1515 = vld [vmem:[#allocation5 + $0x138] sm:$0x1]
    %v1516 = vld [vmem:[#allocation5 + $0x140] sm:$0x1]
    %v1517 = vsel %vm227, %v1512, 0.0
    %1518 = vadd.xlane.f32.xlu0 %v1517
    %v1519 = vpop.xlane.xlu0 %1518
    %v1520 = vsel %vm227, %v1513, 0.0
    %1521 = vadd.xlane.f32.xlu0 %v1520
    %v1522 = vpop.xlane.xlu0 %1521
    %vm1523 = vcmask 254976
    %v1524 = vsel %vm1523, %v1514, 0.0
    %1525 = vadd.xlane.f32.xlu0 %v1524
    %v1526 = vpop.xlane.xlu0 %1525
    %v1527 = vrcp.pop 32.0
    %v1528 = vmul.f32 %v1519, %v1527
    %v1529 = vmul.f32 %v1522, %v1527
    %v1530 = vmul.f32 %v1526, %v1527
    %v1531 = vsub.f32 %v1512, %v1528
    %v1532 = vsub.f32 %v1513, %v1529
    %v1533 = vsub.f32 %v1514, %v1530
    %v1534 = vmul.f32 %v1531, %v1531
    %v1535 = vmul.f32 %v1532, %v1532
    %v1536 = vmul.f32 %v1533, %v1533
    %v1537 = vsel %vm227, %v1534, 0.0
    %1538 = vadd.xlane.f32.xlu0 %v1537
    %v1539 = vpop.xlane.xlu0 %1538
    %v1540 = vsel %vm227, %v1535, 0.0
    %1541 = vadd.xlane.f32.xlu0 %v1540
    %v1542 = vpop.xlane.xlu0 %1541
    %v1543 = vsel %vm1523, %v1536, 0.0
    %1544 = vadd.xlane.f32.xlu0 %v1543
    %v1545 = vpop.xlane.xlu0 %1544
    %v1546 = vmul.f32 %v1539, %v1527
    %v1547 = vmul.f32 %v1542, %v1527
    %v1548 = vmul.f32 %v1545, %v1527
    %v1549 = vadd.f32 %v1546, 1e-05
    %v1550 = vadd.f32 %v1547, 1e-05
    %v1551 = vadd.f32 %v1548, 1e-05
    %v1552 = vrsqrt.pop %v1549
    %v1553 = vrsqrt.pop %v1550
    %v1554 = vrsqrt.pop %v1551
    %v1555 = vmul.f32 %v1531, %v1552
    %v1556 = vmul.f32 %v1532, %v1553
    %v1557 = vmul.f32 %v1533, %v1554
    %v1558 = vlaneseq
    %v1559 = vshrl.u32 %v1558, 7
    %v1560 = vsub.s32 0, %v1559
    %v1561 = vrot.slane %v1515, %v1560
    %v1562 = vmul.f32 %v1555, %v1561
    %v1563 = vmul.f32 %v1556, %v1561
    %v1564 = vmul.f32 %v1557, %v1561
    %v1565 = vlaneseq
    %v1566 = vshrl.u32 %v1565, 7
    %v1567 = vsub.s32 0, %v1566
    %v1568 = vrot.slane %v1516, %v1567
    %v1569 = vadd.f32 %v1562, %v1568
    %v1570 = vadd.f32 %v1563, %v1568
    %v1571 = vadd.f32 %v1564, %v1568
    %v1572 = vld [vmem:[#allocation5 + $0xa8] sm:$0xff]
    %v1573 = vld [vmem:[#allocation5 + $0xb0] sm:$0xff]
    %v1574 = vld [vmem:[#allocation5 + $0xb8] sm:$0xff]
    %v1575 = vld [vmem:[#allocation5 + $0xc0] sm:$0xff]
    %v1576 = vld [vmem:[#allocation5 + $0x128] sm:$0x1]
    %v1577 = vlaneseq
    %v1578 = vshrl.u32 %v1577, 7
    %v1579 = vsub.s32 0, %v1578
    %v1580 = vrot.slane %v1576, %v1579
    %v1582 = vsel %vm227, %v1569, 0
    %v1585 = vsel %vm227, %v1570, 0
    %v1588 = vsel %vm227, %v1571, 0
    %1590 = vmatprep.subr.mxu0 0.0
    %1591 = vmatpush1.msra.mxu0 %v1572
    %1592 = vmatprep.subr.mxu0 0.0
    %1593 = vmatpush1.msra.mxu0 %v1573
    %1594 = vmatprep.subr.mxu0 0.0
    %1595 = vmatpush1.msra.mxu0 %v1574
    %1596 = vmatprep.subr.mxu0 0.0
    %1597 = vmatpush1.msra.mxu0 %v1575
    %1598 = vmatprep.subr.mxu0 0.0
    %1599 = vmatpush1.msra.mxu0 0.0
    %1600 = vmatprep.subr.mxu0 0.0
    %1601 = vmatpush1.msra.mxu0 0.0
    %1602 = vmatprep.subr.mxu0 0.0
    %1603 = vmatpush1.msra.mxu0 0.0
    %1604 = vmatprep.subr.mxu0 0.0
    %1605 = vmatpush1.msra.mxu0 0.0
    %1606 = vmatprep.subr.mxu0 0.0
    %1607 = vmatpush1.msra.mxu0 0.0
    %1608 = vmatprep.subr.mxu0 0.0
    %1609 = vmatpush1.msra.mxu0 0.0
    %1610 = vmatprep.subr.mxu0 0.0
    %1611 = vmatpush1.msra.mxu0 0.0
    %1612 = vmatprep.subr.mxu0 0.0
    %1613 = vmatpush1.msra.mxu0 0.0
    %1614 = vmatprep.subr.mxu0 0.0
    %1615 = vmatpush1.msra.mxu0 0.0
    %1616 = vmatprep.subr.mxu0 0.0
    %1617 = vmatpush1.msra.mxu0 0.0
    %1618 = vmatprep.subr.mxu0 0.0
    %1619 = vmatpush1.msra.mxu0 0.0
    %1620 = vmatprep.subr.mxu0 0.0
    %1621 = vmatpush1.msra.mxu0 0.0
    %1622 = vmatprep.subr.mxu0 0.0
    %1623 = vmatpush1.msra.mxu0 0.0
    %1624 = vmatprep.subr.mxu0 0.0
    %1625 = vmatpush1.msra.mxu0 0.0
    %1626 = vmatprep.subr.mxu0 0.0
    %1627 = vmatpush1.msra.mxu0 0.0
    %1628 = vmatprep.subr.mxu0 0.0
    %1629 = vmatpush1.msra.mxu0 0.0
    %1630 = vmatprep.subr.mxu0 0.0
    %1631 = vmatpush1.msra.mxu0 0.0
    %1632 = vmatprep.subr.mxu0 0.0
    %1633 = vmatpush1.msra.mxu0 0.0
    %1634 = vmatprep.subr.mxu0 0.0
    %1635 = vmatpush1.msra.mxu0 0.0
    %1636 = vmatprep.subr.mxu0 0.0
    %1637 = vmatpush1.msra.mxu0 0.0
    %1638 = vmatprep.subr.mxu0 0.0
    %1639 = vmatpush1.msra.mxu0 0.0
    %1640 = vmatprep.subr.mxu0 0.0
    %1641 = vmatpush1.msra.mxu0 0.0
    %1642 = vmatprep.subr.mxu0 0.0
    %1643 = vmatpush1.msra.mxu0 0.0
    %1644 = vmatprep.subr.mxu0 0.0
    %1645 = vmatpush1.msra.mxu0 0.0
    %1646 = vmatprep.subr.mxu0 0.0
    %1647 = vmatpush1.msra.mxu0 0.0
    %1648 = vmatprep.subr.mxu0 0.0
    %1649 = vmatpush1.msra.mxu0 0.0
    %1650 = vmatprep.subr.mxu0 0.0
    %1651 = vmatpush1.msra.mxu0 0.0
    %1652 = vmatprep.subr.mxu0 0.0
    %1653 = vmatpush1.msra.mxu0 0.0
    %1654 = vmatprep.mubr.f32.mxu0 0.0
    %1655 = vmatmul.mubr.f32.gmra.mrb[0].mxu0 %v1582
    %v1656 = vpop.f32.mrb[0].mxu0
    %v1657 = vadd.f32 %v1580, %v1656
    %v1658 = vpop.f32.mrb[0].mxu0
    %1659 = vmatprep.mubr.f32.mxu0 0.0
    %1660 = vmatmul.mubr.f32.gmra.mrb[0].mxu0 %v1585
    %v1661 = vpop.f32.mrb[0].mxu0
    %v1662 = vadd.f32 %v1580, %v1661
    %v1663 = vpop.f32.mrb[0].mxu0
    %1664 = vmatprep.mubr.f32.mxu0 0.0
    %1665 = vmatmul.mubr.f32.gmra.mrb[0].mxu0 %v1588
    %v1666 = vpop.f32.mrb[0].mxu0
    %v1667 = vadd.f32 %v1580, %v1666
    %v1668 = vpop.f32.mrb[0].mxu0
    %1669 = vdwg.mxu0
    %v1670 = vmul.f32 %v1657, 0.5
    %v1671 = vmul.f32 %v1662, 0.5
    %v1672 = vmul.f32 %v1667, 0.5
    %v1673 = vmul.f32 %v1657, 0.70710677
    %v1674 = vmul.f32 %v1662, 0.70710677
    %v1675 = vmul.f32 %v1667, 0.70710677
    %v1676 = vand.u32 2147483647, %v1673
    %v1677 = vand.u32 2147483647, %v1674
    %v1678 = vand.u32 2147483647, %v1675
    %v1679 = vmul.f32 %v1676, 0.3275911
    %v1680 = vmul.f32 %v1677, 0.3275911
    %v1681 = vmul.f32 %v1678, 0.3275911
    %v1682 = vadd.f32 %v1679, 1.0
    %v1683 = vadd.f32 %v1680, 1.0
    %v1684 = vadd.f32 %v1681, 1.0
    %v1685 = vrcp.pop %v1682
    %v1686 = vmul.f32 1.0, %v1685
    %v1687 = vrcp.pop %v1683
    %v1688 = vmul.f32 1.0, %v1687
    %v1689 = vrcp.pop %v1684
    %v1690 = vmul.f32 1.0, %v1689
    %v1691 = vmul.f32 %v1686, 1.0614054
    %v1692 = vmul.f32 %v1688, 1.0614054
    %v1693 = vmul.f32 %v1690, 1.0614054
    %v1694 = vadd.f32 %v1691, -1.4531521
    %v1695 = vadd.f32 %v1692, -1.4531521
    %v1696 = vadd.f32 %v1693, -1.4531521
    %v1697 = vmul.f32 %v1686, %v1694
    %v1698 = vmul.f32 %v1688, %v1695
    %v1699 = vmul.f32 %v1690, %v1696
    %v1700 = vadd.f32 %v1697, 1.4214138
    %v1701 = vadd.f32 %v1698, 1.4214138
    %v1702 = vadd.f32 %v1699, 1.4214138
    %v1703 = vmul.f32 %v1686, %v1700
    %v1704 = vmul.f32 %v1688, %v1701
    %v1705 = vmul.f32 %v1690, %v1702
    %v1706 = vadd.f32 %v1703, -0.28449672
    %v1707 = vadd.f32 %v1704, -0.28449672
    %v1708 = vadd.f32 %v1705, -0.28449672
    %v1709 = vmul.f32 %v1686, %v1706
    %v1710 = vmul.f32 %v1688, %v1707
    %v1711 = vmul.f32 %v1690, %v1708
    %v1712 = vadd.f32 %v1709, 0.2548296
    %v1713 = vadd.f32 %v1710, 0.2548296
    %v1714 = vadd.f32 %v1711, 0.2548296
    %v1715 = vmul.f32 %v1686, %v1712
    %v1716 = vmul.f32 %v1688, %v1713
    %v1717 = vmul.f32 %v1690, %v1714
    %v1718 = vsub.f32 0.0, %v1676
    %v1719 = vsub.f32 0.0, %v1677
    %v1720 = vsub.f32 0.0, %v1678
    %v1721 = vmul.f32 %v1718, %v1676
    %v1722 = vmul.f32 %v1719, %v1677
    %v1723 = vmul.f32 %v1720, %v1678
    %v1724 = vmul.f32 %v1721, 1.442695
    %v1725 = vpow.pop %v1724
    %v1726 = vmul.f32 %v1722, 1.442695
    %v1727 = vpow.pop %v1726
    %v1728 = vmul.f32 %v1723, 1.442695
    %v1729 = vpow.pop %v1728
    %v1730 = vmul.f32 %v1715, %v1725
    %v1731 = vmul.f32 %v1716, %v1727
    %v1732 = vmul.f32 %v1717, %v1729
    %v1733 = vsub.f32 1.0, %v1730
    %v1734 = vsub.f32 1.0, %v1731
    %v1735 = vsub.f32 1.0, %v1732
    %vm1736 = vcmp.ge.f32.partialorder %v1673, 0.0
    %vm1737 = vcmp.ge.f32.partialorder %v1674, 0.0
    %vm1738 = vcmp.ge.f32.partialorder %v1675, 0.0
    %v1739 = vsub.f32 0.0, %v1733
    %v1740 = vsub.f32 0.0, %v1734
    %v1741 = vsub.f32 0.0, %v1735
    %v1742 = vsel %vm1736, %v1733, %v1739
    %v1743 = vsel %vm1737, %v1734, %v1740
    %v1744 = vsel %vm1738, %v1735, %v1741
    %v1745 = vadd.f32 %v1742, 1.0
    %v1746 = vadd.f32 %v1743, 1.0
    %v1747 = vadd.f32 %v1744, 1.0
    %v1748 = vmul.f32 %v1670, %v1745
    %v1749 = vmul.f32 %v1671, %v1746
    %v1750 = vmul.f32 %v1672, %v1747
    %v1751 = vld [vmem:[#allocation5 + $0xc8] sm:$0xff]
    %v1752 = vld [vmem:[#allocation5 + $0xd0] sm:$0xff]
    %v1753 = vld [vmem:[#allocation5 + $0xd8] sm:$0xff]
    %v1754 = vld [vmem:[#allocation5 + $0xe0] sm:$0xff]
    %v1755 = vld [vmem:[#allocation5 + $0xe8] sm:$0xff]
    %v1756 = vld [vmem:[#allocation5 + $0xf0] sm:$0xff]
    %v1757 = vld [vmem:[#allocation5 + $0xf8] sm:$0xff]
    %v1758 = vld [vmem:[#allocation5 + $0x100] sm:$0xff]
    %v1759 = vld [vmem:[#allocation5 + $0x130] sm:$0x1]
    %v1760 = vlaneseq
    %v1761 = vshrl.u32 %v1760, 7
    %v1762 = vsub.s32 0, %v1761
    %v1763 = vrot.slane %v1759, %v1762
    %vm1764 = vcmask 523264
    %v1766 = vsel %vm1764, %v1748, 0
    %v1769 = vsel %vm1764, %v1749, 0
    %v1772 = vsel %vm1764, %v1750, 0
    %1774 = vmatprep.subr.mxu0 0.0
    %1775 = vmatpush1.msra.mxu0 %v1751
    %1776 = vmatprep.subr.mxu0 0.0
    %1777 = vmatpush1.msra.mxu0 %v1752
    %1778 = vmatprep.subr.mxu0 0.0
    %1779 = vmatpush1.msra.mxu0 %v1753
    %1780 = vmatprep.subr.mxu0 0.0
    %1781 = vmatpush1.msra.mxu0 %v1754
    %1782 = vmatprep.subr.mxu0 0.0
    %1783 = vmatpush1.msra.mxu0 %v1755
    %1784 = vmatprep.subr.mxu0 0.0
    %1785 = vmatpush1.msra.mxu0 %v1756
    %1786 = vmatprep.subr.mxu0 0.0
    %1787 = vmatpush1.msra.mxu0 %v1757
    %1788 = vmatprep.subr.mxu0 0.0
    %1789 = vmatpush1.msra.mxu0 %v1758
    %1790 = vmatprep.subr.mxu0 0.0
    %1791 = vmatpush1.msra.mxu0 0.0
    %1792 = vmatprep.subr.mxu0 0.0
    %1793 = vmatpush1.msra.mxu0 0.0
    %1794 = vmatprep.subr.mxu0 0.0
    %1795 = vmatpush1.msra.mxu0 0.0
    %1796 = vmatprep.subr.mxu0 0.0
    %1797 = vmatpush1.msra.mxu0 0.0
    %1798 = vmatprep.subr.mxu0 0.0
    %1799 = vmatpush1.msra.mxu0 0.0
    %1800 = vmatprep.subr.mxu0 0.0
    %1801 = vmatpush1.msra.mxu0 0.0
    %1802 = vmatprep.subr.mxu0 0.0
    %1803 = vmatpush1.msra.mxu0 0.0
    %1804 = vmatprep.subr.mxu0 0.0
    %1805 = vmatpush1.msra.mxu0 0.0
    %1806 = vmatprep.subr.mxu0 0.0
    %1807 = vmatpush1.msra.mxu0 0.0
    %1808 = vmatprep.subr.mxu0 0.0
    %1809 = vmatpush1.msra.mxu0 0.0
    %1810 = vmatprep.subr.mxu0 0.0
    %1811 = vmatpush1.msra.mxu0 0.0
    %1812 = vmatprep.subr.mxu0 0.0
    %1813 = vmatpush1.msra.mxu0 0.0
    %1814 = vmatprep.subr.mxu0 0.0
    %1815 = vmatpush1.msra.mxu0 0.0
    %1816 = vmatprep.subr.mxu0 0.0
    %1817 = vmatpush1.msra.mxu0 0.0
    %1818 = vmatprep.subr.mxu0 0.0
    %1819 = vmatpush1.msra.mxu0 0.0
    %1820 = vmatprep.subr.mxu0 0.0
    %1821 = vmatpush1.msra.mxu0 0.0
    %1822 = vmatprep.subr.mxu0 0.0
    %1823 = vmatpush1.msra.mxu0 0.0
    %1824 = vmatprep.subr.mxu0 0.0
    %1825 = vmatpush1.msra.mxu0 0.0
    %1826 = vmatprep.subr.mxu0 0.0
    %1827 = vmatpush1.msra.mxu0 0.0
    %1828 = vmatprep.subr.mxu0 0.0
    %1829 = vmatpush1.msra.mxu0 0.0
    %1830 = vmatprep.subr.mxu0 0.0
    %1831 = vmatpush1.msra.mxu0 0.0
    %1832 = vmatprep.subr.mxu0 0.0
    %1833 = vmatpush1.msra.mxu0 0.0
    %1834 = vmatprep.subr.mxu0 0.0
    %1835 = vmatpush1.msra.mxu0 0.0
    %1836 = vmatprep.subr.mxu0 0.0
    %1837 = vmatpush1.msra.mxu0 0.0
    %1838 = vmatprep.mubr.f32.mxu0 0.0
    %1839 = vmatmul.mubr.f32.gmra.mrb[0].mxu0 %v1766
    %v1840 = vpop.f32.mrb[0].mxu0
    %v1841 = vadd.f32 %v1763, %v1840
    %v1842 = vpop.f32.mrb[0].mxu0
    %1843 = vmatprep.mubr.f32.mxu0 0.0
    %1844 = vmatmul.mubr.f32.gmra.mrb[0].mxu0 %v1769
    %v1845 = vpop.f32.mrb[0].mxu0
    %v1846 = vadd.f32 %v1763, %v1845
    %v1847 = vpop.f32.mrb[0].mxu0
    %1848 = vmatprep.mubr.f32.mxu0 0.0
    %1849 = vmatmul.mubr.f32.gmra.mrb[0].mxu0 %v1772
    %v1850 = vpop.f32.mrb[0].mxu0
    %v1851 = vadd.f32 %v1763, %v1850
    %v1852 = vpop.f32.mrb[0].mxu0
    %1853 = vdwg.mxu0
    %v1854 = vadd.f32 %v1569, %v1841
    %v1855 = vadd.f32 %v1570, %v1846
    %v1856 = vadd.f32 %v1571, %v1851
    %v1857 = vld [vmem:[#allocation5 + $0x148] sm:$0x1]
    %v1858 = vld [vmem:[#allocation5 + $0x150] sm:$0x1]
    %v1859 = vsel %vm227, %v1854, 0.0
    %1860 = vadd.xlane.f32.xlu0 %v1859
    %v1861 = vpop.xlane.xlu0 %1860
    %v1862 = vsel %vm227, %v1855, 0.0
    %1863 = vadd.xlane.f32.xlu0 %v1862
    %v1864 = vpop.xlane.xlu0 %1863
    %v1865 = vsel %vm1523, %v1856, 0.0
    %1866 = vadd.xlane.f32.xlu0 %v1865
    %v1867 = vpop.xlane.xlu0 %1866
    %v1868 = vmul.f32 %v1861, %v1527
    %v1869 = vmul.f32 %v1864, %v1527
    %v1870 = vmul.f32 %v1867, %v1527
    %v1871 = vsub.f32 %v1854, %v1868
    %v1872 = vsub.f32 %v1855, %v1869
    %v1873 = vsub.f32 %v1856, %v1870
    %v1874 = vmul.f32 %v1871, %v1871
    %v1875 = vmul.f32 %v1872, %v1872
    %v1876 = vmul.f32 %v1873, %v1873
    %v1877 = vsel %vm227, %v1874, 0.0
    %1878 = vadd.xlane.f32.xlu0 %v1877
    %v1879 = vpop.xlane.xlu0 %1878
    %v1880 = vsel %vm227, %v1875, 0.0
    %1881 = vadd.xlane.f32.xlu0 %v1880
    %v1882 = vpop.xlane.xlu0 %1881
    %v1883 = vsel %vm1523, %v1876, 0.0
    %1884 = vadd.xlane.f32.xlu0 %v1883
    %v1885 = vpop.xlane.xlu0 %1884
    %v1886 = vmul.f32 %v1879, %v1527
    %v1887 = vmul.f32 %v1882, %v1527
    %v1888 = vmul.f32 %v1885, %v1527
    %v1889 = vadd.f32 %v1886, 1e-05
    %v1890 = vadd.f32 %v1887, 1e-05
    %v1891 = vadd.f32 %v1888, 1e-05
    %v1892 = vrsqrt.pop %v1889
    %v1893 = vrsqrt.pop %v1890
    %v1894 = vrsqrt.pop %v1891
    %v1895 = vmul.f32 %v1871, %v1892
    %v1896 = vmul.f32 %v1872, %v1893
    %v1897 = vmul.f32 %v1873, %v1894
    %v1898 = vlaneseq
    %v1899 = vshrl.u32 %v1898, 7
    %v1900 = vsub.s32 0, %v1899
    %v1901 = vrot.slane %v1857, %v1900
    %v1902 = vmul.f32 %v1895, %v1901
    %v1903 = vmul.f32 %v1896, %v1901
    %v1904 = vmul.f32 %v1897, %v1901
    %v1905 = vlaneseq
    %v1906 = vshrl.u32 %v1905, 7
    %v1907 = vsub.s32 0, %v1906
    %v1908 = vrot.slane %v1858, %v1907
    %v1909 = vadd.f32 %v1902, %v1908
    %v1910 = vadd.f32 %v1903, %v1908
    %v1911 = vadd.f32 %v1904, %v1908
    %v1912 = vld [vmem:[#allocation5 + $0x158] sm:$0xff]
    %v1913 = vld [vmem:[#allocation5 + $0x160] sm:$0xff]
    %v1914 = vld [vmem:[#allocation5 + $0x168] sm:$0xff]
    %v1915 = vld [vmem:[#allocation5 + $0x170] sm:$0xff]
    %v1916 = vld [vmem:[#allocation5 + $0x238] sm:$0x1]
    %v1917 = vlaneseq
    %v1918 = vshrl.u32 %v1917, 7
    %v1919 = vsub.s32 0, %v1918
    %v1920 = vrot.slane %v1916, %v1919
    %v1922 = vsel %vm227, %v1909, 0
    %v1925 = vsel %vm227, %v1910, 0
    %v1928 = vsel %vm227, %v1911, 0
    %1930 = vmatprep.subr.mxu0 0.0
    %1931 = vmatpush1.msra.mxu0 %v1912
    %1932 = vmatprep.subr.mxu0 0.0
    %1933 = vmatpush1.msra.mxu0 %v1913
    %1934 = vmatprep.subr.mxu0 0.0
    %1935 = vmatpush1.msra.mxu0 %v1914
    %1936 = vmatprep.subr.mxu0 0.0
    %1937 = vmatpush1.msra.mxu0 %v1915
    %1938 = vmatprep.subr.mxu0 0.0
    %1939 = vmatpush1.msra.mxu0 0.0
    %1940 = vmatprep.subr.mxu0 0.0
    %1941 = vmatpush1.msra.mxu0 0.0
    %1942 = vmatprep.subr.mxu0 0.0
    %1943 = vmatpush1.msra.mxu0 0.0
    %1944 = vmatprep.subr.mxu0 0.0
    %1945 = vmatpush1.msra.mxu0 0.0
    %1946 = vmatprep.subr.mxu0 0.0
    %1947 = vmatpush1.msra.mxu0 0.0
    %1948 = vmatprep.subr.mxu0 0.0
    %1949 = vmatpush1.msra.mxu0 0.0
    %1950 = vmatprep.subr.mxu0 0.0
    %1951 = vmatpush1.msra.mxu0 0.0
    %1952 = vmatprep.subr.mxu0 0.0
    %1953 = vmatpush1.msra.mxu0 0.0
    %1954 = vmatprep.subr.mxu0 0.0
    %1955 = vmatpush1.msra.mxu0 0.0
    %1956 = vmatprep.subr.mxu0 0.0
    %1957 = vmatpush1.msra.mxu0 0.0
    %1958 = vmatprep.subr.mxu0 0.0
    %1959 = vmatpush1.msra.mxu0 0.0
    %1960 = vmatprep.subr.mxu0 0.0
    %1961 = vmatpush1.msra.mxu0 0.0
    %1962 = vmatprep.subr.mxu0 0.0
    %1963 = vmatpush1.msra.mxu0 0.0
    %1964 = vmatprep.subr.mxu0 0.0
    %1965 = vmatpush1.msra.mxu0 0.0
    %1966 = vmatprep.subr.mxu0 0.0
    %1967 = vmatpush1.msra.mxu0 0.0
    %1968 = vmatprep.subr.mxu0 0.0
    %1969 = vmatpush1.msra.mxu0 0.0
    %1970 = vmatprep.subr.mxu0 0.0
    %1971 = vmatpush1.msra.mxu0 0.0
    %1972 = vmatprep.subr.mxu0 0.0
    %1973 = vmatpush1.msra.mxu0 0.0
    %1974 = vmatprep.subr.mxu0 0.0
    %1975 = vmatpush1.msra.mxu0 0.0
    %1976 = vmatprep.subr.mxu0 0.0
    %1977 = vmatpush1.msra.mxu0 0.0
    %1978 = vmatprep.subr.mxu0 0.0
    %1979 = vmatpush1.msra.mxu0 0.0
    %1980 = vmatprep.subr.mxu0 0.0
    %1981 = vmatpush1.msra.mxu0 0.0
    %1982 = vmatprep.subr.mxu0 0.0
    %1983 = vmatpush1.msra.mxu0 0.0
    %1984 = vmatprep.subr.mxu0 0.0
    %1985 = vmatpush1.msra.mxu0 0.0
    %1986 = vmatprep.subr.mxu0 0.0
    %1987 = vmatpush1.msra.mxu0 0.0
    %1988 = vmatprep.subr.mxu0 0.0
    %1989 = vmatpush1.msra.mxu0 0.0
    %1990 = vmatprep.subr.mxu0 0.0
    %1991 = vmatpush1.msra.mxu0 0.0
    %1992 = vmatprep.subr.mxu0 0.0
    %1993 = vmatpush1.msra.mxu0 0.0
    %1994 = vmatprep.mubr.f32.mxu0 0.0
    %1995 = vmatmul.mubr.f32.gmra.mrb[0].mxu0 %v1922
    %v1996 = vpop.f32.mrb[0].mxu0
    %v1997 = vadd.f32 %v1920, %v1996
    %v1998 = vpop.f32.mrb[0].mxu0
    %1999 = vmatprep.mubr.f32.mxu0 0.0
    %2000 = vmatmul.mubr.f32.gmra.mrb[0].mxu0 %v1925
    %v2001 = vpop.f32.mrb[0].mxu0
    %v2002 = vadd.f32 %v1920, %v2001
    %v2003 = vpop.f32.mrb[0].mxu0
    %2004 = vmatprep.mubr.f32.mxu0 0.0
    %2005 = vmatmul.mubr.f32.gmra.mrb[0].mxu0 %v1928
    %v2006 = vpop.f32.mrb[0].mxu0
    %v2007 = vadd.f32 %v1920, %v2006
    %v2008 = vpop.f32.mrb[0].mxu0
    %2009 = vdwg.mxu0
    %v2010 = vld [vmem:[#allocation5 + $0x178] sm:$0xff]
    %v2011 = vld [vmem:[#allocation5 + $0x180] sm:$0xff]
    %v2012 = vld [vmem:[#allocation5 + $0x188] sm:$0xff]
    %v2013 = vld [vmem:[#allocation5 + $0x190] sm:$0xff]
    %v2014 = vld [vmem:[#allocation5 + $0x240] sm:$0x1]
    %v2015 = vlaneseq
    %v2016 = vshrl.u32 %v2015, 7
    %v2017 = vsub.s32 0, %v2016
    %v2018 = vrot.slane %v2014, %v2017
    %2019 = vmatprep.subr.mxu0 0.0
    %2020 = vmatpush1.msra.mxu0 %v2010
    %2021 = vmatprep.subr.mxu0 0.0
    %2022 = vmatpush1.msra.mxu0 %v2011
    %2023 = vmatprep.subr.mxu0 0.0
    %2024 = vmatpush1.msra.mxu0 %v2012
    %2025 = vmatprep.subr.mxu0 0.0
    %2026 = vmatpush1.msra.mxu0 %v2013
    %2027 = vmatprep.subr.mxu0 0.0
    %2028 = vmatpush1.msra.mxu0 0.0
    %2029 = vmatprep.subr.mxu0 0.0
    %2030 = vmatpush1.msra.mxu0 0.0
    %2031 = vmatprep.subr.mxu0 0.0
    %2032 = vmatpush1.msra.mxu0 0.0
    %2033 = vmatprep.subr.mxu0 0.0
    %2034 = vmatpush1.msra.mxu0 0.0
    %2035 = vmatprep.subr.mxu0 0.0
    %2036 = vmatpush1.msra.mxu0 0.0
    %2037 = vmatprep.subr.mxu0 0.0
    %2038 = vmatpush1.msra.mxu0 0.0
    %2039 = vmatprep.subr.mxu0 0.0
    %2040 = vmatpush1.msra.mxu0 0.0
    %2041 = vmatprep.subr.mxu0 0.0
    %2042 = vmatpush1.msra.mxu0 0.0
    %2043 = vmatprep.subr.mxu0 0.0
    %2044 = vmatpush1.msra.mxu0 0.0
    %2045 = vmatprep.subr.mxu0 0.0
    %2046 = vmatpush1.msra.mxu0 0.0
    %2047 = vmatprep.subr.mxu0 0.0
    %2048 = vmatpush1.msra.mxu0 0.0
    %2049 = vmatprep.subr.mxu0 0.0
    %2050 = vmatpush1.msra.mxu0 0.0
    %2051 = vmatprep.subr.mxu0 0.0
    %2052 = vmatpush1.msra.mxu0 0.0
    %2053 = vmatprep.subr.mxu0 0.0
    %2054 = vmatpush1.msra.mxu0 0.0
    %2055 = vmatprep.subr.mxu0 0.0
    %2056 = vmatpush1.msra.mxu0 0.0
    %2057 = vmatprep.subr.mxu0 0.0
    %2058 = vmatpush1.msra.mxu0 0.0
    %2059 = vmatprep.subr.mxu0 0.0
    %2060 = vmatpush1.msra.mxu0 0.0
    %2061 = vmatprep.subr.mxu0 0.0
    %2062 = vmatpush1.msra.mxu0 0.0
    %2063 = vmatprep.subr.mxu0 0.0
    %2064 = vmatpush1.msra.mxu0 0.0
    %2065 = vmatprep.subr.mxu0 0.0
    %2066 = vmatpush1.msra.mxu0 0.0
    %2067 = vmatprep.subr.mxu0 0.0
    %2068 = vmatpush1.msra.mxu0 0.0
    %2069 = vmatprep.subr.mxu0 0.0
    %2070 = vmatpush1.msra.mxu0 0.0
    %2071 = vmatprep.subr.mxu0 0.0
    %2072 = vmatpush1.msra.mxu0 0.0
    %2073 = vmatprep.subr.mxu0 0.0
    %2074 = vmatpush1.msra.mxu0 0.0
    %2075 = vmatprep.subr.mxu0 0.0
    %2076 = vmatpush1.msra.mxu0 0.0
    %2077 = vmatprep.subr.mxu0 0.0
    %2078 = vmatpush1.msra.mxu0 0.0
    %2079 = vmatprep.subr.mxu0 0.0
    %2080 = vmatpush1.msra.mxu0 0.0
    %2081 = vmatprep.subr.mxu0 0.0
    %2082 = vmatpush1.msra.mxu0 0.0
    %2083 = vmatprep.mubr.f32.mxu0 0.0
    %2084 = vmatmul.mubr.f32.gmra.mrb[0].mxu0 %v1922
    %v2085 = vpop.f32.mrb[0].mxu0
    %v2086 = vadd.f32 %v2018, %v2085
    %v2087 = vpop.f32.mrb[0].mxu0
    %2088 = vmatprep.mubr.f32.mxu0 0.0
    %2089 = vmatmul.mubr.f32.gmra.mrb[0].mxu0 %v1925
    %v2090 = vpop.f32.mrb[0].mxu0
    %v2091 = vadd.f32 %v2018, %v2090
    %v2092 = vpop.f32.mrb[0].mxu0
    %2093 = vmatprep.mubr.f32.mxu0 0.0
    %2094 = vmatmul.mubr.f32.gmra.mrb[0].mxu0 %v1928
    %v2095 = vpop.f32.mrb[0].mxu0
    %v2096 = vadd.f32 %v2018, %v2095
    %v2097 = vpop.f32.mrb[0].mxu0
    %2098 = vdwg.mxu0
    %v2099 = vld [vmem:[#allocation5 + $0x198] sm:$0xff]
    %v2100 = vld [vmem:[#allocation5 + $0x1a0] sm:$0xff]
    %v2101 = vld [vmem:[#allocation5 + $0x1a8] sm:$0xff]
    %v2102 = vld [vmem:[#allocation5 + $0x1b0] sm:$0xff]
    %v2103 = vld [vmem:[#allocation5 + $0x248] sm:$0x1]
    %v2104 = vlaneseq
    %v2105 = vshrl.u32 %v2104, 7
    %v2106 = vsub.s32 0, %v2105
    %v2107 = vrot.slane %v2103, %v2106
    %2108 = vmatprep.subr.mxu0 0.0
    %2109 = vmatpush1.msra.mxu0 %v2099
    %2110 = vmatprep.subr.mxu0 0.0
    %2111 = vmatpush1.msra.mxu0 %v2100
    %2112 = vmatprep.subr.mxu0 0.0
    %2113 = vmatpush1.msra.mxu0 %v2101
    %2114 = vmatprep.subr.mxu0 0.0
    %2115 = vmatpush1.msra.mxu0 %v2102
    %2116 = vmatprep.subr.mxu0 0.0
    %2117 = vmatpush1.msra.mxu0 0.0
    %2118 = vmatprep.subr.mxu0 0.0
    %2119 = vmatpush1.msra.mxu0 0.0
    %2120 = vmatprep.subr.mxu0 0.0
    %2121 = vmatpush1.msra.mxu0 0.0
    %2122 = vmatprep.subr.mxu0 0.0
    %2123 = vmatpush1.msra.mxu0 0.0
    %2124 = vmatprep.subr.mxu0 0.0
    %2125 = vmatpush1.msra.mxu0 0.0
    %2126 = vmatprep.subr.mxu0 0.0
    %2127 = vmatpush1.msra.mxu0 0.0
    %2128 = vmatprep.subr.mxu0 0.0
    %2129 = vmatpush1.msra.mxu0 0.0
    %2130 = vmatprep.subr.mxu0 0.0
    %2131 = vmatpush1.msra.mxu0 0.0
    %2132 = vmatprep.subr.mxu0 0.0
    %2133 = vmatpush1.msra.mxu0 0.0
    %2134 = vmatprep.subr.mxu0 0.0
    %2135 = vmatpush1.msra.mxu0 0.0
    %2136 = vmatprep.subr.mxu0 0.0
    %2137 = vmatpush1.msra.mxu0 0.0
    %2138 = vmatprep.subr.mxu0 0.0
    %2139 = vmatpush1.msra.mxu0 0.0
    %2140 = vmatprep.subr.mxu0 0.0
    %2141 = vmatpush1.msra.mxu0 0.0
    %2142 = vmatprep.subr.mxu0 0.0
    %2143 = vmatpush1.msra.mxu0 0.0
    %2144 = vmatprep.subr.mxu0 0.0
    %2145 = vmatpush1.msra.mxu0 0.0
    %2146 = vmatprep.subr.mxu0 0.0
    %2147 = vmatpush1.msra.mxu0 0.0
    %2148 = vmatprep.subr.mxu0 0.0
    %2149 = vmatpush1.msra.mxu0 0.0
    %2150 = vmatprep.subr.mxu0 0.0
    %2151 = vmatpush1.msra.mxu0 0.0
    %2152 = vmatprep.subr.mxu0 0.0
    %2153 = vmatpush1.msra.mxu0 0.0
    %2154 = vmatprep.subr.mxu0 0.0
    %2155 = vmatpush1.msra.mxu0 0.0
    %2156 = vmatprep.subr.mxu0 0.0
    %2157 = vmatpush1.msra.mxu0 0.0
    %2158 = vmatprep.subr.mxu0 0.0
    %2159 = vmatpush1.msra.mxu0 0.0
    %2160 = vmatprep.subr.mxu0 0.0
    %2161 = vmatpush1.msra.mxu0 0.0
    %2162 = vmatprep.subr.mxu0 0.0
    %2163 = vmatpush1.msra.mxu0 0.0
    %2164 = vmatprep.subr.mxu0 0.0
    %2165 = vmatpush1.msra.mxu0 0.0
    %2166 = vmatprep.subr.mxu0 0.0
    %2167 = vmatpush1.msra.mxu0 0.0
    %2168 = vmatprep.subr.mxu0 0.0
    %2169 = vmatpush1.msra.mxu0 0.0
    %2170 = vmatprep.subr.mxu0 0.0
    %2171 = vmatpush1.msra.mxu0 0.0
    %2172 = vmatprep.mubr.f32.mxu0 0.0
    %2173 = vmatmul.mubr.f32.gmra.mrb[0].mxu0 %v1922
    %v2174 = vpop.f32.mrb[0].mxu0
    %v2175 = vadd.f32 %v2107, %v2174
    %v2176 = vpop.f32.mrb[0].mxu0
    %2177 = vmatprep.mubr.f32.mxu0 0.0
    %2178 = vmatmul.mubr.f32.gmra.mrb[0].mxu0 %v1925
    %v2179 = vpop.f32.mrb[0].mxu0
    %v2180 = vadd.f32 %v2107, %v2179
    %v2181 = vpop.f32.mrb[0].mxu0
    %2182 = vmatprep.mubr.f32.mxu0 0.0
    %2183 = vmatmul.mubr.f32.gmra.mrb[0].mxu0 %v1928
    %v2184 = vpop.f32.mrb[0].mxu0
    %v2185 = vadd.f32 %v2107, %v2184
    %v2186 = vpop.f32.mrb[0].mxu0
    %2187 = vdwg.mxu0
    %v2188 = vmul.f32 %v1997, 0.35355338
    %v2189 = vmul.f32 %v2002, 0.35355338
    %v2190 = vmul.f32 %v2007, 0.35355338
    %v2191 = vmul.f32 %v2188, %v202
    %v2192 = vmul.f32 %v2189, %v202
    %v2193 = vmul.f32 %v2190, %v202
    %v2195 = vsel %vm227, %v2191, 0
    %v2198 = vsel %vm227, %v2192, 0
    %v2201 = vsel %vm227, %v2193, 0
    %v2204 = vsel %vm227, %v2086, 0
    %v2207 = vsel %vm227, %v2091, 0
    %v2210 = vsel %vm227, %v2096, 0
    %2212 = vmatprep.subr.mxu0 0.0
    %2213 = vmatpush1.xpose.msra.mxu0 %v2204
    %2214 = vmatprep.subr.mxu0 0.0
    %2215 = vmatpush1.xpose.msra.mxu0 %v2207
    %2216 = vmatprep.subr.mxu0 0.0
    %2217 = vmatpush1.xpose.msra.mxu0 %v2210
    %2218 = vmatprep.subr.mxu0 0.0
    %2219 = vmatpush1.xpose.msra.mxu0 0.0
    %2220 = vmatprep.subr.mxu0 0.0
    %2221 = vmatpush1.xpose.msra.mxu0 0.0
    %2222 = vmatprep.subr.mxu0 0.0
    %2223 = vmatpush1.xpose.msra.mxu0 0.0
    %2224 = vmatprep.subr.mxu0 0.0
    %2225 = vmatpush1.xpose.msra.mxu0 0.0
    %2226 = vmatprep.subr.mxu0 0.0
    %2227 = vmatpush1.xpose.msra.mxu0 0.0
    %2228 = vmatprep.subr.mxu0 0.0
    %2229 = vmatpush1.xpose.msra.mxu0 0.0
    %2230 = vmatprep.subr.mxu0 0.0
    %2231 = vmatpush1.xpose.msra.mxu0 0.0
    %2232 = vmatprep.subr.mxu0 0.0
    %2233 = vmatpush1.xpose.msra.mxu0 0.0
    %2234 = vmatprep.subr.mxu0 0.0
    %2235 = vmatpush1.xpose.msra.mxu0 0.0
    %2236 = vmatprep.subr.mxu0 0.0
    %2237 = vmatpush1.xpose.msra.mxu0 0.0
    %2238 = vmatprep.subr.mxu0 0.0
    %2239 = vmatpush1.xpose.msra.mxu0 0.0
    %2240 = vmatprep.subr.mxu0 0.0
    %2241 = vmatpush1.xpose.msra.mxu0 0.0
    %2242 = vmatprep.subr.mxu0 0.0
    %2243 = vmatpush1.xpose.msra.mxu0 0.0
    %2244 = vmatprep.subr.mxu0 0.0
    %2245 = vmatpush1.xpose.msra.mxu0 0.0
    %2246 = vmatprep.subr.mxu0 0.0
    %2247 = vmatpush1.xpose.msra.mxu0 0.0
    %2248 = vmatprep.subr.mxu0 0.0
    %2249 = vmatpush1.xpose.msra.mxu0 0.0
    %2250 = vmatprep.subr.mxu0 0.0
    %2251 = vmatpush1.xpose.msra.mxu0 0.0
    %2252 = vmatprep.subr.mxu0 0.0
    %2253 = vmatpush1.xpose.msra.mxu0 0.0
    %2254 = vmatprep.subr.mxu0 0.0
    %2255 = vmatpush1.xpose.msra.mxu0 0.0
    %2256 = vmatprep.subr.mxu0 0.0
    %2257 = vmatpush1.xpose.msra.mxu0 0.0
    %2258 = vmatprep.subr.mxu0 0.0
    %2259 = vmatpush1.xpose.msra.mxu0 0.0
    %2260 = vmatprep.subr.mxu0 0.0
    %2261 = vmatpush1.xpose.msra.mxu0 0.0
    %2262 = vmatprep.subr.mxu0 0.0
    %2263 = vmatpush1.xpose.msra.mxu0 0.0
    %2264 = vmatprep.subr.mxu0 0.0
    %2265 = vmatpush1.xpose.msra.mxu0 0.0
    %2266 = vmatprep.subr.mxu0 0.0
    %2267 = vmatpush1.xpose.msra.mxu0 0.0
    %2268 = vmatprep.subr.mxu0 0.0
    %2269 = vmatpush1.xpose.msra.mxu0 0.0
    %2270 = vmatprep.subr.mxu0 0.0
    %2271 = vmatpush1.xpose.msra.mxu0 0.0
    %2272 = vmatprep.subr.mxu0 0.0
    %2273 = vmatpush1.xpose.msra.mxu0 0.0
    %2274 = vmatprep.subr.mxu0 0.0
    %2275 = vmatpush1.xpose.msra.mxu0 0.0
    %2276 = vmatprep.mubr.f32.mxu0 0.0
    %2277 = vmatmul.mubr.f32.gmra.mrb[0].mxu0 %v2195
    %v2278 = vpop.f32.mrb[0].mxu0
    %v2279 = vadd.f32 %v195, %v2278
    %v2280 = vpop.f32.mrb[0].mxu0
    %2281 = vmatprep.mubr.f32.mxu0 0.0
    %2282 = vmatmul.mubr.f32.gmra.mrb[0].mxu0 %v2198
    %v2283 = vpop.f32.mrb[0].mxu0
    %v2284 = vadd.f32 %v196, %v2283
    %v2285 = vpop.f32.mrb[0].mxu0
    %2286 = vmatprep.mubr.f32.mxu0 0.0
    %2287 = vmatmul.mubr.f32.gmra.mrb[0].mxu0 %v2201
    %v2288 = vpop.f32.mrb[0].mxu0
    %v2289 = vadd.f32 %v197, %v2288
    %v2290 = vpop.f32.mrb[0].mxu0
    %2291 = vdwg.mxu0
    %v2292 = vsel %vm599, %v2279, -inf
    %2293 = vmax.xlane.f32.xlu0 %v2292
    %v2294 = vpop.xlane.xlu0 %2293
    %v2295 = vsel %vm599, %v2284, -inf
    %2296 = vmax.xlane.f32.xlu0 %v2295
    %v2297 = vpop.xlane.xlu0 %2296
    %v2298 = vsel %vm606, %v2289, -inf
    %2299 = vmax.xlane.f32.xlu0 %v2298
    %v2300 = vpop.xlane.xlu0 %2299
    %v2301 = vsub.f32 %v2279, %v2294
    %v2302 = vsub.f32 %v2284, %v2297
    %v2303 = vsub.f32 %v2289, %v2300
    %v2304 = vmul.f32 %v2301, 1.442695
    %v2305 = vpow.pop %v2304
    %v2306 = vmul.f32 %v2302, 1.442695
    %v2307 = vpow.pop %v2306
    %v2308 = vmul.f32 %v2303, 1.442695
    %v2309 = vpow.pop %v2308
    %v2310 = vsel %vm599, %v2305, 0.0
    %2311 = vadd.xlane.f32.xlu0 %v2310
    %v2312 = vpop.xlane.xlu0 %2311
    %v2313 = vsel %vm599, %v2307, 0.0
    %2314 = vadd.xlane.f32.xlu0 %v2313
    %v2315 = vpop.xlane.xlu0 %2314
    %v2316 = vsel %vm606, %v2309, 0.0
    %2317 = vadd.xlane.f32.xlu0 %v2316
    %v2318 = vpop.xlane.xlu0 %2317
    %v2319 = vmul.f32 %v2175, %v202
    %v2320 = vmul.f32 %v2180, %v202
    %v2321 = vmul.f32 %v2185, %v202
    %v2323 = vsel %vm599, %v2305, 0
    %v2326 = vsel %vm599, %v2307, 0
    %v2329 = vsel %vm599, %v2309, 0
    %v2332 = vsel %vm640, %v2321, 0
    %2334 = vmatprep.subr.mxu0 0.0
    %2335 = vmatpush1.msra.mxu0 %v2319
    %2336 = vmatprep.subr.mxu0 0.0
    %2337 = vmatpush1.msra.mxu0 %v2320
    %2338 = vmatprep.subr.mxu0 0.0
    %2339 = vmatpush1.msra.mxu0 %v2332
    %2340 = vmatprep.subr.mxu0 0.0
    %2341 = vmatpush1.msra.mxu0 0.0
    %2342 = vmatprep.subr.mxu0 0.0
    %2343 = vmatpush1.msra.mxu0 0.0
    %2344 = vmatprep.subr.mxu0 0.0
    %2345 = vmatpush1.msra.mxu0 0.0
    %2346 = vmatprep.subr.mxu0 0.0
    %2347 = vmatpush1.msra.mxu0 0.0
    %2348 = vmatprep.subr.mxu0 0.0
    %2349 = vmatpush1.msra.mxu0 0.0
    %2350 = vmatprep.subr.mxu0 0.0
    %2351 = vmatpush1.msra.mxu0 0.0
    %2352 = vmatprep.subr.mxu0 0.0
    %2353 = vmatpush1.msra.mxu0 0.0
    %2354 = vmatprep.subr.mxu0 0.0
    %2355 = vmatpush1.msra.mxu0 0.0
    %2356 = vmatprep.subr.mxu0 0.0
    %2357 = vmatpush1.msra.mxu0 0.0
    %2358 = vmatprep.subr.mxu0 0.0
    %2359 = vmatpush1.msra.mxu0 0.0
    %2360 = vmatprep.subr.mxu0 0.0
    %2361 = vmatpush1.msra.mxu0 0.0
    %2362 = vmatprep.subr.mxu0 0.0
    %2363 = vmatpush1.msra.mxu0 0.0
    %2364 = vmatprep.subr.mxu0 0.0
    %2365 = vmatpush1.msra.mxu0 0.0
    %2366 = vmatprep.subr.mxu0 0.0
    %2367 = vmatpush1.msra.mxu0 0.0
    %2368 = vmatprep.subr.mxu0 0.0
    %2369 = vmatpush1.msra.mxu0 0.0
    %2370 = vmatprep.subr.mxu0 0.0
    %2371 = vmatpush1.msra.mxu0 0.0
    %2372 = vmatprep.subr.mxu0 0.0
    %2373 = vmatpush1.msra.mxu0 0.0
    %2374 = vmatprep.subr.mxu0 0.0
    %2375 = vmatpush1.msra.mxu0 0.0
    %2376 = vmatprep.subr.mxu0 0.0
    %2377 = vmatpush1.msra.mxu0 0.0
    %2378 = vmatprep.subr.mxu0 0.0
    %2379 = vmatpush1.msra.mxu0 0.0
    %2380 = vmatprep.subr.mxu0 0.0
    %2381 = vmatpush1.msra.mxu0 0.0
    %2382 = vmatprep.subr.mxu0 0.0
    %2383 = vmatpush1.msra.mxu0 0.0
    %2384 = vmatprep.subr.mxu0 0.0
    %2385 = vmatpush1.msra.mxu0 0.0
    %2386 = vmatprep.subr.mxu0 0.0
    %2387 = vmatpush1.msra.mxu0 0.0
    %2388 = vmatprep.subr.mxu0 0.0
    %2389 = vmatpush1.msra.mxu0 0.0
    %2390 = vmatprep.subr.mxu0 0.0
    %2391 = vmatpush1.msra.mxu0 0.0
    %2392 = vmatprep.subr.mxu0 0.0
    %2393 = vmatpush1.msra.mxu0 0.0
    %2394 = vmatprep.subr.mxu0 0.0
    %2395 = vmatpush1.msra.mxu0 0.0
    %2396 = vmatprep.subr.mxu0 0.0
    %2397 = vmatpush1.msra.mxu0 0.0
    %2398 = vmatprep.mubr.f32.mxu0 0.0
    %2399 = vmatmul.mubr.f32.gmra.mrb[0].mxu0 %v2323
    %v2400 = vpop.f32.mrb[0].mxu0
    %v2401 = vadd.f32 0.0, %v2400
    %v2402 = vpop.f32.mrb[0].mxu0
    %2403 = vmatprep.mubr.f32.mxu0 0.0
    %2404 = vmatmul.mubr.f32.gmra.mrb[0].mxu0 %v2326
    %v2405 = vpop.f32.mrb[0].mxu0
    %v2406 = vadd.f32 0.0, %v2405
    %v2407 = vpop.f32.mrb[0].mxu0
    %2408 = vmatprep.mubr.f32.mxu0 0.0
    %2409 = vmatmul.mubr.f32.gmra.mrb[0].mxu0 %v2329
    %v2410 = vpop.f32.mrb[0].mxu0
    %v2411 = vadd.f32 0.0, %v2410
    %v2412 = vpop.f32.mrb[0].mxu0
    %2413 = vdwg.mxu0
    %v2414 = vrcp.pop %v2312
    %v2415 = vmul.f32 1.0, %v2414
    %v2416 = vrcp.pop %v2315
    %v2417 = vmul.f32 1.0, %v2416
    %v2418 = vrcp.pop %v2318
    %v2419 = vmul.f32 1.0, %v2418
    %v2420 = vmul.f32 %v2401, %v2415
    %v2421 = vmul.f32 %v2406, %v2417
    %v2422 = vmul.f32 %v2411, %v2419
    %v2423 = vadd.f32 %v2420, 0.0
    %v2424 = vadd.f32 %v2421, 0.0
    %v2425 = vadd.f32 %v2422, 0.0
    %v2426 = vmul.f32 %v2188, %v207
    %v2427 = vmul.f32 %v2189, %v207
    %v2428 = vmul.f32 %v2190, %v207
    %v2430 = vsel %vm227, %v2426, 0
    %v2433 = vsel %vm227, %v2427, 0
    %v2436 = vsel %vm227, %v2428, 0
    %2438 = vmatprep.subr.mxu0 0.0
    %2439 = vmatpush1.xpose.msra.mxu0 %v2204
    %2440 = vmatprep.subr.mxu0 0.0
    %2441 = vmatpush1.xpose.msra.mxu0 %v2207
    %2442 = vmatprep.subr.mxu0 0.0
    %2443 = vmatpush1.xpose.msra.mxu0 %v2210
    %2444 = vmatprep.subr.mxu0 0.0
    %2445 = vmatpush1.xpose.msra.mxu0 0.0
    %2446 = vmatprep.subr.mxu0 0.0
    %2447 = vmatpush1.xpose.msra.mxu0 0.0
    %2448 = vmatprep.subr.mxu0 0.0
    %2449 = vmatpush1.xpose.msra.mxu0 0.0
    %2450 = vmatprep.subr.mxu0 0.0
    %2451 = vmatpush1.xpose.msra.mxu0 0.0
    %2452 = vmatprep.subr.mxu0 0.0
    %2453 = vmatpush1.xpose.msra.mxu0 0.0
    %2454 = vmatprep.subr.mxu0 0.0
    %2455 = vmatpush1.xpose.msra.mxu0 0.0
    %2456 = vmatprep.subr.mxu0 0.0
    %2457 = vmatpush1.xpose.msra.mxu0 0.0
    %2458 = vmatprep.subr.mxu0 0.0
    %2459 = vmatpush1.xpose.msra.mxu0 0.0
    %2460 = vmatprep.subr.mxu0 0.0
    %2461 = vmatpush1.xpose.msra.mxu0 0.0
    %2462 = vmatprep.subr.mxu0 0.0
    %2463 = vmatpush1.xpose.msra.mxu0 0.0
    %2464 = vmatprep.subr.mxu0 0.0
    %2465 = vmatpush1.xpose.msra.mxu0 0.0
    %2466 = vmatprep.subr.mxu0 0.0
    %2467 = vmatpush1.xpose.msra.mxu0 0.0
    %2468 = vmatprep.subr.mxu0 0.0
    %2469 = vmatpush1.xpose.msra.mxu0 0.0
    %2470 = vmatprep.subr.mxu0 0.0
    %2471 = vmatpush1.xpose.msra.mxu0 0.0
    %2472 = vmatprep.subr.mxu0 0.0
    %2473 = vmatpush1.xpose.msra.mxu0 0.0
    %2474 = vmatprep.subr.mxu0 0.0
    %2475 = vmatpush1.xpose.msra.mxu0 0.0
    %2476 = vmatprep.subr.mxu0 0.0
    %2477 = vmatpush1.xpose.msra.mxu0 0.0
    %2478 = vmatprep.subr.mxu0 0.0
    %2479 = vmatpush1.xpose.msra.mxu0 0.0
    %2480 = vmatprep.subr.mxu0 0.0
    %2481 = vmatpush1.xpose.msra.mxu0 0.0
    %2482 = vmatprep.subr.mxu0 0.0
    %2483 = vmatpush1.xpose.msra.mxu0 0.0
    %2484 = vmatprep.subr.mxu0 0.0
    %2485 = vmatpush1.xpose.msra.mxu0 0.0
    %2486 = vmatprep.subr.mxu0 0.0
    %2487 = vmatpush1.xpose.msra.mxu0 0.0
    %2488 = vmatprep.subr.mxu0 0.0
    %2489 = vmatpush1.xpose.msra.mxu0 0.0
    %2490 = vmatprep.subr.mxu0 0.0
    %2491 = vmatpush1.xpose.msra.mxu0 0.0
    %2492 = vmatprep.subr.mxu0 0.0
    %2493 = vmatpush1.xpose.msra.mxu0 0.0
    %2494 = vmatprep.subr.mxu0 0.0
    %2495 = vmatpush1.xpose.msra.mxu0 0.0
    %2496 = vmatprep.subr.mxu0 0.0
    %2497 = vmatpush1.xpose.msra.mxu0 0.0
    %2498 = vmatprep.subr.mxu0 0.0
    %2499 = vmatpush1.xpose.msra.mxu0 0.0
    %2500 = vmatprep.subr.mxu0 0.0
    %2501 = vmatpush1.xpose.msra.mxu0 0.0
    %2502 = vmatprep.mubr.f32.mxu0 0.0
    %2503 = vmatmul.mubr.f32.gmra.mrb[0].mxu0 %v2430
    %v2504 = vpop.f32.mrb[0].mxu0
    %v2505 = vadd.f32 %v195, %v2504
    %v2506 = vpop.f32.mrb[0].mxu0
    %2507 = vmatprep.mubr.f32.mxu0 0.0
    %2508 = vmatmul.mubr.f32.gmra.mrb[0].mxu0 %v2433
    %v2509 = vpop.f32.mrb[0].mxu0
    %v2510 = vadd.f32 %v196, %v2509
    %v2511 = vpop.f32.mrb[0].mxu0
    %2512 = vmatprep.mubr.f32.mxu0 0.0
    %2513 = vmatmul.mubr.f32.gmra.mrb[0].mxu0 %v2436
    %v2514 = vpop.f32.mrb[0].mxu0
    %v2515 = vadd.f32 %v197, %v2514
    %v2516 = vpop.f32.mrb[0].mxu0
    %2517 = vdwg.mxu0
    %v2518 = vsel %vm599, %v2505, -inf
    %2519 = vmax.xlane.f32.xlu0 %v2518
    %v2520 = vpop.xlane.xlu0 %2519
    %v2521 = vsel %vm599, %v2510, -inf
    %2522 = vmax.xlane.f32.xlu0 %v2521
    %v2523 = vpop.xlane.xlu0 %2522
    %v2524 = vsel %vm606, %v2515, -inf
    %2525 = vmax.xlane.f32.xlu0 %v2524
    %v2526 = vpop.xlane.xlu0 %2525
    %v2527 = vsub.f32 %v2505, %v2520
    %v2528 = vsub.f32 %v2510, %v2523
    %v2529 = vsub.f32 %v2515, %v2526
    %v2530 = vmul.f32 %v2527, 1.442695
    %v2531 = vpow.pop %v2530
    %v2532 = vmul.f32 %v2528, 1.442695
    %v2533 = vpow.pop %v2532
    %v2534 = vmul.f32 %v2529, 1.442695
    %v2535 = vpow.pop %v2534
    %v2536 = vsel %vm599, %v2531, 0.0
    %2537 = vadd.xlane.f32.xlu0 %v2536
    %v2538 = vpop.xlane.xlu0 %2537
    %v2539 = vsel %vm599, %v2533, 0.0
    %2540 = vadd.xlane.f32.xlu0 %v2539
    %v2541 = vpop.xlane.xlu0 %2540
    %v2542 = vsel %vm606, %v2535, 0.0
    %2543 = vadd.xlane.f32.xlu0 %v2542
    %v2544 = vpop.xlane.xlu0 %2543
    %v2545 = vmul.f32 %v2175, %v207
    %v2546 = vmul.f32 %v2180, %v207
    %v2547 = vmul.f32 %v2185, %v207
    %v2549 = vsel %vm599, %v2531, 0
    %v2552 = vsel %vm599, %v2533, 0
    %v2555 = vsel %vm599, %v2535, 0
    %v2558 = vsel %vm640, %v2547, 0
    %2560 = vmatprep.subr.mxu0 0.0
    %2561 = vmatpush1.msra.mxu0 %v2545
    %2562 = vmatprep.subr.mxu0 0.0
    %2563 = vmatpush1.msra.mxu0 %v2546
    %2564 = vmatprep.subr.mxu0 0.0
    %2565 = vmatpush1.msra.mxu0 %v2558
    %2566 = vmatprep.subr.mxu0 0.0
    %2567 = vmatpush1.msra.mxu0 0.0
    %2568 = vmatprep.subr.mxu0 0.0
    %2569 = vmatpush1.msra.mxu0 0.0
    %2570 = vmatprep.subr.mxu0 0.0
    %2571 = vmatpush1.msra.mxu0 0.0
    %2572 = vmatprep.subr.mxu0 0.0
    %2573 = vmatpush1.msra.mxu0 0.0
    %2574 = vmatprep.subr.mxu0 0.0
    %2575 = vmatpush1.msra.mxu0 0.0
    %2576 = vmatprep.subr.mxu0 0.0
    %2577 = vmatpush1.msra.mxu0 0.0
    %2578 = vmatprep.subr.mxu0 0.0
    %2579 = vmatpush1.msra.mxu0 0.0
    %2580 = vmatprep.subr.mxu0 0.0
    %2581 = vmatpush1.msra.mxu0 0.0
    %2582 = vmatprep.subr.mxu0 0.0
    %2583 = vmatpush1.msra.mxu0 0.0
    %2584 = vmatprep.subr.mxu0 0.0
    %2585 = vmatpush1.msra.mxu0 0.0
    %2586 = vmatprep.subr.mxu0 0.0
    %2587 = vmatpush1.msra.mxu0 0.0
    %2588 = vmatprep.subr.mxu0 0.0
    %2589 = vmatpush1.msra.mxu0 0.0
    %2590 = vmatprep.subr.mxu0 0.0
    %2591 = vmatpush1.msra.mxu0 0.0
    %2592 = vmatprep.subr.mxu0 0.0
    %2593 = vmatpush1.msra.mxu0 0.0
    %2594 = vmatprep.subr.mxu0 0.0
    %2595 = vmatpush1.msra.mxu0 0.0
    %2596 = vmatprep.subr.mxu0 0.0
    %2597 = vmatpush1.msra.mxu0 0.0
    %2598 = vmatprep.subr.mxu0 0.0
    %2599 = vmatpush1.msra.mxu0 0.0
    %2600 = vmatprep.subr.mxu0 0.0
    %2601 = vmatpush1.msra.mxu0 0.0
    %2602 = vmatprep.subr.mxu0 0.0
    %2603 = vmatpush1.msra.mxu0 0.0
    %2604 = vmatprep.subr.mxu0 0.0
    %2605 = vmatpush1.msra.mxu0 0.0
    %2606 = vmatprep.subr.mxu0 0.0
    %2607 = vmatpush1.msra.mxu0 0.0
    %2608 = vmatprep.subr.mxu0 0.0
    %2609 = vmatpush1.msra.mxu0 0.0
    %2610 = vmatprep.subr.mxu0 0.0
    %2611 = vmatpush1.msra.mxu0 0.0
    %2612 = vmatprep.subr.mxu0 0.0
    %2613 = vmatpush1.msra.mxu0 0.0
    %2614 = vmatprep.subr.mxu0 0.0
    %2615 = vmatpush1.msra.mxu0 0.0
    %2616 = vmatprep.subr.mxu0 0.0
    %2617 = vmatpush1.msra.mxu0 0.0
    %2618 = vmatprep.subr.mxu0 0.0
    %2619 = vmatpush1.msra.mxu0 0.0
    %2620 = vmatprep.subr.mxu0 0.0
    %2621 = vmatpush1.msra.mxu0 0.0
    %2622 = vmatprep.subr.mxu0 0.0
    %2623 = vmatpush1.msra.mxu0 0.0
    %2624 = vmatprep.mubr.f32.mxu0 0.0
    %2625 = vmatmul.mubr.f32.gmra.mrb[0].mxu0 %v2549
    %v2626 = vpop.f32.mrb[0].mxu0
    %v2627 = vadd.f32 0.0, %v2626
    %v2628 = vpop.f32.mrb[0].mxu0
    %2629 = vmatprep.mubr.f32.mxu0 0.0
    %2630 = vmatmul.mubr.f32.gmra.mrb[0].mxu0 %v2552
    %v2631 = vpop.f32.mrb[0].mxu0
    %v2632 = vadd.f32 0.0, %v2631
    %v2633 = vpop.f32.mrb[0].mxu0
    %2634 = vmatprep.mubr.f32.mxu0 0.0
    %2635 = vmatmul.mubr.f32.gmra.mrb[0].mxu0 %v2555
    %v2636 = vpop.f32.mrb[0].mxu0
    %v2637 = vadd.f32 0.0, %v2636
    %v2638 = vpop.f32.mrb[0].mxu0
    %2639 = vdwg.mxu0
    %v2640 = vrcp.pop %v2538
    %v2641 = vmul.f32 1.0, %v2640
    %v2642 = vrcp.pop %v2541
    %v2643 = vmul.f32 1.0, %v2642
    %v2644 = vrcp.pop %v2544
    %v2645 = vmul.f32 1.0, %v2644
    %v2646 = vmul.f32 %v2627, %v2641
    %v2647 = vmul.f32 %v2632, %v2643
    %v2648 = vmul.f32 %v2637, %v2645
    %v2649 = vadd.f32 %v2423, %v2646
    %v2650 = vadd.f32 %v2424, %v2647
    %v2651 = vadd.f32 %v2425, %v2648
    %v2652 = vmul.f32 %v2188, %v212
    %v2653 = vmul.f32 %v2189, %v212
    %v2654 = vmul.f32 %v2190, %v212
    %v2656 = vsel %vm227, %v2652, 0
    %v2659 = vsel %vm227, %v2653, 0
    %v2662 = vsel %vm227, %v2654, 0
    %2664 = vmatprep.subr.mxu0 0.0
    %2665 = vmatpush1.xpose.msra.mxu0 %v2204
    %2666 = vmatprep.subr.mxu0 0.0
    %2667 = vmatpush1.xpose.msra.mxu0 %v2207
    %2668 = vmatprep.subr.mxu0 0.0
    %2669 = vmatpush1.xpose.msra.mxu0 %v2210
    %2670 = vmatprep.subr.mxu0 0.0
    %2671 = vmatpush1.xpose.msra.mxu0 0.0
    %2672 = vmatprep.subr.mxu0 0.0
    %2673 = vmatpush1.xpose.msra.mxu0 0.0
    %2674 = vmatprep.subr.mxu0 0.0
    %2675 = vmatpush1.xpose.msra.mxu0 0.0
    %2676 = vmatprep.subr.mxu0 0.0
    %2677 = vmatpush1.xpose.msra.mxu0 0.0
    %2678 = vmatprep.subr.mxu0 0.0
    %2679 = vmatpush1.xpose.msra.mxu0 0.0
    %2680 = vmatprep.subr.mxu0 0.0
    %2681 = vmatpush1.xpose.msra.mxu0 0.0
    %2682 = vmatprep.subr.mxu0 0.0
    %2683 = vmatpush1.xpose.msra.mxu0 0.0
    %2684 = vmatprep.subr.mxu0 0.0
    %2685 = vmatpush1.xpose.msra.mxu0 0.0
    %2686 = vmatprep.subr.mxu0 0.0
    %2687 = vmatpush1.xpose.msra.mxu0 0.0
    %2688 = vmatprep.subr.mxu0 0.0
    %2689 = vmatpush1.xpose.msra.mxu0 0.0
    %2690 = vmatprep.subr.mxu0 0.0
    %2691 = vmatpush1.xpose.msra.mxu0 0.0
    %2692 = vmatprep.subr.mxu0 0.0
    %2693 = vmatpush1.xpose.msra.mxu0 0.0
    %2694 = vmatprep.subr.mxu0 0.0
    %2695 = vmatpush1.xpose.msra.mxu0 0.0
    %2696 = vmatprep.subr.mxu0 0.0
    %2697 = vmatpush1.xpose.msra.mxu0 0.0
    %2698 = vmatprep.subr.mxu0 0.0
    %2699 = vmatpush1.xpose.msra.mxu0 0.0
    %2700 = vmatprep.subr.mxu0 0.0
    %2701 = vmatpush1.xpose.msra.mxu0 0.0
    %2702 = vmatprep.subr.mxu0 0.0
    %2703 = vmatpush1.xpose.msra.mxu0 0.0
    %2704 = vmatprep.subr.mxu0 0.0
    %2705 = vmatpush1.xpose.msra.mxu0 0.0
    %2706 = vmatprep.subr.mxu0 0.0
    %2707 = vmatpush1.xpose.msra.mxu0 0.0
    %2708 = vmatprep.subr.mxu0 0.0
    %2709 = vmatpush1.xpose.msra.mxu0 0.0
    %2710 = vmatprep.subr.mxu0 0.0
    %2711 = vmatpush1.xpose.msra.mxu0 0.0
    %2712 = vmatprep.subr.mxu0 0.0
    %2713 = vmatpush1.xpose.msra.mxu0 0.0
    %2714 = vmatprep.subr.mxu0 0.0
    %2715 = vmatpush1.xpose.msra.mxu0 0.0
    %2716 = vmatprep.subr.mxu0 0.0
    %2717 = vmatpush1.xpose.msra.mxu0 0.0
    %2718 = vmatprep.subr.mxu0 0.0
    %2719 = vmatpush1.xpose.msra.mxu0 0.0
    %2720 = vmatprep.subr.mxu0 0.0
    %2721 = vmatpush1.xpose.msra.mxu0 0.0
    %2722 = vmatprep.subr.mxu0 0.0
    %2723 = vmatpush1.xpose.msra.mxu0 0.0
    %2724 = vmatprep.subr.mxu0 0.0
    %2725 = vmatpush1.xpose.msra.mxu0 0.0
    %2726 = vmatprep.subr.mxu0 0.0
    %2727 = vmatpush1.xpose.msra.mxu0 0.0
    %2728 = vmatprep.mubr.f32.mxu0 0.0
    %2729 = vmatmul.mubr.f32.gmra.mrb[0].mxu0 %v2656
    %v2730 = vpop.f32.mrb[0].mxu0
    %v2731 = vadd.f32 %v195, %v2730
    %v2732 = vpop.f32.mrb[0].mxu0
    %2733 = vmatprep.mubr.f32.mxu0 0.0
    %2734 = vmatmul.mubr.f32.gmra.mrb[0].mxu0 %v2659
    %v2735 = vpop.f32.mrb[0].mxu0
    %v2736 = vadd.f32 %v196, %v2735
    %v2737 = vpop.f32.mrb[0].mxu0
    %2738 = vmatprep.mubr.f32.mxu0 0.0
    %2739 = vmatmul.mubr.f32.gmra.mrb[0].mxu0 %v2662
    %v2740 = vpop.f32.mrb[0].mxu0
    %v2741 = vadd.f32 %v197, %v2740
    %v2742 = vpop.f32.mrb[0].mxu0
    %2743 = vdwg.mxu0
    %v2744 = vsel %vm599, %v2731, -inf
    %2745 = vmax.xlane.f32.xlu0 %v2744
    %v2746 = vpop.xlane.xlu0 %2745
    %v2747 = vsel %vm599, %v2736, -inf
    %2748 = vmax.xlane.f32.xlu0 %v2747
    %v2749 = vpop.xlane.xlu0 %2748
    %v2750 = vsel %vm606, %v2741, -inf
    %2751 = vmax.xlane.f32.xlu0 %v2750
    %v2752 = vpop.xlane.xlu0 %2751
    %v2753 = vsub.f32 %v2731, %v2746
    %v2754 = vsub.f32 %v2736, %v2749
    %v2755 = vsub.f32 %v2741, %v2752
    %v2756 = vmul.f32 %v2753, 1.442695
    %v2757 = vpow.pop %v2756
    %v2758 = vmul.f32 %v2754, 1.442695
    %v2759 = vpow.pop %v2758
    %v2760 = vmul.f32 %v2755, 1.442695
    %v2761 = vpow.pop %v2760
    %v2762 = vsel %vm599, %v2757, 0.0
    %2763 = vadd.xlane.f32.xlu0 %v2762
    %v2764 = vpop.xlane.xlu0 %2763
    %v2765 = vsel %vm599, %v2759, 0.0
    %2766 = vadd.xlane.f32.xlu0 %v2765
    %v2767 = vpop.xlane.xlu0 %2766
    %v2768 = vsel %vm606, %v2761, 0.0
    %2769 = vadd.xlane.f32.xlu0 %v2768
    %v2770 = vpop.xlane.xlu0 %2769
    %v2771 = vmul.f32 %v2175, %v212
    %v2772 = vmul.f32 %v2180, %v212
    %v2773 = vmul.f32 %v2185, %v212
    %v2775 = vsel %vm599, %v2757, 0
    %v2778 = vsel %vm599, %v2759, 0
    %v2781 = vsel %vm599, %v2761, 0
    %v2784 = vsel %vm640, %v2773, 0
    %2786 = vmatprep.subr.mxu0 0.0
    %2787 = vmatpush1.msra.mxu0 %v2771
    %2788 = vmatprep.subr.mxu0 0.0
    %2789 = vmatpush1.msra.mxu0 %v2772
    %2790 = vmatprep.subr.mxu0 0.0
    %2791 = vmatpush1.msra.mxu0 %v2784
    %2792 = vmatprep.subr.mxu0 0.0
    %2793 = vmatpush1.msra.mxu0 0.0
    %2794 = vmatprep.subr.mxu0 0.0
    %2795 = vmatpush1.msra.mxu0 0.0
    %2796 = vmatprep.subr.mxu0 0.0
    %2797 = vmatpush1.msra.mxu0 0.0
    %2798 = vmatprep.subr.mxu0 0.0
    %2799 = vmatpush1.msra.mxu0 0.0
    %2800 = vmatprep.subr.mxu0 0.0
    %2801 = vmatpush1.msra.mxu0 0.0
    %2802 = vmatprep.subr.mxu0 0.0
    %2803 = vmatpush1.msra.mxu0 0.0
    %2804 = vmatprep.subr.mxu0 0.0
    %2805 = vmatpush1.msra.mxu0 0.0
    %2806 = vmatprep.subr.mxu0 0.0
    %2807 = vmatpush1.msra.mxu0 0.0
    %2808 = vmatprep.subr.mxu0 0.0
    %2809 = vmatpush1.msra.mxu0 0.0
    %2810 = vmatprep.subr.mxu0 0.0
    %2811 = vmatpush1.msra.mxu0 0.0
    %2812 = vmatprep.subr.mxu0 0.0
    %2813 = vmatpush1.msra.mxu0 0.0
    %2814 = vmatprep.subr.mxu0 0.0
    %2815 = vmatpush1.msra.mxu0 0.0
    %2816 = vmatprep.subr.mxu0 0.0
    %2817 = vmatpush1.msra.mxu0 0.0
    %2818 = vmatprep.subr.mxu0 0.0
    %2819 = vmatpush1.msra.mxu0 0.0
    %2820 = vmatprep.subr.mxu0 0.0
    %2821 = vmatpush1.msra.mxu0 0.0
    %2822 = vmatprep.subr.mxu0 0.0
    %2823 = vmatpush1.msra.mxu0 0.0
    %2824 = vmatprep.subr.mxu0 0.0
    %2825 = vmatpush1.msra.mxu0 0.0
    %2826 = vmatprep.subr.mxu0 0.0
    %2827 = vmatpush1.msra.mxu0 0.0
    %2828 = vmatprep.subr.mxu0 0.0
    %2829 = vmatpush1.msra.mxu0 0.0
    %2830 = vmatprep.subr.mxu0 0.0
    %2831 = vmatpush1.msra.mxu0 0.0
    %2832 = vmatprep.subr.mxu0 0.0
    %2833 = vmatpush1.msra.mxu0 0.0
    %2834 = vmatprep.subr.mxu0 0.0
    %2835 = vmatpush1.msra.mxu0 0.0
    %2836 = vmatprep.subr.mxu0 0.0
    %2837 = vmatpush1.msra.mxu0 0.0
    %2838 = vmatprep.subr.mxu0 0.0
    %2839 = vmatpush1.msra.mxu0 0.0
    %2840 = vmatprep.subr.mxu0 0.0
    %2841 = vmatpush1.msra.mxu0 0.0
    %2842 = vmatprep.subr.mxu0 0.0
    %2843 = vmatpush1.msra.mxu0 0.0
    %2844 = vmatprep.subr.mxu0 0.0
    %2845 = vmatpush1.msra.mxu0 0.0
    %2846 = vmatprep.subr.mxu0 0.0
    %2847 = vmatpush1.msra.mxu0 0.0
    %2848 = vmatprep.subr.mxu0 0.0
    %2849 = vmatpush1.msra.mxu0 0.0
    %2850 = vmatprep.mubr.f32.mxu0 0.0
    %2851 = vmatmul.mubr.f32.gmra.mrb[0].mxu0 %v2775
    %v2852 = vpop.f32.mrb[0].mxu0
    %v2853 = vadd.f32 0.0, %v2852
    %v2854 = vpop.f32.mrb[0].mxu0
    %2855 = vmatprep.mubr.f32.mxu0 0.0
    %2856 = vmatmul.mubr.f32.gmra.mrb[0].mxu0 %v2778
    %v2857 = vpop.f32.mrb[0].mxu0
    %v2858 = vadd.f32 0.0, %v2857
    %v2859 = vpop.f32.mrb[0].mxu0
    %2860 = vmatprep.mubr.f32.mxu0 0.0
    %2861 = vmatmul.mubr.f32.gmra.mrb[0].mxu0 %v2781
    %v2862 = vpop.f32.mrb[0].mxu0
    %v2863 = vadd.f32 0.0, %v2862
    %v2864 = vpop.f32.mrb[0].mxu0
    %2865 = vdwg.mxu0
    %v2866 = vrcp.pop %v2764
    %v2867 = vmul.f32 1.0, %v2866
    %v2868 = vrcp.pop %v2767
    %v2869 = vmul.f32 1.0, %v2868
    %v2870 = vrcp.pop %v2770
    %v2871 = vmul.f32 1.0, %v2870
    %v2872 = vmul.f32 %v2853, %v2867
    %v2873 = vmul.f32 %v2858, %v2869
    %v2874 = vmul.f32 %v2863, %v2871
    %v2875 = vadd.f32 %v2649, %v2872
    %v2876 = vadd.f32 %v2650, %v2873
    %v2877 = vadd.f32 %v2651, %v2874
    %v2878 = vmul.f32 %v2188, %v217
    %v2879 = vmul.f32 %v2189, %v217
    %v2880 = vmul.f32 %v2190, %v217
    %v2882 = vsel %vm227, %v2878, 0
    %v2885 = vsel %vm227, %v2879, 0
    %v2888 = vsel %vm227, %v2880, 0
    %2890 = vmatprep.subr.mxu0 0.0
    %2891 = vmatpush1.xpose.msra.mxu0 %v2204
    %2892 = vmatprep.subr.mxu0 0.0
    %2893 = vmatpush1.xpose.msra.mxu0 %v2207
    %2894 = vmatprep.subr.mxu0 0.0
    %2895 = vmatpush1.xpose.msra.mxu0 %v2210
    %2896 = vmatprep.subr.mxu0 0.0
    %2897 = vmatpush1.xpose.msra.mxu0 0.0
    %2898 = vmatprep.subr.mxu0 0.0
    %2899 = vmatpush1.xpose.msra.mxu0 0.0
    %2900 = vmatprep.subr.mxu0 0.0
    %2901 = vmatpush1.xpose.msra.mxu0 0.0
    %2902 = vmatprep.subr.mxu0 0.0
    %2903 = vmatpush1.xpose.msra.mxu0 0.0
    %2904 = vmatprep.subr.mxu0 0.0
    %2905 = vmatpush1.xpose.msra.mxu0 0.0
    %2906 = vmatprep.subr.mxu0 0.0
    %2907 = vmatpush1.xpose.msra.mxu0 0.0
    %2908 = vmatprep.subr.mxu0 0.0
    %2909 = vmatpush1.xpose.msra.mxu0 0.0
    %2910 = vmatprep.subr.mxu0 0.0
    %2911 = vmatpush1.xpose.msra.mxu0 0.0
    %2912 = vmatprep.subr.mxu0 0.0
    %2913 = vmatpush1.xpose.msra.mxu0 0.0
    %2914 = vmatprep.subr.mxu0 0.0
    %2915 = vmatpush1.xpose.msra.mxu0 0.0
    %2916 = vmatprep.subr.mxu0 0.0
    %2917 = vmatpush1.xpose.msra.mxu0 0.0
    %2918 = vmatprep.subr.mxu0 0.0
    %2919 = vmatpush1.xpose.msra.mxu0 0.0
    %2920 = vmatprep.subr.mxu0 0.0
    %2921 = vmatpush1.xpose.msra.mxu0 0.0
    %2922 = vmatprep.subr.mxu0 0.0
    %2923 = vmatpush1.xpose.msra.mxu0 0.0
    %2924 = vmatprep.subr.mxu0 0.0
    %2925 = vmatpush1.xpose.msra.mxu0 0.0
    %2926 = vmatprep.subr.mxu0 0.0
    %2927 = vmatpush1.xpose.msra.mxu0 0.0
    %2928 = vmatprep.subr.mxu0 0.0
    %2929 = vmatpush1.xpose.msra.mxu0 0.0
    %2930 = vmatprep.subr.mxu0 0.0
    %2931 = vmatpush1.xpose.msra.mxu0 0.0
    %2932 = vmatprep.subr.mxu0 0.0
    %2933 = vmatpush1.xpose.msra.mxu0 0.0
    %2934 = vmatprep.subr.mxu0 0.0
    %2935 = vmatpush1.xpose.msra.mxu0 0.0
    %2936 = vmatprep.subr.mxu0 0.0
    %2937 = vmatpush1.xpose.msra.mxu0 0.0
    %2938 = vmatprep.subr.mxu0 0.0
    %2939 = vmatpush1.xpose.msra.mxu0 0.0
    %2940 = vmatprep.subr.mxu0 0.0
    %2941 = vmatpush1.xpose.msra.mxu0 0.0
    %2942 = vmatprep.subr.mxu0 0.0
    %2943 = vmatpush1.xpose.msra.mxu0 0.0
    %2944 = vmatprep.subr.mxu0 0.0
    %2945 = vmatpush1.xpose.msra.mxu0 0.0
    %2946 = vmatprep.subr.mxu0 0.0
    %2947 = vmatpush1.xpose.msra.mxu0 0.0
    %2948 = vmatprep.subr.mxu0 0.0
    %2949 = vmatpush1.xpose.msra.mxu0 0.0
    %2950 = vmatprep.subr.mxu0 0.0
    %2951 = vmatpush1.xpose.msra.mxu0 0.0
    %2952 = vmatprep.subr.mxu0 0.0
    %2953 = vmatpush1.xpose.msra.mxu0 0.0
    %2954 = vmatprep.mubr.f32.mxu0 0.0
    %2955 = vmatmul.mubr.f32.gmra.mrb[0].mxu0 %v2882
    %v2956 = vpop.f32.mrb[0].mxu0
    %v2957 = vadd.f32 %v195, %v2956
    %v2958 = vpop.f32.mrb[0].mxu0
    %2959 = vmatprep.mubr.f32.mxu0 0.0
    %2960 = vmatmul.mubr.f32.gmra.mrb[0].mxu0 %v2885
    %v2961 = vpop.f32.mrb[0].mxu0
    %v2962 = vadd.f32 %v196, %v2961
    %v2963 = vpop.f32.mrb[0].mxu0
    %2964 = vmatprep.mubr.f32.mxu0 0.0
    %2965 = vmatmul.mubr.f32.gmra.mrb[0].mxu0 %v2888
    %v2966 = vpop.f32.mrb[0].mxu0
    %v2967 = vadd.f32 %v197, %v2966
    %v2968 = vpop.f32.mrb[0].mxu0
    %2969 = vdwg.mxu0
    %v2970 = vsel %vm599, %v2957, -inf
    %2971 = vmax.xlane.f32.xlu0 %v2970
    %v2972 = vpop.xlane.xlu0 %2971
    %v2973 = vsel %vm599, %v2962, -inf
    %2974 = vmax.xlane.f32.xlu0 %v2973
    %v2975 = vpop.xlane.xlu0 %2974
    %v2976 = vsel %vm606, %v2967, -inf
    %2977 = vmax.xlane.f32.xlu0 %v2976
    %v2978 = vpop.xlane.xlu0 %2977
    %v2979 = vsub.f32 %v2957, %v2972
    %v2980 = vsub.f32 %v2962, %v2975
    %v2981 = vsub.f32 %v2967, %v2978
    %v2982 = vmul.f32 %v2979, 1.442695
    %v2983 = vpow.pop %v2982
    %v2984 = vmul.f32 %v2980, 1.442695
    %v2985 = vpow.pop %v2984
    %v2986 = vmul.f32 %v2981, 1.442695
    %v2987 = vpow.pop %v2986
    %v2988 = vsel %vm599, %v2983, 0.0
    %2989 = vadd.xlane.f32.xlu0 %v2988
    %v2990 = vpop.xlane.xlu0 %2989
    %v2991 = vsel %vm599, %v2985, 0.0
    %2992 = vadd.xlane.f32.xlu0 %v2991
    %v2993 = vpop.xlane.xlu0 %2992
    %v2994 = vsel %vm606, %v2987, 0.0
    %2995 = vadd.xlane.f32.xlu0 %v2994
    %v2996 = vpop.xlane.xlu0 %2995
    %v2997 = vmul.f32 %v2175, %v217
    %v2998 = vmul.f32 %v2180, %v217
    %v2999 = vmul.f32 %v2185, %v217
    %v3001 = vsel %vm599, %v2983, 0
    %v3004 = vsel %vm599, %v2985, 0
    %v3007 = vsel %vm599, %v2987, 0
    %v3010 = vsel %vm640, %v2999, 0
    %3012 = vmatprep.subr.mxu0 0.0
    %3013 = vmatpush1.msra.mxu0 %v2997
    %3014 = vmatprep.subr.mxu0 0.0
    %3015 = vmatpush1.msra.mxu0 %v2998
    %3016 = vmatprep.subr.mxu0 0.0
    %3017 = vmatpush1.msra.mxu0 %v3010
    %3018 = vmatprep.subr.mxu0 0.0
    %3019 = vmatpush1.msra.mxu0 0.0
    %3020 = vmatprep.subr.mxu0 0.0
    %3021 = vmatpush1.msra.mxu0 0.0
    %3022 = vmatprep.subr.mxu0 0.0
    %3023 = vmatpush1.msra.mxu0 0.0
    %3024 = vmatprep.subr.mxu0 0.0
    %3025 = vmatpush1.msra.mxu0 0.0
    %3026 = vmatprep.subr.mxu0 0.0
    %3027 = vmatpush1.msra.mxu0 0.0
    %3028 = vmatprep.subr.mxu0 0.0
    %3029 = vmatpush1.msra.mxu0 0.0
    %3030 = vmatprep.subr.mxu0 0.0
    %3031 = vmatpush1.msra.mxu0 0.0
    %3032 = vmatprep.subr.mxu0 0.0
    %3033 = vmatpush1.msra.mxu0 0.0
    %3034 = vmatprep.subr.mxu0 0.0
    %3035 = vmatpush1.msra.mxu0 0.0
    %3036 = vmatprep.subr.mxu0 0.0
    %3037 = vmatpush1.msra.mxu0 0.0
    %3038 = vmatprep.subr.mxu0 0.0
    %3039 = vmatpush1.msra.mxu0 0.0
    %3040 = vmatprep.subr.mxu0 0.0
    %3041 = vmatpush1.msra.mxu0 0.0
    %3042 = vmatprep.subr.mxu0 0.0
    %3043 = vmatpush1.msra.mxu0 0.0
    %3044 = vmatprep.subr.mxu0 0.0
    %3045 = vmatpush1.msra.mxu0 0.0
    %3046 = vmatprep.subr.mxu0 0.0
    %3047 = vmatpush1.msra.mxu0 0.0
    %3048 = vmatprep.subr.mxu0 0.0
    %3049 = vmatpush1.msra.mxu0 0.0
    %3050 = vmatprep.subr.mxu0 0.0
    %3051 = vmatpush1.msra.mxu0 0.0
    %3052 = vmatprep.subr.mxu0 0.0
    %3053 = vmatpush1.msra.mxu0 0.0
    %3054 = vmatprep.subr.mxu0 0.0
    %3055 = vmatpush1.msra.mxu0 0.0
    %3056 = vmatprep.subr.mxu0 0.0
    %3057 = vmatpush1.msra.mxu0 0.0
    %3058 = vmatprep.subr.mxu0 0.0
    %3059 = vmatpush1.msra.mxu0 0.0
    %3060 = vmatprep.subr.mxu0 0.0
    %3061 = vmatpush1.msra.mxu0 0.0
    %3062 = vmatprep.subr.mxu0 0.0
    %3063 = vmatpush1.msra.mxu0 0.0
    %3064 = vmatprep.subr.mxu0 0.0
    %3065 = vmatpush1.msra.mxu0 0.0
    %3066 = vmatprep.subr.mxu0 0.0
    %3067 = vmatpush1.msra.mxu0 0.0
    %3068 = vmatprep.subr.mxu0 0.0
    %3069 = vmatpush1.msra.mxu0 0.0
    %3070 = vmatprep.subr.mxu0 0.0
    %3071 = vmatpush1.msra.mxu0 0.0
    %3072 = vmatprep.subr.mxu0 0.0
    %3073 = vmatpush1.msra.mxu0 0.0
    %3074 = vmatprep.subr.mxu0 0.0
    %3075 = vmatpush1.msra.mxu0 0.0
    %3076 = vmatprep.mubr.f32.mxu0 0.0
    %3077 = vmatmul.mubr.f32.gmra.mrb[0].mxu0 %v3001
    %v3078 = vpop.f32.mrb[0].mxu0
    %v3079 = vadd.f32 0.0, %v3078
    %v3080 = vpop.f32.mrb[0].mxu0
    %3081 = vmatprep.mubr.f32.mxu0 0.0
    %3082 = vmatmul.mubr.f32.gmra.mrb[0].mxu0 %v3004
    %v3083 = vpop.f32.mrb[0].mxu0
    %v3084 = vadd.f32 0.0, %v3083
    %v3085 = vpop.f32.mrb[0].mxu0
    %3086 = vmatprep.mubr.f32.mxu0 0.0
    %3087 = vmatmul.mubr.f32.gmra.mrb[0].mxu0 %v3007
    %v3088 = vpop.f32.mrb[0].mxu0
    %v3089 = vadd.f32 0.0, %v3088
    %v3090 = vpop.f32.mrb[0].mxu0
    %3091 = vdwg.mxu0
    %v3092 = vrcp.pop %v2990
    %v3093 = vmul.f32 1.0, %v3092
    %v3094 = vrcp.pop %v2993
    %v3095 = vmul.f32 1.0, %v3094
    %v3096 = vrcp.pop %v2996
    %v3097 = vmul.f32 1.0, %v3096
    %v3098 = vmul.f32 %v3079, %v3093
    %v3099 = vmul.f32 %v3084, %v3095
    %v3100 = vmul.f32 %v3089, %v3097
    %v3101 = vadd.f32 %v2875, %v3098
    %v3102 = vadd.f32 %v2876, %v3099
    %v3103 = vadd.f32 %v2877, %v3100
    %v3104 = vld [vmem:[#allocation5 + $0x1b8] sm:$0xff]
    %v3105 = vld [vmem:[#allocation5 + $0x1c0] sm:$0xff]
    %v3106 = vld [vmem:[#allocation5 + $0x1c8] sm:$0xff]
    %v3107 = vld [vmem:[#allocation5 + $0x1d0] sm:$0xff]
    %v3108 = vld [vmem:[#allocation5 + $0x250] sm:$0x1]
    %v3109 = vlaneseq
    %v3110 = vshrl.u32 %v3109, 7
    %v3111 = vsub.s32 0, %v3110
    %v3112 = vrot.slane %v3108, %v3111
    %v3114 = vsel %vm227, %v3101, 0
    %v3117 = vsel %vm227, %v3102, 0
    %v3120 = vsel %vm227, %v3103, 0
    %3122 = vmatprep.subr.mxu0 0.0
    %3123 = vmatpush1.msra.mxu0 %v3104
    %3124 = vmatprep.subr.mxu0 0.0
    %3125 = vmatpush1.msra.mxu0 %v3105
    %3126 = vmatprep.subr.mxu0 0.0
    %3127 = vmatpush1.msra.mxu0 %v3106
    %3128 = vmatprep.subr.mxu0 0.0
    %3129 = vmatpush1.msra.mxu0 %v3107
    %3130 = vmatprep.subr.mxu0 0.0
    %3131 = vmatpush1.msra.mxu0 0.0
    %3132 = vmatprep.subr.mxu0 0.0
    %3133 = vmatpush1.msra.mxu0 0.0
    %3134 = vmatprep.subr.mxu0 0.0
    %3135 = vmatpush1.msra.mxu0 0.0
    %3136 = vmatprep.subr.mxu0 0.0
    %3137 = vmatpush1.msra.mxu0 0.0
    %3138 = vmatprep.subr.mxu0 0.0
    %3139 = vmatpush1.msra.mxu0 0.0
    %3140 = vmatprep.subr.mxu0 0.0
    %3141 = vmatpush1.msra.mxu0 0.0
    %3142 = vmatprep.subr.mxu0 0.0
    %3143 = vmatpush1.msra.mxu0 0.0
    %3144 = vmatprep.subr.mxu0 0.0
    %3145 = vmatpush1.msra.mxu0 0.0
    %3146 = vmatprep.subr.mxu0 0.0
    %3147 = vmatpush1.msra.mxu0 0.0
    %3148 = vmatprep.subr.mxu0 0.0
    %3149 = vmatpush1.msra.mxu0 0.0
    %3150 = vmatprep.subr.mxu0 0.0
    %3151 = vmatpush1.msra.mxu0 0.0
    %3152 = vmatprep.subr.mxu0 0.0
    %3153 = vmatpush1.msra.mxu0 0.0
    %3154 = vmatprep.subr.mxu0 0.0
    %3155 = vmatpush1.msra.mxu0 0.0
    %3156 = vmatprep.subr.mxu0 0.0
    %3157 = vmatpush1.msra.mxu0 0.0
    %3158 = vmatprep.subr.mxu0 0.0
    %3159 = vmatpush1.msra.mxu0 0.0
    %3160 = vmatprep.subr.mxu0 0.0
    %3161 = vmatpush1.msra.mxu0 0.0
    %3162 = vmatprep.subr.mxu0 0.0
    %3163 = vmatpush1.msra.mxu0 0.0
    %3164 = vmatprep.subr.mxu0 0.0
    %3165 = vmatpush1.msra.mxu0 0.0
    %3166 = vmatprep.subr.mxu0 0.0
    %3167 = vmatpush1.msra.mxu0 0.0
    %3168 = vmatprep.subr.mxu0 0.0
    %3169 = vmatpush1.msra.mxu0 0.0
    %3170 = vmatprep.subr.mxu0 0.0
    %3171 = vmatpush1.msra.mxu0 0.0
    %3172 = vmatprep.subr.mxu0 0.0
    %3173 = vmatpush1.msra.mxu0 0.0
    %3174 = vmatprep.subr.mxu0 0.0
    %3175 = vmatpush1.msra.mxu0 0.0
    %3176 = vmatprep.subr.mxu0 0.0
    %3177 = vmatpush1.msra.mxu0 0.0
    %3178 = vmatprep.subr.mxu0 0.0
    %3179 = vmatpush1.msra.mxu0 0.0
    %3180 = vmatprep.subr.mxu0 0.0
    %3181 = vmatpush1.msra.mxu0 0.0
    %3182 = vmatprep.subr.mxu0 0.0
    %3183 = vmatpush1.msra.mxu0 0.0
    %3184 = vmatprep.subr.mxu0 0.0
    %3185 = vmatpush1.msra.mxu0 0.0
    %3186 = vmatprep.mubr.f32.mxu0 0.0
    %3187 = vmatmul.mubr.f32.gmra.mrb[0].mxu0 %v3114
    %v3188 = vpop.f32.mrb[0].mxu0
    %v3189 = vadd.f32 %v3112, %v3188
    %v3190 = vpop.f32.mrb[0].mxu0
    %3191 = vmatprep.mubr.f32.mxu0 0.0
    %3192 = vmatmul.mubr.f32.gmra.mrb[0].mxu0 %v3117
    %v3193 = vpop.f32.mrb[0].mxu0
    %v3194 = vadd.f32 %v3112, %v3193
    %v3195 = vpop.f32.mrb[0].mxu0
    %3196 = vmatprep.mubr.f32.mxu0 0.0
    %3197 = vmatmul.mubr.f32.gmra.mrb[0].mxu0 %v3120
    %v3198 = vpop.f32.mrb[0].mxu0
    %v3199 = vadd.f32 %v3112, %v3198
    %v3200 = vpop.f32.mrb[0].mxu0
    %3201 = vdwg.mxu0
    %v3202 = vadd.f32 %v1909, %v3189
    %v3203 = vadd.f32 %v1910, %v3194
    %v3204 = vadd.f32 %v1911, %v3199
    %v3205 = vld [vmem:[#allocation5 + $0x268] sm:$0x1]
    %v3206 = vld [vmem:[#allocation5 + $0x270] sm:$0x1]
    %v3207 = vsel %vm227, %v3202, 0.0
    %3208 = vadd.xlane.f32.xlu0 %v3207
    %v3209 = vpop.xlane.xlu0 %3208
    %v3210 = vsel %vm227, %v3203, 0.0
    %3211 = vadd.xlane.f32.xlu0 %v3210
    %v3212 = vpop.xlane.xlu0 %3211
    %v3213 = vsel %vm1523, %v3204, 0.0
    %3214 = vadd.xlane.f32.xlu0 %v3213
    %v3215 = vpop.xlane.xlu0 %3214
    %v3216 = vmul.f32 %v3209, %v1527
    %v3217 = vmul.f32 %v3212, %v1527
    %v3218 = vmul.f32 %v3215, %v1527
    %v3219 = vsub.f32 %v3202, %v3216
    %v3220 = vsub.f32 %v3203, %v3217
    %v3221 = vsub.f32 %v3204, %v3218
    %v3222 = vmul.f32 %v3219, %v3219
    %v3223 = vmul.f32 %v3220, %v3220
    %v3224 = vmul.f32 %v3221, %v3221
    %v3225 = vsel %vm227, %v3222, 0.0
    %3226 = vadd.xlane.f32.xlu0 %v3225
    %v3227 = vpop.xlane.xlu0 %3226
    %v3228 = vsel %vm227, %v3223, 0.0
    %3229 = vadd.xlane.f32.xlu0 %v3228
    %v3230 = vpop.xlane.xlu0 %3229
    %v3231 = vsel %vm1523, %v3224, 0.0
    %3232 = vadd.xlane.f32.xlu0 %v3231
    %v3233 = vpop.xlane.xlu0 %3232
    %v3234 = vmul.f32 %v3227, %v1527
    %v3235 = vmul.f32 %v3230, %v1527
    %v3236 = vmul.f32 %v3233, %v1527
    %v3237 = vadd.f32 %v3234, 1e-05
    %v3238 = vadd.f32 %v3235, 1e-05
    %v3239 = vadd.f32 %v3236, 1e-05
    %v3240 = vrsqrt.pop %v3237
    %v3241 = vrsqrt.pop %v3238
    %v3242 = vrsqrt.pop %v3239
    %v3243 = vmul.f32 %v3219, %v3240
    %v3244 = vmul.f32 %v3220, %v3241
    %v3245 = vmul.f32 %v3221, %v3242
    %v3246 = vlaneseq
    %v3247 = vshrl.u32 %v3246, 7
    %v3248 = vsub.s32 0, %v3247
    %v3249 = vrot.slane %v3205, %v3248
    %v3250 = vmul.f32 %v3243, %v3249
    %v3251 = vmul.f32 %v3244, %v3249
    %v3252 = vmul.f32 %v3245, %v3249
    %v3253 = vlaneseq
    %v3254 = vshrl.u32 %v3253, 7
    %v3255 = vsub.s32 0, %v3254
    %v3256 = vrot.slane %v3206, %v3255
    %v3257 = vadd.f32 %v3250, %v3256
    %v3258 = vadd.f32 %v3251, %v3256
    %v3259 = vadd.f32 %v3252, %v3256
    %v3260 = vld [vmem:[#allocation5 + $0x1d8] sm:$0xff]
    %v3261 = vld [vmem:[#allocation5 + $0x1e0] sm:$0xff]
    %v3262 = vld [vmem:[#allocation5 + $0x1e8] sm:$0xff]
    %v3263 = vld [vmem:[#allocation5 + $0x1f0] sm:$0xff]
    %v3264 = vld [vmem:[#allocation5 + $0x258] sm:$0x1]
    %v3265 = vlaneseq
    %v3266 = vshrl.u32 %v3265, 7
    %v3267 = vsub.s32 0, %v3266
    %v3268 = vrot.slane %v3264, %v3267
    %v3270 = vsel %vm227, %v3257, 0
    %v3273 = vsel %vm227, %v3258, 0
    %v3276 = vsel %vm227, %v3259, 0
    %3278 = vmatprep.subr.mxu0 0.0
    %3279 = vmatpush1.msra.mxu0 %v3260
    %3280 = vmatprep.subr.mxu0 0.0
    %3281 = vmatpush1.msra.mxu0 %v3261
    %3282 = vmatprep.subr.mxu0 0.0
    %3283 = vmatpush1.msra.mxu0 %v3262
    %3284 = vmatprep.subr.mxu0 0.0
    %3285 = vmatpush1.msra.mxu0 %v3263
    %3286 = vmatprep.subr.mxu0 0.0
    %3287 = vmatpush1.msra.mxu0 0.0
    %3288 = vmatprep.subr.mxu0 0.0
    %3289 = vmatpush1.msra.mxu0 0.0
    %3290 = vmatprep.subr.mxu0 0.0
    %3291 = vmatpush1.msra.mxu0 0.0
    %3292 = vmatprep.subr.mxu0 0.0
    %3293 = vmatpush1.msra.mxu0 0.0
    %3294 = vmatprep.subr.mxu0 0.0
    %3295 = vmatpush1.msra.mxu0 0.0
    %3296 = vmatprep.subr.mxu0 0.0
    %3297 = vmatpush1.msra.mxu0 0.0
    %3298 = vmatprep.subr.mxu0 0.0
    %3299 = vmatpush1.msra.mxu0 0.0
    %3300 = vmatprep.subr.mxu0 0.0
    %3301 = vmatpush1.msra.mxu0 0.0
    %3302 = vmatprep.subr.mxu0 0.0
    %3303 = vmatpush1.msra.mxu0 0.0
    %3304 = vmatprep.subr.mxu0 0.0
    %3305 = vmatpush1.msra.mxu0 0.0
    %3306 = vmatprep.subr.mxu0 0.0
    %3307 = vmatpush1.msra.mxu0 0.0
    %3308 = vmatprep.subr.mxu0 0.0
    %3309 = vmatpush1.msra.mxu0 0.0
    %3310 = vmatprep.subr.mxu0 0.0
    %3311 = vmatpush1.msra.mxu0 0.0
    %3312 = vmatprep.subr.mxu0 0.0
    %3313 = vmatpush1.msra.mxu0 0.0
    %3314 = vmatprep.subr.mxu0 0.0
    %3315 = vmatpush1.msra.mxu0 0.0
    %3316 = vmatprep.subr.mxu0 0.0
    %3317 = vmatpush1.msra.mxu0 0.0
    %3318 = vmatprep.subr.mxu0 0.0
    %3319 = vmatpush1.msra.mxu0 0.0
    %3320 = vmatprep.subr.mxu0 0.0
    %3321 = vmatpush1.msra.mxu0 0.0
    %3322 = vmatprep.subr.mxu0 0.0
    %3323 = vmatpush1.msra.mxu0 0.0
    %3324 = vmatprep.subr.mxu0 0.0
    %3325 = vmatpush1.msra.mxu0 0.0
    %3326 = vmatprep.subr.mxu0 0.0
    %3327 = vmatpush1.msra.mxu0 0.0
    %3328 = vmatprep.subr.mxu0 0.0
    %3329 = vmatpush1.msra.mxu0 0.0
    %3330 = vmatprep.subr.mxu0 0.0
    %3331 = vmatpush1.msra.mxu0 0.0
    %3332 = vmatprep.subr.mxu0 0.0
    %3333 = vmatpush1.msra.mxu0 0.0
    %3334 = vmatprep.subr.mxu0 0.0
    %3335 = vmatpush1.msra.mxu0 0.0
    %3336 = vmatprep.subr.mxu0 0.0
    %3337 = vmatpush1.msra.mxu0 0.0
    %3338 = vmatprep.subr.mxu0 0.0
    %3339 = vmatpush1.msra.mxu0 0.0
    %3340 = vmatprep.subr.mxu0 0.0
    %3341 = vmatpush1.msra.mxu0 0.0
    %3342 = vmatprep.mubr.f32.mxu0 0.0
    %3343 = vmatmul.mubr.f32.gmra.mrb[0].mxu0 %v3270
    %v3344 = vpop.f32.mrb[0].mxu0
    %v3345 = vadd.f32 %v3268, %v3344
    %v3346 = vpop.f32.mrb[0].mxu0
    %3347 = vmatprep.mubr.f32.mxu0 0.0
    %3348 = vmatmul.mubr.f32.gmra.mrb[0].mxu0 %v3273
    %v3349 = vpop.f32.mrb[0].mxu0
    %v3350 = vadd.f32 %v3268, %v3349
    %v3351 = vpop.f32.mrb[0].mxu0
    %3352 = vmatprep.mubr.f32.mxu0 0.0
    %3353 = vmatmul.mubr.f32.gmra.mrb[0].mxu0 %v3276
    %v3354 = vpop.f32.mrb[0].mxu0
    %v3355 = vadd.f32 %v3268, %v3354
    %v3356 = vpop.f32.mrb[0].mxu0
    %3357 = vdwg.mxu0
    %v3358 = vmul.f32 %v3345, 0.5
    %v3359 = vmul.f32 %v3350, 0.5
    %v3360 = vmul.f32 %v3355, 0.5
    %v3361 = vmul.f32 %v3345, 0.70710677
    %v3362 = vmul.f32 %v3350, 0.70710677
    %v3363 = vmul.f32 %v3355, 0.70710677
    %v3364 = vand.u32 2147483647, %v3361
    %v3365 = vand.u32 2147483647, %v3362
    %v3366 = vand.u32 2147483647, %v3363
    %v3367 = vmul.f32 %v3364, 0.3275911
    %v3368 = vmul.f32 %v3365, 0.3275911
    %v3369 = vmul.f32 %v3366, 0.3275911
    %v3370 = vadd.f32 %v3367, 1.0
    %v3371 = vadd.f32 %v3368, 1.0
    %v3372 = vadd.f32 %v3369, 1.0
    %v3373 = vrcp.pop %v3370
    %v3374 = vmul.f32 1.0, %v3373
    %v3375 = vrcp.pop %v3371
    %v3376 = vmul.f32 1.0, %v3375
    %v3377 = vrcp.pop %v3372
    %v3378 = vmul.f32 1.0, %v3377
    %v3379 = vmul.f32 %v3374, 1.0614054
    %v3380 = vmul.f32 %v3376, 1.0614054
    %v3381 = vmul.f32 %v3378, 1.0614054
    %v3382 = vadd.f32 %v3379, -1.4531521
    %v3383 = vadd.f32 %v3380, -1.4531521
    %v3384 = vadd.f32 %v3381, -1.4531521
    %v3385 = vmul.f32 %v3374, %v3382
    %v3386 = vmul.f32 %v3376, %v3383
    %v3387 = vmul.f32 %v3378, %v3384
    %v3388 = vadd.f32 %v3385, 1.4214138
    %v3389 = vadd.f32 %v3386, 1.4214138
    %v3390 = vadd.f32 %v3387, 1.4214138
    %v3391 = vmul.f32 %v3374, %v3388
    %v3392 = vmul.f32 %v3376, %v3389
    %v3393 = vmul.f32 %v3378, %v3390
    %v3394 = vadd.f32 %v3391, -0.28449672
    %v3395 = vadd.f32 %v3392, -0.28449672
    %v3396 = vadd.f32 %v3393, -0.28449672
    %v3397 = vmul.f32 %v3374, %v3394
    %v3398 = vmul.f32 %v3376, %v3395
    %v3399 = vmul.f32 %v3378, %v3396
    %v3400 = vadd.f32 %v3397, 0.2548296
    %v3401 = vadd.f32 %v3398, 0.2548296
    %v3402 = vadd.f32 %v3399, 0.2548296
    %v3403 = vmul.f32 %v3374, %v3400
    %v3404 = vmul.f32 %v3376, %v3401
    %v3405 = vmul.f32 %v3378, %v3402
    %v3406 = vsub.f32 0.0, %v3364
    %v3407 = vsub.f32 0.0, %v3365
    %v3408 = vsub.f32 0.0, %v3366
    %v3409 = vmul.f32 %v3406, %v3364
    %v3410 = vmul.f32 %v3407, %v3365
    %v3411 = vmul.f32 %v3408, %v3366
    %v3412 = vmul.f32 %v3409, 1.442695
    %v3413 = vpow.pop %v3412
    %v3414 = vmul.f32 %v3410, 1.442695
    %v3415 = vpow.pop %v3414
    %v3416 = vmul.f32 %v3411, 1.442695
    %v3417 = vpow.pop %v3416
    %v3418 = vmul.f32 %v3403, %v3413
    %v3419 = vmul.f32 %v3404, %v3415
    %v3420 = vmul.f32 %v3405, %v3417
    %v3421 = vsub.f32 1.0, %v3418
    %v3422 = vsub.f32 1.0, %v3419
    %v3423 = vsub.f32 1.0, %v3420
    %vm3424 = vcmp.ge.f32.partialorder %v3361, 0.0
    %vm3425 = vcmp.ge.f32.partialorder %v3362, 0.0
    %vm3426 = vcmp.ge.f32.partialorder %v3363, 0.0
    %v3427 = vsub.f32 0.0, %v3421
    %v3428 = vsub.f32 0.0, %v3422
    %v3429 = vsub.f32 0.0, %v3423
    %v3430 = vsel %vm3424, %v3421, %v3427
    %v3431 = vsel %vm3425, %v3422, %v3428
    %v3432 = vsel %vm3426, %v3423, %v3429
    %v3433 = vadd.f32 %v3430, 1.0
    %v3434 = vadd.f32 %v3431, 1.0
    %v3435 = vadd.f32 %v3432, 1.0
    %v3436 = vmul.f32 %v3358, %v3433
    %v3437 = vmul.f32 %v3359, %v3434
    %v3438 = vmul.f32 %v3360, %v3435
    %v3439 = vld [vmem:[#allocation5 + $0x1f8] sm:$0xff]
    %v3440 = vld [vmem:[#allocation5 + $0x200] sm:$0xff]
    %v3441 = vld [vmem:[#allocation5 + $0x208] sm:$0xff]
    %v3442 = vld [vmem:[#allocation5 + $0x210] sm:$0xff]
    %v3443 = vld [vmem:[#allocation5 + $0x218] sm:$0xff]
    %v3444 = vld [vmem:[#allocation5 + $0x220] sm:$0xff]
    %v3445 = vld [vmem:[#allocation5 + $0x228] sm:$0xff]
    %v3446 = vld [vmem:[#allocation5 + $0x230] sm:$0xff]
    %v3447 = vld [vmem:[#allocation5 + $0x260] sm:$0x1]
    %v3448 = vlaneseq
    %v3449 = vshrl.u32 %v3448, 7
    %v3450 = vsub.s32 0, %v3449
    %v3451 = vrot.slane %v3447, %v3450
    %v3453 = vsel %vm1764, %v3436, 0
    %v3456 = vsel %vm1764, %v3437, 0
    %v3459 = vsel %vm1764, %v3438, 0
    %3461 = vmatprep.subr.mxu0 0.0
    %3462 = vmatpush1.msra.mxu0 %v3439
    %3463 = vmatprep.subr.mxu0 0.0
    %3464 = vmatpush1.msra.mxu0 %v3440
    %3465 = vmatprep.subr.mxu0 0.0
    %3466 = vmatpush1.msra.mxu0 %v3441
    %3467 = vmatprep.subr.mxu0 0.0
    %3468 = vmatpush1.msra.mxu0 %v3442
    %3469 = vmatprep.subr.mxu0 0.0
    %3470 = vmatpush1.msra.mxu0 %v3443
    %3471 = vmatprep.subr.mxu0 0.0
    %3472 = vmatpush1.msra.mxu0 %v3444
    %3473 = vmatprep.subr.mxu0 0.0
    %3474 = vmatpush1.msra.mxu0 %v3445
    %3475 = vmatprep.subr.mxu0 0.0
    %3476 = vmatpush1.msra.mxu0 %v3446
    %3477 = vmatprep.subr.mxu0 0.0
    %3478 = vmatpush1.msra.mxu0 0.0
    %3479 = vmatprep.subr.mxu0 0.0
    %3480 = vmatpush1.msra.mxu0 0.0
    %3481 = vmatprep.subr.mxu0 0.0
    %3482 = vmatpush1.msra.mxu0 0.0
    %3483 = vmatprep.subr.mxu0 0.0
    %3484 = vmatpush1.msra.mxu0 0.0
    %3485 = vmatprep.subr.mxu0 0.0
    %3486 = vmatpush1.msra.mxu0 0.0
    %3487 = vmatprep.subr.mxu0 0.0
    %3488 = vmatpush1.msra.mxu0 0.0
    %3489 = vmatprep.subr.mxu0 0.0
    %3490 = vmatpush1.msra.mxu0 0.0
    %3491 = vmatprep.subr.mxu0 0.0
    %3492 = vmatpush1.msra.mxu0 0.0
    %3493 = vmatprep.subr.mxu0 0.0
    %3494 = vmatpush1.msra.mxu0 0.0
    %3495 = vmatprep.subr.mxu0 0.0
    %3496 = vmatpush1.msra.mxu0 0.0
    %3497 = vmatprep.subr.mxu0 0.0
    %3498 = vmatpush1.msra.mxu0 0.0
    %3499 = vmatprep.subr.mxu0 0.0
    %3500 = vmatpush1.msra.mxu0 0.0
    %3501 = vmatprep.subr.mxu0 0.0
    %3502 = vmatpush1.msra.mxu0 0.0
    %3503 = vmatprep.subr.mxu0 0.0
    %3504 = vmatpush1.msra.mxu0 0.0
    %3505 = vmatprep.subr.mxu0 0.0
    %3506 = vmatpush1.msra.mxu0 0.0
    %3507 = vmatprep.subr.mxu0 0.0
    %3508 = vmatpush1.msra.mxu0 0.0
    %3509 = vmatprep.subr.mxu0 0.0
    %3510 = vmatpush1.msra.mxu0 0.0
    %3511 = vmatprep.subr.mxu0 0.0
    %3512 = vmatpush1.msra.mxu0 0.0
    %3513 = vmatprep.subr.mxu0 0.0
    %3514 = vmatpush1.msra.mxu0 0.0
    %3515 = vmatprep.subr.mxu0 0.0
    %3516 = vmatpush1.msra.mxu0 0.0
    %3517 = vmatprep.subr.mxu0 0.0
    %3518 = vmatpush1.msra.mxu0 0.0
    %3519 = vmatprep.subr.mxu0 0.0
    %3520 = vmatpush1.msra.mxu0 0.0
    %3521 = vmatprep.subr.mxu0 0.0
    %3522 = vmatpush1.msra.mxu0 0.0
    %3523 = vmatprep.subr.mxu0 0.0
    %3524 = vmatpush1.msra.mxu0 0.0
    %3525 = vmatprep.mubr.f32.mxu0 0.0
    %3526 = vmatmul.mubr.f32.gmra.mrb[0].mxu0 %v3453
    %v3527 = vpop.f32.mrb[0].mxu0
    %v3528 = vadd.f32 %v3451, %v3527
    %v3529 = vpop.f32.mrb[0].mxu0
    %3530 = vmatprep.mubr.f32.mxu0 0.0
    %3531 = vmatmul.mubr.f32.gmra.mrb[0].mxu0 %v3456
    %v3532 = vpop.f32.mrb[0].mxu0
    %v3533 = vadd.f32 %v3451, %v3532
    %v3534 = vpop.f32.mrb[0].mxu0
    %3535 = vmatprep.mubr.f32.mxu0 0.0
    %3536 = vmatmul.mubr.f32.gmra.mrb[0].mxu0 %v3459
    %v3537 = vpop.f32.mrb[0].mxu0
    %v3538 = vadd.f32 %v3451, %v3537
    %v3539 = vpop.f32.mrb[0].mxu0
    %3540 = vdwg.mxu0
    %v3541 = vadd.f32 %v3257, %v3528
    %v3542 = vadd.f32 %v3258, %v3533
    %v3543 = vadd.f32 %v3259, %v3538
    %v3544 = vld [vmem:[#allocation5 + $0x278] sm:$0x1]
    %v3545 = vld [vmem:[#allocation5 + $0x280] sm:$0x1]
    %v3546 = vsel %vm227, %v3541, 0.0
    %3547 = vadd.xlane.f32.xlu0 %v3546
    %v3548 = vpop.xlane.xlu0 %3547
    %v3549 = vsel %vm227, %v3542, 0.0
    %3550 = vadd.xlane.f32.xlu0 %v3549
    %v3551 = vpop.xlane.xlu0 %3550
    %v3552 = vsel %vm1523, %v3543, 0.0
    %3553 = vadd.xlane.f32.xlu0 %v3552
    %v3554 = vpop.xlane.xlu0 %3553
    %v3555 = vmul.f32 %v3548, %v1527
    %v3556 = vmul.f32 %v3551, %v1527
    %v3557 = vmul.f32 %v3554, %v1527
    %v3558 = vsub.f32 %v3541, %v3555
    %v3559 = vsub.f32 %v3542, %v3556
    %v3560 = vsub.f32 %v3543, %v3557
    %v3561 = vmul.f32 %v3558, %v3558
    %v3562 = vmul.f32 %v3559, %v3559
    %v3563 = vmul.f32 %v3560, %v3560
    %v3564 = vsel %vm227, %v3561, 0.0
    %3565 = vadd.xlane.f32.xlu0 %v3564
    %v3566 = vpop.xlane.xlu0 %3565
    %v3567 = vsel %vm227, %v3562, 0.0
    %3568 = vadd.xlane.f32.xlu0 %v3567
    %v3569 = vpop.xlane.xlu0 %3568
    %v3570 = vsel %vm1523, %v3563, 0.0
    %3571 = vadd.xlane.f32.xlu0 %v3570
    %v3572 = vpop.xlane.xlu0 %3571
    %v3573 = vmul.f32 %v3566, %v1527
    %v3574 = vmul.f32 %v3569, %v1527
    %v3575 = vmul.f32 %v3572, %v1527
    %v3576 = vadd.f32 %v3573, 1e-05
    %v3577 = vadd.f32 %v3574, 1e-05
    %v3578 = vadd.f32 %v3575, 1e-05
    %v3579 = vrsqrt.pop %v3576
    %v3580 = vrsqrt.pop %v3577
    %v3581 = vrsqrt.pop %v3578
    %v3582 = vmul.f32 %v3558, %v3579
    %v3583 = vmul.f32 %v3559, %v3580
    %v3584 = vmul.f32 %v3560, %v3581
    %v3585 = vlaneseq
    %v3586 = vshrl.u32 %v3585, 7
    %v3587 = vsub.s32 0, %v3586
    %v3588 = vrot.slane %v3544, %v3587
    %v3589 = vmul.f32 %v3582, %v3588
    %v3590 = vmul.f32 %v3583, %v3588
    %v3591 = vmul.f32 %v3584, %v3588
    %v3592 = vlaneseq
    %v3593 = vshrl.u32 %v3592, 7
    %v3594 = vsub.s32 0, %v3593
    %v3595 = vrot.slane %v3545, %v3594
    %v3596 = vadd.f32 %v3589, %v3595
    %v3597 = vadd.f32 %v3590, %v3595
    %v3598 = vadd.f32 %v3591, %v3595
    %v3599 = vmul.u32 %v146, 9
    %vm3600 = vcmp.eq.s32.totalorder %v167, %v3599
    %v3601 = vsel %vm3600, 1, 0
    %v3602 = vcvt.s32.f32 %v3601
    %v3604 = vsel %vm599, %v3602, 0
    %v3607 = vsel %vm640, %v3598, 0
    %3609 = vmatprep.subr.mxu0 0.0
    %3610 = vmatpush1.msra.mxu0 %v3596
    %3611 = vmatprep.subr.mxu0 0.0
    %3612 = vmatpush1.msra.mxu0 %v3597
    %3613 = vmatprep.subr.mxu0 0.0
    %3614 = vmatpush1.msra.mxu0 %v3607
    %3615 = vmatprep.subr.mxu0 0.0
    %3616 = vmatpush1.msra.mxu0 0.0
    %3617 = vmatprep.subr.mxu0 0.0
    %3618 = vmatpush1.msra.mxu0 0.0
    %3619 = vmatprep.subr.mxu0 0.0
    %3620 = vmatpush1.msra.mxu0 0.0
    %3621 = vmatprep.subr.mxu0 0.0
    %3622 = vmatpush1.msra.mxu0 0.0
    %3623 = vmatprep.subr.mxu0 0.0
    %3624 = vmatpush1.msra.mxu0 0.0
    %3625 = vmatprep.subr.mxu0 0.0
    %3626 = vmatpush1.msra.mxu0 0.0
    %3627 = vmatprep.subr.mxu0 0.0
    %3628 = vmatpush1.msra.mxu0 0.0
    %3629 = vmatprep.subr.mxu0 0.0
    %3630 = vmatpush1.msra.mxu0 0.0
    %3631 = vmatprep.subr.mxu0 0.0
    %3632 = vmatpush1.msra.mxu0 0.0
    %3633 = vmatprep.subr.mxu0 0.0
    %3634 = vmatpush1.msra.mxu0 0.0
    %3635 = vmatprep.subr.mxu0 0.0
    %3636 = vmatpush1.msra.mxu0 0.0
    %3637 = vmatprep.subr.mxu0 0.0
    %3638 = vmatpush1.msra.mxu0 0.0
    %3639 = vmatprep.subr.mxu0 0.0
    %3640 = vmatpush1.msra.mxu0 0.0
    %3641 = vmatprep.subr.mxu0 0.0
    %3642 = vmatpush1.msra.mxu0 0.0
    %3643 = vmatprep.subr.mxu0 0.0
    %3644 = vmatpush1.msra.mxu0 0.0
    %3645 = vmatprep.subr.mxu0 0.0
    %3646 = vmatpush1.msra.mxu0 0.0
    %3647 = vmatprep.subr.mxu0 0.0
    %3648 = vmatpush1.msra.mxu0 0.0
    %3649 = vmatprep.subr.mxu0 0.0
    %3650 = vmatpush1.msra.mxu0 0.0
    %3651 = vmatprep.subr.mxu0 0.0
    %3652 = vmatpush1.msra.mxu0 0.0
    %3653 = vmatprep.subr.mxu0 0.0
    %3654 = vmatpush1.msra.mxu0 0.0
    %3655 = vmatprep.subr.mxu0 0.0
    %3656 = vmatpush1.msra.mxu0 0.0
    %3657 = vmatprep.subr.mxu0 0.0
    %3658 = vmatpush1.msra.mxu0 0.0
    %3659 = vmatprep.subr.mxu0 0.0
    %3660 = vmatpush1.msra.mxu0 0.0
    %3661 = vmatprep.subr.mxu0 0.0
    %3662 = vmatpush1.msra.mxu0 0.0
    %3663 = vmatprep.subr.mxu0 0.0
    %3664 = vmatpush1.msra.mxu0 0.0
    %3665 = vmatprep.subr.mxu0 0.0
    %3666 = vmatpush1.msra.mxu0 0.0
    %3667 = vmatprep.subr.mxu0 0.0
    %3668 = vmatpush1.msra.mxu0 0.0
    %3669 = vmatprep.subr.mxu0 0.0
    %3670 = vmatpush1.msra.mxu0 0.0
    %3671 = vmatprep.subr.mxu0 0.0
    %3672 = vmatpush1.msra.mxu0 0.0
    %3673 = vmatprep.mubr.f32.mxu0 0.0
    %3674 = vmatmul.mubr.f32.gmra.mrb[0].mxu0 %v3604
    %v3675 = vpop.f32.mrb[0].mxu0
    %v3676 = vadd.f32 0.0, %v3675
    %v3677 = vpop.f32.mrb[0].mxu0
    %3678 = vdwg.mxu0
    %3679 = vst.msk [vmem:[#allocation7] sm:$0x3] %vm1523, %v3676
    // Predicated region
    $region18: #{tpu_custom_call.1} parent=1 // pred_check
      _
    $region19: #{tpu_custom_call.1} parent=1 // pred_check_branch
      %3681 = sbr.rel (0) target = $region21
    $region20: #{tpu_custom_call.1} parent=1 // pred_region
      %s3683 = ssub.s32 32, 32
      %3684 = vsyncadd [#allocation4], %s3683
      %s3686 = sshll.u32 [#allocation7], 4
      %s3687 = int_to_ptr.vmem [resolvable:$true] %s3686
      %3689 = dma.vmem_to_hbm [thread:$0]  %s3687, 32, %s2, [#allocation4]
    $region21: #{tpu_custom_call.1} parent=1 // pred_fallthru
      _
    // Predicated region
    $region22: #{tpu_custom_call.1} parent=1 // pred_check
      _
    $region23: #{tpu_custom_call.1} parent=1 // pred_check_branch
      %3691 = sbr.rel (0) target = $region25
    $region24: #{tpu_custom_call.1} parent=1 // pred_region
      %3692 = dma.done [#allocation4], 32
    $region25: #{tpu_custom_call.1} parent=1 // pred_fallthru
      _
    %3693 = vsyncpa [#allocation3], 1
    %3694 = vsyncpa [#allocation6], 1
    %3695 = vsyncpa [#allocation4], 1

</llo_original>
